<compile_context>
chip_gen: v6e
topology: v6e:2x2x1
jax: 0.10.0
libtpu: 0.0.40
codegen_flags: <defaults>
</compile_context>

<pallas_src>
import functools

import jax
import jax.numpy as jnp
import numpy as np
from jax.experimental import pallas as pl
from jax.experimental.pallas import tpu as pltpu


def _shift_time(arr, off):
    """arr: [B, t, X]; returns s with s[:, ti] = arr[:, ti + off], zero out of range."""
    if off == 0:
        return arr
    B, t, X = arr.shape
    zeros = jnp.zeros((B, abs(off), X), arr.dtype)
    if off > 0:
        return jnp.concatenate([arr[:, off:, :], zeros], axis=1)
    return jnp.concatenate([zeros, arr[:, : t + off, :]], axis=1)


def _tam_kernel(kernel_size, padding,
                x_ref, pool_ref, exp_ref,
                wg1_ref, b1_ref, wg2_ref,
                wl1_ref, b2_ref, wl2_ref,
                o_ref):
    K = kernel_size
    pad_g = K // 2
    B, t, CV = x_ref.shape
    C = pool_ref.shape[1]
    f32 = jnp.float32

    x3 = x_ref[...]                                       # [B, t, C*V]  (lane-dense slab)
    x2 = x3.reshape(B * t, CV)

    # ---- AdaptiveAvgPool2d((None, 1)) : mean over V, done on the MXU ----
    # pool_ref is a block-one-hot [C*V, C] matrix scaled by 1/V.
    pooled2 = jnp.dot(x2, pool_ref[...], preferred_element_type=f32)       # [B*t, C]
    pooled3 = pooled2.reshape(B, t, C)                                     # [B, t, C]

    E = exp_ref[...]                                      # [C, C*V]  (0/1 expansion matrix)

    # ---- G branch: Linear(t->2t) -> BN -> ReLU -> Linear(2t->K) -> Softmax ----
    # Weights are block-diagonalized over the batch tile in the wrapper, so the
    # whole tile is handled by three tiny full-size matmuls (channels on lanes,
    # no in-kernel transposes, no per-batch unrolled loop).
    h = jnp.dot(wg1_ref[...], pooled2, preferred_element_type=f32)         # [B*2t, C]
    h = jnp.maximum(h + b1_ref[...], 0.0)                                  # folded BN + ReLU
    logits = jnp.dot(wg2_ref[...], h, preferred_element_type=f32)          # [B*K, C]
    lg = logits.reshape(B, K, C)
    lg = lg - jnp.max(lg, axis=1, keepdims=True)
    eg = jnp.exp(lg)
    kern = (eg / jnp.sum(eg, axis=1, keepdims=True)).reshape(B * K, C)     # softmax over K
    # Expand per-channel kernel taps over the V lanes of each channel (one matmul).
    kern_exp = jnp.dot(kern, E, preferred_element_type=f32).reshape(B, K, CV)

    # ---- L branch: Conv1d(C->C/4, K) -> BN -> ReLU -> Conv1d(C/4->C, 1) -> Sigmoid ----
    # Single matmul: stack K temporally-shifted copies of pooled along the lane axis.
    stacked = jnp.concatenate(
        [_shift_time(pooled3, k - pad_g) for k in range(K)], axis=-1)      # [B, t, K*C]
    h2 = jnp.dot(stacked.reshape(B * t, K * C), wl1_ref[...],
                 preferred_element_type=f32)                               # [B*t, c4]
    h2 = jnp.maximum(h2 + b2_ref[...], 0.0)                                # folded BN + ReLU
    act = jnp.dot(h2, wl2_ref[...], preferred_element_type=f32)            # [B*t, C]
    act = 1.0 / (1.0 + jnp.exp(-act))                                      # sigmoid
    act_exp = jnp.dot(act, E, preferred_element_type=f32).reshape(B, t, CV)

    # ---- elementwise modulation + depthwise temporal conv (lane-dense, no scratch) ----
    y = x3 * act_exp                                                       # [B, t, C*V]
    acc = kern_exp[:, padding:padding + 1, :] * y                          # center tap
    for k in range(K):
        off = k - padding
        if off == 0:
            continue
        acc = acc + kern_exp[:, k:k + 1, :] * _shift_time(y, off)
    o_ref[...] = acc.astype(o_ref.dtype)


def init_params(key, in_channels, n_segment, kernel_size=3):
    """Deterministic synthetic parameters in raw PyTorch layouts."""
    t = n_segment
    c = in_channels
    c4 = c // 4
    k1, k2, k3, k4 = jax.random.split(key, 4)
    W_g1 = jax.random.normal(k1, (2 * t, t), jnp.float32) / np.sqrt(t)            # Linear(t, 2t)
    W_g2 = jax.random.normal(k2, (kernel_size, 2 * t), jnp.float32) / np.sqrt(2 * t)
    W_l1 = jax.random.normal(k3, (c4, c, kernel_size), jnp.float32) / np.sqrt(c * kernel_size)
    W_l2 = jax.random.normal(k4, (c, c4, 1), jnp.float32) / np.sqrt(c4)
    # BatchNorm folded to scale/bias (inference mode: running_mean=0, running_var=1,
    # gamma=1, beta=0 -- PyTorch defaults).
    # TODO(synk): train-mode batch-statistics BatchNorm not implemented (needs
    #             cross-batch stats); inference-mode folded BN is used instead.
    eps = 1e-5
    s1 = jnp.full((2 * t,), 1.0 / np.sqrt(1.0 + eps), jnp.float32)
    b1 = jnp.zeros((2 * t,), jnp.float32)
    s2 = jnp.full((c4,), 1.0 / np.sqrt(1.0 + eps), jnp.float32)
    b2 = jnp.zeros((c4,), jnp.float32)
    return (W_g1, s1, b1, W_g2, W_l1, s2, b2, W_l2)


def _choose_b_tile(n_batch, bytes_per_batch, max_block_bytes=2 * 1024 * 1024, max_tile=16):
    """Largest divisor of n_batch that fits the VMEM budget and keeps >=2 grid steps."""
    best = 1
    for bt in range(1, min(n_batch, max_tile) + 1):
        if n_batch % bt != 0:
            continue
        if bt * bytes_per_batch > max_block_bytes:
            continue
        if n_batch >= 2 and (n_batch // bt) < 2:
            continue  # keep both v7x TensorCores busy
        best = bt
    return best


def tam_forward(x, params, n_segment, kernel_size=3, stride=1, padding=1):
    assert stride == 1 and kernel_size - 1 == 2 * padding, "same-length temporal conv only"
    W_g1, s1, b1, W_g2, W_l1, s2, b2, W_l2 = params
    N, T, C, V = x.shape
    t = n_segment
    assert (N * T) % t == 0
    n_batch = (N * T) // t
    CV = C * V
    c4 = W_l1.shape[0]
    K = kernel_size

    # Native-layout view: [N, T, C, V] -> [n_batch, t, C*V]. Pure reshape: NO HBM transpose.
    x_flat = x.reshape(n_batch, t, CV)

    bytes_per_batch = t * CV * 4
    b_tile = _choose_b_tile(n_batch, bytes_per_batch)
    grid = (n_batch // b_tile,)

    # --- pack weights into kernel-ready layouts (tiny, one-off XLA work) ---
    # Fold BN scales into the preceding Linear/Conv weights (inference mode).
    wg1s = W_g1 * s1[:, None]                                         # [2t, t]
    wl1_mat = jnp.transpose(W_l1, (2, 1, 0)).reshape(K * C, c4) * s2[None, :]  # rows (k, c)
    wl2_mat = W_l2[:, :, 0].T                                         # [c4, C]
    # Block-diagonalize the tiny G-branch weights over the batch tile so the
    # whole G branch is three full-tile matmuls inside the kernel.
    eyeB = jnp.eye(b_tile, dtype=jnp.float32)
    wg1_bd = jnp.kron(eyeB, wg1s)                                     # [B*2t, B*t]
    wg2_bd = jnp.kron(eyeB, W_g2)                                     # [B*K,  B*2t]
    b1_bd = jnp.tile(b1, b_tile).reshape(b_tile * 2 * t, 1)
    b2_row = b2.reshape(1, c4)

    # --- block-one-hot matrices mapping packed C*V lanes <-> channels ---
    m_idx = jnp.arange(CV, dtype=jnp.int32)[:, None]
    c_idx = jnp.arange(C, dtype=jnp.int32)[None, :]
    onehot = ((m_idx >= c_idx * V) & (m_idx < (c_idx + 1) * V)).astype(jnp.float32)  # [CV, C]
    pool_mat = onehot / float(V)            # mean over V as a matmul
    exp_mat = onehot.T                      # broadcast per-channel scalars over V lanes

    kernel = functools.partial(_tam_kernel, kernel_size, padding)
    out = pl.pallas_call(
        kernel,
        out_shape=jax.ShapeDtypeStruct((n_batch, t, CV), jnp.float32),
        grid=grid,
        in_specs=[
            pl.BlockSpec((b_tile, t, CV), lambda i: (i, 0, 0)),              # x slab (lane-dense)
            pl.BlockSpec((CV, C), lambda i: (0, 0)),                         # pooling matrix
            pl.BlockSpec((C, CV), lambda i: (0, 0)),                         # expansion matrix
            pl.BlockSpec((b_tile * 2 * t, b_tile * t), lambda i: (0, 0)),    # G linear1 (block-diag)
            pl.BlockSpec((b_tile * 2 * t, 1), lambda i: (0, 0)),             # BN1 bias (tiled)
            pl.BlockSpec((b_tile * K, b_tile * 2 * t), lambda i: (0, 0)),    # G linear2 (block-diag)
            pl.BlockSpec((K * C, c4), lambda i: (0, 0)),                     # L conv1 [(k,c), c4]
            pl.BlockSpec((1, c4), lambda i: (0, 0)),                         # BN2 bias
            pl.BlockSpec((c4, C), lambda i: (0, 0)),                         # L conv2 weight
        ],
        out_specs=pl.BlockSpec((b_tile, t, CV), lambda i: (i, 0, 0)),
        compiler_params=pltpu.CompilerParams(
            dimension_semantics=("parallel",),
            vmem_limit_bytes=32 * 1024 * 1024,
        ),
    )(x_flat, pool_mat, exp_mat, wg1_bd, b1_bd, wg2_bd, wl1_mat, b2_row, wl2_mat)

    # Output is already in the native layout: just a free reshape back.
    return out.reshape(N, T, C, V)


def tam_reference(x, params, n_segment, kernel_size=3, padding=1):
    """Pure-JAX reference mirroring the PyTorch forward (inference-mode BN)."""
    W_g1, s1, b1, W_g2, W_l1, s2, b2, W_l2 = params
    N, T, C, V = x.shape
    t = n_segment
    nb = (N * T) // t
    K = kernel_size
    new_x = x.reshape(nb, t, C, V).transpose(0, 2, 1, 3)               # [nb, C, t, V]
    pooled = new_x.mean(-1)                                            # [nb, C, t]
    # G branch
    h = jnp.einsum('bct,ut->bcu', pooled, W_g1)
    h = jnp.maximum(h * s1 + b1, 0.0)
    kern = jax.nn.softmax(jnp.einsum('bcu,ku->bck', h, W_g2), axis=-1)  # [nb, C, K]
    # L branch
    pad_g = K // 2
    pp = jnp.pad(pooled, ((0, 0), (0, 0), (pad_g, pad_g)))
    h2 = jnp.zeros((nb, W_l1.shape[0], t), jnp.float32)
    for k in range(K):
        h2 = h2 + jnp.einsum('jc,bct->bjt', W_l1[:, :, k], pp[:, :, k:k + t])
    h2 = jnp.maximum(h2 * s2[None, :, None] + b2[None, :, None], 0.0)
    act = jax.nn.sigmoid(jnp.einsum('cj,bjt->bct', W_l2[:, :, 0], h2))  # [nb, C, t]
    y = new_x * act[..., None]
    yp = jnp.pad(y, ((0, 0), (0, 0), (padding, padding), (0, 0)))
    out = jnp.zeros_like(y)
    for k in range(K):
        out = out + kern[:, :, k][..., None, None] * yp[:, :, k:k + t, :]
    return out.transpose(0, 2, 1, 3).reshape(N, T, C, V)


if __name__ == "__main__":
    # Small shapes consistent with the module: x is [N, T, C, V], n_segment = T,
    # in_channels = C = 64 (matches the spec's channel count, divisible by 4).
    N, T, C, V = 4, 8, 64, 32
    n_segment = T

    key = jax.random.PRNGKey(0)
    kx, kp = jax.random.split(key)
    x = jax.random.normal(kx, (N, T, C, V), jnp.float32)
    params = init_params(kp, C, n_segment, kernel_size=3)

    out = tam_forward(x, params, n_segment, kernel_size=3, stride=1, padding=1)
    out = jax.block_until_ready(out)
    assert out.shape == (N, T, C, V) and out.dtype == jnp.float32

    ref = tam_reference(x, params, n_segment, kernel_size=3, padding=1)
    np.testing.assert_allclose(np.asarray(out), np.asarray(ref), rtol=5e-4, atol=5e-4)

    print("KERNEL_OK")
</pallas_src>

<mosaic_0001>
module attributes {stable_mosaic.version = 11 : i64} {
  func.func @_tam_kernel(%arg0: i32, %arg1: memref<2x8x2048xf32, #tpu.memory_space<vmem>>, %arg2: memref<2048x64xf32, #tpu.memory_space<vmem>>, %arg3: memref<64x2048xf32, #tpu.memory_space<vmem>>, %arg4: memref<32x16xf32, #tpu.memory_space<vmem>>, %arg5: memref<32x1xf32, #tpu.memory_space<vmem>>, %arg6: memref<6x32xf32, #tpu.memory_space<vmem>>, %arg7: memref<192x16xf32, #tpu.memory_space<vmem>>, %arg8: memref<1x16xf32, #tpu.memory_space<vmem>>, %arg9: memref<16x64xf32, #tpu.memory_space<vmem>>, %arg10: memref<2x8x2048xf32, #tpu.memory_space<vmem>>) attributes {dimension_semantics = [#tpu.dimension_semantics<parallel>], iteration_bounds = array<i64: 2>, scalar_prefetch = 0 : i64, scratch_operands = 0 : i64, tpu.core_type = #tpu.core_type<tc>, window_params = [{transform_indices = @transform_0, window_bounds = array<i64: 2, 8, 2048>}, {pipeline_mode = #tpu.pipeline_mode<synchronous>, transform_indices = @transform_1, window_bounds = array<i64: 2048, 64>}, {pipeline_mode = #tpu.pipeline_mode<synchronous>, transform_indices = @transform_2, window_bounds = array<i64: 64, 2048>}, {pipeline_mode = #tpu.pipeline_mode<synchronous>, transform_indices = @transform_3, window_bounds = array<i64: 32, 16>}, {pipeline_mode = #tpu.pipeline_mode<synchronous>, transform_indices = @transform_4, window_bounds = array<i64: 32, 1>}, {pipeline_mode = #tpu.pipeline_mode<synchronous>, transform_indices = @transform_5, window_bounds = array<i64: 6, 32>}, {pipeline_mode = #tpu.pipeline_mode<synchronous>, transform_indices = @transform_6, window_bounds = array<i64: 192, 16>}, {pipeline_mode = #tpu.pipeline_mode<synchronous>, transform_indices = @transform_7, window_bounds = array<i64: 1, 16>}, {pipeline_mode = #tpu.pipeline_mode<synchronous>, transform_indices = @transform_8, window_bounds = array<i64: 16, 64>}, {transform_indices = @transform_9, window_bounds = array<i64: 2, 8, 2048>}]} {
    %c0 = arith.constant 0 : index
    %c0_0 = arith.constant 0 : index
    %c0_1 = arith.constant 0 : index
    %0 = vector.load %arg1[%c0, %c0_0, %c0_1] : memref<2x8x2048xf32, #tpu.memory_space<vmem>>, vector<2x8x2048xf32>
    %1 = vector.shape_cast %0 : vector<2x8x2048xf32> to vector<16x2048xf32>
    %c0_2 = arith.constant 0 : index
    %c0_3 = arith.constant 0 : index
    %2 = vector.load %arg2[%c0_2, %c0_3] : memref<2048x64xf32, #tpu.memory_space<vmem>>, vector<2048x64xf32>
    %cst = arith.constant dense<0.000000e+00> : vector<16x64xf32>
    %3 = tpu.matmul %1, %2, %cst {dimension_numbers = #tpu.dot_dimension_numbers<[1], [0], [0], [1], [0, 0, 1, 1], [], []>} : vector<16x2048xf32>, vector<2048x64xf32>, vector<16x64xf32> -> vector<16x64xf32>
    %4 = vector.shape_cast %3 : vector<16x64xf32> to vector<2x8x64xf32>
    %c0_4 = arith.constant 0 : index
    %c0_5 = arith.constant 0 : index
    %5 = vector.load %arg3[%c0_4, %c0_5] : memref<64x2048xf32, #tpu.memory_space<vmem>>, vector<64x2048xf32>
    %c0_6 = arith.constant 0 : index
    %c0_7 = arith.constant 0 : index
    %6 = vector.load %arg4[%c0_6, %c0_7] : memref<32x16xf32, #tpu.memory_space<vmem>>, vector<32x16xf32>
    %cst_8 = arith.constant dense<0.000000e+00> : vector<32x64xf32>
    %7 = tpu.matmul %6, %3, %cst_8 {dimension_numbers = #tpu.dot_dimension_numbers<[1], [0], [0], [1], [0, 0, 1, 1], [], []>} : vector<32x16xf32>, vector<16x64xf32>, vector<32x64xf32> -> vector<32x64xf32>
    %c0_9 = arith.constant 0 : index
    %c0_10 = arith.constant 0 : index
    %8 = vector.load %arg5[%c0_9, %c0_10] : memref<32x1xf32, #tpu.memory_space<vmem>>, vector<32x1xf32>
    %9 = vector.broadcast %8 : vector<32x1xf32> to vector<32x64xf32>
    %10 = arith.addf %7, %9 : vector<32x64xf32>
    %cst_11 = arith.constant 0.000000e+00 : f32
    %11 = vector.broadcast %cst_11 : f32 to vector<32x64xf32>
    %12 = arith.maximumf %10, %11 : vector<32x64xf32>
    %c0_12 = arith.constant 0 : index
    %c0_13 = arith.constant 0 : index
    %13 = vector.load %arg6[%c0_12, %c0_13] : memref<6x32xf32, #tpu.memory_space<vmem>>, vector<6x32xf32>
    %cst_14 = arith.constant dense<0.000000e+00> : vector<6x64xf32>
    %14 = tpu.matmul %13, %12, %cst_14 {dimension_numbers = #tpu.dot_dimension_numbers<[1], [0], [0], [1], [0, 0, 1, 1], [], []>} : vector<6x32xf32>, vector<32x64xf32>, vector<6x64xf32> -> vector<6x64xf32>
    %15 = vector.shape_cast %14 : vector<6x64xf32> to vector<2x3x64xf32>
    %cst_15 = arith.constant dense<0xFF800000> : vector<2x64xf32>
    %16 = vector.multi_reduction <maximumf>, %15, %cst_15 [1] : vector<2x3x64xf32> to vector<2x64xf32>
    %17 = vector.shape_cast %16 : vector<2x64xf32> to vector<2x1x64xf32>
    %18 = vector.broadcast %17 : vector<2x1x64xf32> to vector<2x3x64xf32>
    %19 = arith.subf %15, %18 : vector<2x3x64xf32>
    %20 = math.exp %19 : vector<2x3x64xf32>
    %cst_16 = arith.constant dense<0.000000e+00> : vector<2x64xf32>
    %21 = vector.multi_reduction <add>, %20, %cst_16 [1] : vector<2x3x64xf32> to vector<2x64xf32>
    %22 = vector.shape_cast %21 : vector<2x64xf32> to vector<2x1x64xf32>
    %23 = vector.broadcast %22 : vector<2x1x64xf32> to vector<2x3x64xf32>
    %24 = arith.divf %20, %23 : vector<2x3x64xf32>
    %25 = vector.shape_cast %24 : vector<2x3x64xf32> to vector<6x64xf32>
    %cst_17 = arith.constant dense<0.000000e+00> : vector<6x2048xf32>
    %26 = tpu.matmul %25, %5, %cst_17 {dimension_numbers = #tpu.dot_dimension_numbers<[1], [0], [0], [1], [0, 0, 1, 1], [], []>} : vector<6x64xf32>, vector<64x2048xf32>, vector<6x2048xf32> -> vector<6x2048xf32>
    %27 = vector.shape_cast %26 : vector<6x2048xf32> to vector<2x3x2048xf32>
    %cst_18 = arith.constant 0.000000e+00 : f32
    %28 = vector.broadcast %cst_18 : f32 to vector<2x1x64xf32>
    %29 = vector.extract_strided_slice %4 {offsets = [0, 0, 0], sizes = [2, 7, 64], strides = [1, 1, 1]} : vector<2x8x64xf32> to vector<2x7x64xf32>
    %30 = tpu.concatenate %28, %29 in 1 : vector<2x1x64xf32>, vector<2x7x64xf32> -> vector<2x8x64xf32>
    %cst_19 = arith.constant 0.000000e+00 : f32
    %31 = vector.broadcast %cst_19 : f32 to vector<2x1x64xf32>
    %32 = vector.extract_strided_slice %4 {offsets = [0, 1, 0], sizes = [2, 7, 64], strides = [1, 1, 1]} : vector<2x8x64xf32> to vector<2x7x64xf32>
    %33 = tpu.concatenate %32, %31 in 1 : vector<2x7x64xf32>, vector<2x1x64xf32> -> vector<2x8x64xf32>
    %34 = tpu.concatenate %30, %4, %33 in 2 : vector<2x8x64xf32>, vector<2x8x64xf32>, vector<2x8x64xf32> -> vector<2x8x192xf32>
    %35 = vector.shape_cast %34 : vector<2x8x192xf32> to vector<16x192xf32>
    %c0_20 = arith.constant 0 : index
    %c0_21 = arith.constant 0 : index
    %36 = vector.load %arg7[%c0_20, %c0_21] : memref<192x16xf32, #tpu.memory_space<vmem>>, vector<192x16xf32>
    %cst_22 = arith.constant dense<0.000000e+00> : vector<16x16xf32>
    %37 = tpu.matmul %35, %36, %cst_22 {dimension_numbers = #tpu.dot_dimension_numbers<[1], [0], [0], [1], [0, 0, 1, 1], [], []>} : vector<16x192xf32>, vector<192x16xf32>, vector<16x16xf32> -> vector<16x16xf32>
    %c0_23 = arith.constant 0 : index
    %c0_24 = arith.constant 0 : index
    %38 = vector.load %arg8[%c0_23, %c0_24] : memref<1x16xf32, #tpu.memory_space<vmem>>, vector<1x16xf32>
    %39 = vector.broadcast %38 : vector<1x16xf32> to vector<16x16xf32>
    %40 = arith.addf %37, %39 : vector<16x16xf32>
    %cst_25 = arith.constant 0.000000e+00 : f32
    %41 = vector.broadcast %cst_25 : f32 to vector<16x16xf32>
    %42 = arith.maximumf %40, %41 : vector<16x16xf32>
    %c0_26 = arith.constant 0 : index
    %c0_27 = arith.constant 0 : index
    %43 = vector.load %arg9[%c0_26, %c0_27] : memref<16x64xf32, #tpu.memory_space<vmem>>, vector<16x64xf32>
    %cst_28 = arith.constant dense<0.000000e+00> : vector<16x64xf32>
    %44 = tpu.matmul %42, %43, %cst_28 {dimension_numbers = #tpu.dot_dimension_numbers<[1], [0], [0], [1], [0, 0, 1, 1], [], []>} : vector<16x16xf32>, vector<16x64xf32>, vector<16x64xf32> -> vector<16x64xf32>
    %cst_29 = arith.constant 0.000000e+00 : f32
    %45 = vector.broadcast %cst_29 : f32 to vector<16x64xf32>
    %46 = arith.subf %45, %44 : vector<16x64xf32>
    %47 = math.exp %46 : vector<16x64xf32>
    %cst_30 = arith.constant 1.000000e+00 : f32
    %48 = vector.broadcast %cst_30 : f32 to vector<16x64xf32>
    %49 = arith.addf %48, %47 : vector<16x64xf32>
    %cst_31 = arith.constant 1.000000e+00 : f32
    %50 = vector.broadcast %cst_31 : f32 to vector<16x64xf32>
    %51 = arith.divf %50, %49 : vector<16x64xf32>
    %cst_32 = arith.constant dense<0.000000e+00> : vector<16x2048xf32>
    %52 = tpu.matmul %51, %5, %cst_32 {dimension_numbers = #tpu.dot_dimension_numbers<[1], [0], [0], [1], [0, 0, 1, 1], [], []>} : vector<16x64xf32>, vector<64x2048xf32>, vector<16x2048xf32> -> vector<16x2048xf32>
    %53 = vector.shape_cast %52 : vector<16x2048xf32> to vector<2x8x2048xf32>
    %54 = arith.mulf %0, %53 : vector<2x8x2048xf32>
    %55 = vector.extract_strided_slice %27 {offsets = [0, 1, 0], sizes = [2, 1, 2048], strides = [1, 1, 1]} : vector<2x3x2048xf32> to vector<2x1x2048xf32>
    %56 = vector.broadcast %55 : vector<2x1x2048xf32> to vector<2x8x2048xf32>
    %57 = arith.mulf %56, %54 : vector<2x8x2048xf32>
    %58 = vector.extract_strided_slice %27 {offsets = [0, 0, 0], sizes = [2, 1, 2048], strides = [1, 1, 1]} : vector<2x3x2048xf32> to vector<2x1x2048xf32>
    %cst_33 = arith.constant 0.000000e+00 : f32
    %59 = vector.broadcast %cst_33 : f32 to vector<2x1x2048xf32>
    %60 = vector.extract_strided_slice %54 {offsets = [0, 0, 0], sizes = [2, 7, 2048], strides = [1, 1, 1]} : vector<2x8x2048xf32> to vector<2x7x2048xf32>
    %61 = tpu.concatenate %59, %60 in 1 : vector<2x1x2048xf32>, vector<2x7x2048xf32> -> vector<2x8x2048xf32>
    %62 = vector.broadcast %58 : vector<2x1x2048xf32> to vector<2x8x2048xf32>
    %63 = arith.mulf %62, %61 : vector<2x8x2048xf32>
    %64 = arith.addf %57, %63 : vector<2x8x2048xf32>
    %65 = vector.extract_strided_slice %27 {offsets = [0, 2, 0], sizes = [2, 1, 2048], strides = [1, 1, 1]} : vector<2x3x2048xf32> to vector<2x1x2048xf32>
    %cst_34 = arith.constant 0.000000e+00 : f32
    %66 = vector.broadcast %cst_34 : f32 to vector<2x1x2048xf32>
    %67 = vector.extract_strided_slice %54 {offsets = [0, 1, 0], sizes = [2, 7, 2048], strides = [1, 1, 1]} : vector<2x8x2048xf32> to vector<2x7x2048xf32>
    %68 = tpu.concatenate %67, %66 in 1 : vector<2x7x2048xf32>, vector<2x1x2048xf32> -> vector<2x8x2048xf32>
    %69 = vector.broadcast %65 : vector<2x1x2048xf32> to vector<2x8x2048xf32>
    %70 = arith.mulf %69, %68 : vector<2x8x2048xf32>
    %71 = arith.addf %64, %70 : vector<2x8x2048xf32>
    %c0_35 = arith.constant 0 : index
    %c0_36 = arith.constant 0 : index
    %c0_37 = arith.constant 0 : index
    %72 = vector.load %arg10[%c0_35, %c0_36, %c0_37] : memref<2x8x2048xf32, #tpu.memory_space<vmem>>, vector<2x8x2048xf32>
    tpu.vector_store %arg10[%c0_35, %c0_36, %c0_37], %71 {strides = array<i32>} : memref<2x8x2048xf32, #tpu.memory_space<vmem>>, vector<2x8x2048xf32>,
    return
  }
  func.func @transform_0(%arg0: i32) -> (i32, i32, i32) {
    %c0_i32 = arith.constant 0 : i32
    %c0_i32_0 = arith.constant 0 : i32
    %c0_i32_1 = arith.constant 0 : i32
    return %arg0, %c0_i32, %c0_i32_0 : i32, i32, i32
  }
  func.func @transform_1(%arg0: i32) -> (i32, i32) {
    %c0_i32 = arith.constant 0 : i32
    %c0_i32_0 = arith.constant 0 : i32
    %c0_i32_1 = arith.constant 0 : i32
    return %c0_i32, %c0_i32_0 : i32, i32
  }
  func.func @transform_2(%arg0: i32) -> (i32, i32) {
    %c0_i32 = arith.constant 0 : i32
    %c0_i32_0 = arith.constant 0 : i32
    %c0_i32_1 = arith.constant 0 : i32
    return %c0_i32, %c0_i32_0 : i32, i32
  }
  func.func @transform_3(%arg0: i32) -> (i32, i32) {
    %c0_i32 = arith.constant 0 : i32
    %c0_i32_0 = arith.constant 0 : i32
    %c0_i32_1 = arith.constant 0 : i32
    return %c0_i32, %c0_i32_0 : i32, i32
  }
  func.func @transform_4(%arg0: i32) -> (i32, i32) {
    %c0_i32 = arith.constant 0 : i32
    %c0_i32_0 = arith.constant 0 : i32
    %c0_i32_1 = arith.constant 0 : i32
    return %c0_i32, %c0_i32_0 : i32, i32
  }
  func.func @transform_5(%arg0: i32) -> (i32, i32) {
    %c0_i32 = arith.constant 0 : i32
    %c0_i32_0 = arith.constant 0 : i32
    %c0_i32_1 = arith.constant 0 : i32
    return %c0_i32, %c0_i32_0 : i32, i32
  }
  func.func @transform_6(%arg0: i32) -> (i32, i32) {
    %c0_i32 = arith.constant 0 : i32
    %c0_i32_0 = arith.constant 0 : i32
    %c0_i32_1 = arith.constant 0 : i32
    return %c0_i32, %c0_i32_0 : i32, i32
  }
  func.func @transform_7(%arg0: i32) -> (i32, i32) {
    %c0_i32 = arith.constant 0 : i32
    %c0_i32_0 = arith.constant 0 : i32
    %c0_i32_1 = arith.constant 0 : i32
    return %c0_i32, %c0_i32_0 : i32, i32
  }
  func.func @transform_8(%arg0: i32) -> (i32, i32) {
    %c0_i32 = arith.constant 0 : i32
    %c0_i32_0 = arith.constant 0 : i32
    %c0_i32_1 = arith.constant 0 : i32
    return %c0_i32, %c0_i32_0 : i32, i32
  }
  func.func @transform_9(%arg0: i32) -> (i32, i32, i32) {
    %c0_i32 = arith.constant 0 : i32
    %c0_i32_0 = arith.constant 0 : i32
    %c0_i32_1 = arith.constant 0 : i32
    return %arg0, %c0_i32, %c0_i32_0 : i32, i32, i32
  }
}

</mosaic_0001>

<llo_original>
// kernel: tpu_custom_call.1
$region0: #{tpu_custom_call.1}
  #allocation0 [shape = 'u32[]', space=smem, size = 0x4, offset = 0x4, fixed_abs, tag = 'smem constant byte address 0x4 - core index']
  #allocation1 [shape = 'u32[144,128]{1,0:T(1,128)}', space=vmem, size = 0x12000, scoped, tag = 'internal scratch']
  %s0 = inlined_call_operand.vmem [shape: f32[4,8,2048], index: 0, kind: input, shape index: {}]
  %s1 = inlined_call_operand.vmem [shape: f32[2048,64], index: 1, kind: input, shape index: {}]
  %s2 = inlined_call_operand.vmem [shape: f32[64,2048], index: 2, kind: input, shape index: {}]
  %s3 = inlined_call_operand.vmem [shape: f32[32,16], index: 3, kind: input, shape index: {}]
  %s4 = inlined_call_operand.vmem [shape: f32[32,1], index: 4, kind: input, shape index: {}]
  %s5 = inlined_call_operand.vmem [shape: f32[6,32], index: 5, kind: input, shape index: {}]
  %s6 = inlined_call_operand.vmem [shape: f32[192,16], index: 6, kind: input, shape index: {}]
  %s7 = inlined_call_operand.vmem [shape: f32[1,16], index: 7, kind: input, shape index: {}]
  %s8 = inlined_call_operand.vmem [shape: f32[16,64], index: 8, kind: input, shape index: {}]
  %s9 = inlined_call_operand.hbm [shape: f32[4,8,2048], index: 9, kind: output, shape index: {}]
  %s10 = sld [smem:[#allocation0]]
  $region69: #{tpu_custom_call.1} parent=0
    _
  %s12 = ssub.s32 1, %s10
  %s13 = scalar_select 0, %s12, %s10
  $region1: #{tpu_custom_call.1} parent=0
    #allocation2 [shape = 'u8[262144]{0}', space=vmem, size = 0x40000, scoped, tag = 'output window, operand 0']
    #allocation3 [shape = 's32[2]{0}', space=sflag, size = 0x8, scoped, tag = 'scoped memory for tpu_custom_call.1']
    %14 = vsyncpa [#allocation3], 0
    %s15 = scalar_lea.sflag [#allocation3], 1
    %16 = vsyncpa %s15, 0
    loop: start=0, step=1, limit=4
    $region2: #{tpu_custom_call.1} parent=1 // loop_pre_header
      _
    $region3: #{tpu_custom_call.1} parent=1 // loop_header
      %s18 = sphi 0, %s22
      %p19 = scmp.ge.s32.totalorder %s18, 4
      %s28 = sphi 0, %s30
      %s31 = sphi 0, %s28
      %s32 = sphi 0, %s31
      %s48 = sphi 0, %s32
      %s52 = sphi 0, %s52
      %s54 = sphi 0, %s52
      %s55 = sphi 0, %s54
      %s69 = sphi 0, %s55
      %s73 = sphi 0, %s73
      %s75 = sphi 0, %s73
      %s76 = sphi 0, %s75
      %s90 = sphi 0, %s76
      %s94 = sphi 0, %s94
      %s96 = sphi 0, %s94
      %s97 = sphi 0, %s96
      %s111 = sphi 0, %s97
      %s115 = sphi 0, %s115
      %s117 = sphi 0, %s115
      %s118 = sphi 0, %s117
      %s132 = sphi 0, %s118
      %s136 = sphi 0, %s136
      %s138 = sphi 0, %s136
      %s139 = sphi 0, %s138
      %s153 = sphi 0, %s139
      %s157 = sphi 0, %s157
      %s159 = sphi 0, %s157
      %s160 = sphi 0, %s159
      %s174 = sphi 0, %s160
      %s178 = sphi 0, %s178
      %s180 = sphi 0, %s178
      %s181 = sphi 0, %s180
      %s195 = sphi 0, %s181
      %s199 = sphi 0, %s199
      %s201 = sphi 0, %s199
      %s202 = sphi 0, %s201
      %s216 = sphi 0, %s202
      %s222 = sphi 0, %s224
      %s225 = sphi 0, %s222
      %s226 = sphi 0, %s225
      %s242 = sphi 0, %s226
    $region4: #{tpu_custom_call.1} parent=1 // loop_header_branch
      %21 = sbr.rel (%p19) target = $region8
    $region5: #{tpu_custom_call.1} parent=1 // loop_body
      %s23 = ssub.s32 %s18, 1
      %s24 = ssub.s32 %s18, 2
      %s25 = sadd.s32 %s18, 1
      %s26 = ssub.s32 %s18, %s25
      %p27 = scmp.eq.s32.totalorder %s26, 0
      %s29 = sadd.s32 %s28, 1
      %s30 = scalar_select %p27, %s28, %s29
      %p33 = pneg %p27
      %p34 = scmp.eq.s32.totalorder %s18, 1
      %p35 = por %p33, %p34
      %p36 = scmp.ne.s32.totalorder %s28, %s31
      %p37 = scmp.eq.s32.totalorder %s18, 0
      %p38 = por %p36, %p37
      %p39 = scmp.ne.s32.totalorder %s28, %s31
      %p40 = scmp.eq.s32.totalorder %s23, 1
      %p41 = por %p39, %p40
      %p42 = scmp.ne.s32.totalorder %s31, %s32
      %p43 = scmp.eq.s32.totalorder %s23, 0
      %p44 = por %p42, %p43
      %p45 = scmp.ne.s32.totalorder %s31, %s32
      %p46 = scmp.eq.s32.totalorder %s24, 1
      %p47 = por %p45, %p46
      %p49 = scmp.ne.s32.totalorder %s32, %s48
      %p50 = scmp.eq.s32.totalorder %s24, 0
      %p51 = por %p49, %p50
      %s53 = sadd.s32 %s52, 1
      %p56 = scmp.eq.s32.totalorder %s18, 1
      %p57 = scmp.ne.s32.totalorder %s52, %s54
      %p58 = scmp.eq.s32.totalorder %s18, 0
      %p59 = por %p57, %p58
      %p60 = scmp.ne.s32.totalorder %s52, %s54
      %p61 = scmp.eq.s32.totalorder %s23, 1
      %p62 = por %p60, %p61
      %p63 = scmp.ne.s32.totalorder %s54, %s55
      %p64 = scmp.eq.s32.totalorder %s23, 0
      %p65 = por %p63, %p64
      %p66 = scmp.ne.s32.totalorder %s54, %s55
      %p67 = scmp.eq.s32.totalorder %s24, 1
      %p68 = por %p66, %p67
      %p70 = scmp.ne.s32.totalorder %s55, %s69
      %p71 = scmp.eq.s32.totalorder %s24, 0
      %p72 = por %p70, %p71
      %s74 = sadd.s32 %s73, 1
      %p77 = scmp.eq.s32.totalorder %s18, 1
      %p78 = scmp.ne.s32.totalorder %s73, %s75
      %p79 = scmp.eq.s32.totalorder %s18, 0
      %p80 = por %p78, %p79
      %p81 = scmp.ne.s32.totalorder %s73, %s75
      %p82 = scmp.eq.s32.totalorder %s23, 1
      %p83 = por %p81, %p82
      %p84 = scmp.ne.s32.totalorder %s75, %s76
      %p85 = scmp.eq.s32.totalorder %s23, 0
      %p86 = por %p84, %p85
      %p87 = scmp.ne.s32.totalorder %s75, %s76
      %p88 = scmp.eq.s32.totalorder %s24, 1
      %p89 = por %p87, %p88
      %p91 = scmp.ne.s32.totalorder %s76, %s90
      %p92 = scmp.eq.s32.totalorder %s24, 0
      %p93 = por %p91, %p92
      %s95 = sadd.s32 %s94, 1
      %p98 = scmp.eq.s32.totalorder %s18, 1
      %p99 = scmp.ne.s32.totalorder %s94, %s96
      %p100 = scmp.eq.s32.totalorder %s18, 0
      %p101 = por %p99, %p100
      %p102 = scmp.ne.s32.totalorder %s94, %s96
      %p103 = scmp.eq.s32.totalorder %s23, 1
      %p104 = por %p102, %p103
      %p105 = scmp.ne.s32.totalorder %s96, %s97
      %p106 = scmp.eq.s32.totalorder %s23, 0
      %p107 = por %p105, %p106
      %p108 = scmp.ne.s32.totalorder %s96, %s97
      %p109 = scmp.eq.s32.totalorder %s24, 1
      %p110 = por %p108, %p109
      %p112 = scmp.ne.s32.totalorder %s97, %s111
      %p113 = scmp.eq.s32.totalorder %s24, 0
      %p114 = por %p112, %p113
      %s116 = sadd.s32 %s115, 1
      %p119 = scmp.eq.s32.totalorder %s18, 1
      %p120 = scmp.ne.s32.totalorder %s115, %s117
      %p121 = scmp.eq.s32.totalorder %s18, 0
      %p122 = por %p120, %p121
      %p123 = scmp.ne.s32.totalorder %s115, %s117
      %p124 = scmp.eq.s32.totalorder %s23, 1
      %p125 = por %p123, %p124
      %p126 = scmp.ne.s32.totalorder %s117, %s118
      %p127 = scmp.eq.s32.totalorder %s23, 0
      %p128 = por %p126, %p127
      %p129 = scmp.ne.s32.totalorder %s117, %s118
      %p130 = scmp.eq.s32.totalorder %s24, 1
      %p131 = por %p129, %p130
      %p133 = scmp.ne.s32.totalorder %s118, %s132
      %p134 = scmp.eq.s32.totalorder %s24, 0
      %p135 = por %p133, %p134
      %s137 = sadd.s32 %s136, 1
      %p140 = scmp.eq.s32.totalorder %s18, 1
      %p141 = scmp.ne.s32.totalorder %s136, %s138
      %p142 = scmp.eq.s32.totalorder %s18, 0
      %p143 = por %p141, %p142
      %p144 = scmp.ne.s32.totalorder %s136, %s138
      %p145 = scmp.eq.s32.totalorder %s23, 1
      %p146 = por %p144, %p145
      %p147 = scmp.ne.s32.totalorder %s138, %s139
      %p148 = scmp.eq.s32.totalorder %s23, 0
      %p149 = por %p147, %p148
      %p150 = scmp.ne.s32.totalorder %s138, %s139
      %p151 = scmp.eq.s32.totalorder %s24, 1
      %p152 = por %p150, %p151
      %p154 = scmp.ne.s32.totalorder %s139, %s153
      %p155 = scmp.eq.s32.totalorder %s24, 0
      %p156 = por %p154, %p155
      %s158 = sadd.s32 %s157, 1
      %p161 = scmp.eq.s32.totalorder %s18, 1
      %p162 = scmp.ne.s32.totalorder %s157, %s159
      %p163 = scmp.eq.s32.totalorder %s18, 0
      %p164 = por %p162, %p163
      %p165 = scmp.ne.s32.totalorder %s157, %s159
      %p166 = scmp.eq.s32.totalorder %s23, 1
      %p167 = por %p165, %p166
      %p168 = scmp.ne.s32.totalorder %s159, %s160
      %p169 = scmp.eq.s32.totalorder %s23, 0
      %p170 = por %p168, %p169
      %p171 = scmp.ne.s32.totalorder %s159, %s160
      %p172 = scmp.eq.s32.totalorder %s24, 1
      %p173 = por %p171, %p172
      %p175 = scmp.ne.s32.totalorder %s160, %s174
      %p176 = scmp.eq.s32.totalorder %s24, 0
      %p177 = por %p175, %p176
      %s179 = sadd.s32 %s178, 1
      %p182 = scmp.eq.s32.totalorder %s18, 1
      %p183 = scmp.ne.s32.totalorder %s178, %s180
      %p184 = scmp.eq.s32.totalorder %s18, 0
      %p185 = por %p183, %p184
      %p186 = scmp.ne.s32.totalorder %s178, %s180
      %p187 = scmp.eq.s32.totalorder %s23, 1
      %p188 = por %p186, %p187
      %p189 = scmp.ne.s32.totalorder %s180, %s181
      %p190 = scmp.eq.s32.totalorder %s23, 0
      %p191 = por %p189, %p190
      %p192 = scmp.ne.s32.totalorder %s180, %s181
      %p193 = scmp.eq.s32.totalorder %s24, 1
      %p194 = por %p192, %p193
      %p196 = scmp.ne.s32.totalorder %s181, %s195
      %p197 = scmp.eq.s32.totalorder %s24, 0
      %p198 = por %p196, %p197
      %s200 = sadd.s32 %s199, 1
      %p203 = scmp.eq.s32.totalorder %s18, 1
      %p204 = scmp.ne.s32.totalorder %s199, %s201
      %p205 = scmp.eq.s32.totalorder %s18, 0
      %p206 = por %p204, %p205
      %p207 = scmp.ne.s32.totalorder %s199, %s201
      %p208 = scmp.eq.s32.totalorder %s23, 1
      %p209 = por %p207, %p208
      %p210 = scmp.ne.s32.totalorder %s201, %s202
      %p211 = scmp.eq.s32.totalorder %s23, 0
      %p212 = por %p210, %p211
      %p213 = scmp.ne.s32.totalorder %s201, %s202
      %p214 = scmp.eq.s32.totalorder %s24, 1
      %p215 = por %p213, %p214
      %p217 = scmp.ne.s32.totalorder %s202, %s216
      %p218 = scmp.eq.s32.totalorder %s24, 0
      %p219 = por %p217, %p218
      %s220 = ssub.s32 %s18, %s25
      %p221 = scmp.eq.s32.totalorder %s220, 0
      %s223 = sadd.s32 %s222, 1
      %s224 = scalar_select %p221, %s222, %s223
      %p227 = pneg %p221
      %p228 = scmp.eq.s32.totalorder %s18, 1
      %p229 = por %p227, %p228
      %p230 = scmp.ne.s32.totalorder %s222, %s225
      %p231 = scmp.eq.s32.totalorder %s18, 0
      %p232 = por %p230, %p231
      %p233 = scmp.ne.s32.totalorder %s222, %s225
      %p234 = scmp.eq.s32.totalorder %s23, 1
      %p235 = por %p233, %p234
      %p236 = scmp.ne.s32.totalorder %s225, %s226
      %p237 = scmp.eq.s32.totalorder %s23, 0
      %p238 = por %p236, %p237
      %p239 = scmp.ne.s32.totalorder %s225, %s226
      %p240 = scmp.eq.s32.totalorder %s24, 1
      %p241 = por %p239, %p240
      %p243 = scmp.ne.s32.totalorder %s226, %s242
      %p244 = scmp.eq.s32.totalorder %s24, 0
      %p245 = por %p243, %p244
      %p246 = scmp.le.s32.totalorder 1, %s18
      %p247 = scmp.lt.s32.totalorder %s18, 3
      %p248 = pnand %p246, %p247
      %p249 = pneg %p248
      // Predicated region
      $region9: #{tpu_custom_call.1} parent=5 // pred_check
        _
      $region10: #{tpu_custom_call.1} parent=5 // pred_check_branch
        %251 = sbr.rel (%p248) target = $region12
      $region11: #{tpu_custom_call.1} parent=5 // pred_region
        %s252 = ssub.s32 %s18, 1
        // Predicated region
        $region13: #{tpu_custom_call.1} parent=11 // pred_check
          %p253 = pneg %p65
        $region14: #{tpu_custom_call.1} parent=11 // pred_check_branch
          %255 = sbr.rel (%p253) target = $region16
        $region15: #{tpu_custom_call.1} parent=11 // pred_region
          _
        $region16: #{tpu_custom_call.1} parent=11 // pred_fallthru
          _
        // Predicated region
        $region17: #{tpu_custom_call.1} parent=11 // pred_check
          %p256 = pneg %p86
        $region18: #{tpu_custom_call.1} parent=11 // pred_check_branch
          %258 = sbr.rel (%p256) target = $region20
        $region19: #{tpu_custom_call.1} parent=11 // pred_region
          _
        $region20: #{tpu_custom_call.1} parent=11 // pred_fallthru
          _
        // Predicated region
        $region21: #{tpu_custom_call.1} parent=11 // pred_check
          %p259 = pneg %p107
        $region22: #{tpu_custom_call.1} parent=11 // pred_check_branch
          %261 = sbr.rel (%p259) target = $region24
        $region23: #{tpu_custom_call.1} parent=11 // pred_region
          _
        $region24: #{tpu_custom_call.1} parent=11 // pred_fallthru
          _
        // Predicated region
        $region25: #{tpu_custom_call.1} parent=11 // pred_check
          %p262 = pneg %p128
        $region26: #{tpu_custom_call.1} parent=11 // pred_check_branch
          %264 = sbr.rel (%p262) target = $region28
        $region27: #{tpu_custom_call.1} parent=11 // pred_region
          _
        $region28: #{tpu_custom_call.1} parent=11 // pred_fallthru
          _
        // Predicated region
        $region29: #{tpu_custom_call.1} parent=11 // pred_check
          %p265 = pneg %p149
        $region30: #{tpu_custom_call.1} parent=11 // pred_check_branch
          %267 = sbr.rel (%p265) target = $region32
        $region31: #{tpu_custom_call.1} parent=11 // pred_region
          _
        $region32: #{tpu_custom_call.1} parent=11 // pred_fallthru
          _
        // Predicated region
        $region33: #{tpu_custom_call.1} parent=11 // pred_check
          %p268 = pneg %p170
        $region34: #{tpu_custom_call.1} parent=11 // pred_check_branch
          %270 = sbr.rel (%p268) target = $region36
        $region35: #{tpu_custom_call.1} parent=11 // pred_region
          _
        $region36: #{tpu_custom_call.1} parent=11 // pred_fallthru
          _
        // Predicated region
        $region37: #{tpu_custom_call.1} parent=11 // pred_check
          %p271 = pneg %p191
        $region38: #{tpu_custom_call.1} parent=11 // pred_check_branch
          %273 = sbr.rel (%p271) target = $region40
        $region39: #{tpu_custom_call.1} parent=11 // pred_region
          _
        $region40: #{tpu_custom_call.1} parent=11 // pred_fallthru
          _
        // Predicated region
        $region41: #{tpu_custom_call.1} parent=11 // pred_check
          %p274 = pneg %p212
        $region42: #{tpu_custom_call.1} parent=11 // pred_check_branch
          %276 = sbr.rel (%p274) target = $region44
        $region43: #{tpu_custom_call.1} parent=11 // pred_region
          _
        $region44: #{tpu_custom_call.1} parent=11 // pred_fallthru
          _
      $region12: #{tpu_custom_call.1} parent=5 // pred_fallthru
        _
      %p277 = scmp.lt.s32.totalorder %s18, 2
      // Predicated region
      $region45: #{tpu_custom_call.1} parent=5 // pred_check
        %p278 = pneg %p277
      $region46: #{tpu_custom_call.1} parent=5 // pred_check_branch
        %280 = sbr.rel (%p278) target = $region48
      $region47: #{tpu_custom_call.1} parent=5 // pred_region
        // Predicated region
        $region49: #{tpu_custom_call.1} parent=47 // pred_check
          %p281 = pneg %p38
        $region50: #{tpu_custom_call.1} parent=47 // pred_check_branch
          %283 = sbr.rel (%p281) target = $region52
        $region51: #{tpu_custom_call.1} parent=47 // pred_region
          %s284 = smul.u32 2, %s18
          %p285 = scmp.lt.s32.totalorder %s284, 3
          %s286 = scalar_select %p285, %s284, 3
          %s287 = smul.addr %s286, 16
          %s288 = smul.addr %s287, 8
          %s289 = scalar_lea.vmem %s0, %s288
          %s290 = smul.u32 2, %s18
        $region52: #{tpu_custom_call.1} parent=47 // pred_fallthru
          _
      $region48: #{tpu_custom_call.1} parent=5 // pred_fallthru
        _
      %p291 = scmp.le.s32.totalorder 1, %s18
      %p292 = scmp.lt.s32.totalorder %s18, 3
      %p293 = pnand %p291, %p292
      %p294 = pneg %p293
      // Predicated region
      $region53: #{tpu_custom_call.1} parent=5 // pred_check
        _
      $region54: #{tpu_custom_call.1} parent=5 // pred_check_branch
        %296 = sbr.rel (%p293) target = $region56
      $region55: #{tpu_custom_call.1} parent=5 // pred_region
        %s297 = ssub.s32 %s18, 1
        %s298 = smul.u32 2, %s23
        %p299 = scmp.lt.s32.totalorder %s298, 3
        %s300 = scalar_select %p299, %s298, 3
        %s301 = smul.addr %s300, 16
        %s302 = smul.addr %s301, 8
        %s303 = scalar_lea.vmem %s0, %s302
        %p304 = pneg %p44
        %p305 = pneg %p41
        %p306 = pneg %p65
        %p307 = pneg %p62
        %p308 = pneg %p86
        %p309 = pneg %p83
        %p310 = pneg %p107
        %p311 = pneg %p104
        %p312 = pneg %p128
        %p313 = pneg %p125
        %p314 = pneg %p149
        %p315 = pneg %p146
        %p316 = pneg %p170
        %p317 = pneg %p167
        %p318 = pneg %p191
        %p319 = pneg %p188
        %p320 = pneg %p212
        %p321 = pneg %p209
        %p322 = pneg %p238
        %p323 = pneg %p235
        %s324 = sand.u32 %s225, 1
        %s325 = scalar_lea.sflag [#allocation3], %s324
        %s326 = sand.u32 %s225, 1
        %s327 = smul.addr %s326, 256
        %s328 = scalar_lea.vmem [#allocation2], %s327
        %s329 = smul.u32 2, %s23
        %p330 = scmp.lt.s32.totalorder %s329, 3
        %s331 = scalar_select %p330, %s329, 3
        %s332 = smul.addr %s331, 16
        %s333 = smul.addr %s332, 8
        %s334 = scalar_lea.vmem %s0, %s333
        %s335 = smul.u32 2, %s23
        %s336 = smul.u32 2, %s23
        %v337 = vld [vmem:[%s334] sm:$0xff]
        %v338 = vld [vmem:[%s334 + $0x8] sm:$0xff]
        %v339 = vld [vmem:[%s334 + $0x10] sm:$0xff]
        %v340 = vld [vmem:[%s334 + $0x18] sm:$0xff]
        %v341 = vld [vmem:[%s334 + $0x20] sm:$0xff]
        %v342 = vld [vmem:[%s334 + $0x28] sm:$0xff]
        %v343 = vld [vmem:[%s334 + $0x30] sm:$0xff]
        %v344 = vld [vmem:[%s334 + $0x38] sm:$0xff]
        %v345 = vld [vmem:[%s334 + $0x40] sm:$0xff]
        %v346 = vld [vmem:[%s334 + $0x48] sm:$0xff]
        %v347 = vld [vmem:[%s334 + $0x50] sm:$0xff]
        %v348 = vld [vmem:[%s334 + $0x58] sm:$0xff]
        %v349 = vld [vmem:[%s334 + $0x60] sm:$0xff]
        %v350 = vld [vmem:[%s334 + $0x68] sm:$0xff]
        %v351 = vld [vmem:[%s334 + $0x70] sm:$0xff]
        %v352 = vld [vmem:[%s334 + $0x78] sm:$0xff]
        %v353 = vld [vmem:[%s334 + $0x80] sm:$0xff]
        %v354 = vld [vmem:[%s334 + $0x88] sm:$0xff]
        %v355 = vld [vmem:[%s334 + $0x90] sm:$0xff]
        %v356 = vld [vmem:[%s334 + $0x98] sm:$0xff]
        %v357 = vld [vmem:[%s334 + $0xa0] sm:$0xff]
        %v358 = vld [vmem:[%s334 + $0xa8] sm:$0xff]
        %v359 = vld [vmem:[%s334 + $0xb0] sm:$0xff]
        %v360 = vld [vmem:[%s334 + $0xb8] sm:$0xff]
        %v361 = vld [vmem:[%s334 + $0xc0] sm:$0xff]
        %v362 = vld [vmem:[%s334 + $0xc8] sm:$0xff]
        %v363 = vld [vmem:[%s334 + $0xd0] sm:$0xff]
        %v364 = vld [vmem:[%s334 + $0xd8] sm:$0xff]
        %v365 = vld [vmem:[%s334 + $0xe0] sm:$0xff]
        %v366 = vld [vmem:[%s334 + $0xe8] sm:$0xff]
        %v367 = vld [vmem:[%s334 + $0xf0] sm:$0xff]
        %v368 = vld [vmem:[%s334 + $0xf8] sm:$0xff]
        %v369 = vld [vmem:[%s1] sm:$0xff]
        %v370 = vld [vmem:[%s1 + $0x8] sm:$0xff]
        %v371 = vld [vmem:[%s1 + $0x10] sm:$0xff]
        %v372 = vld [vmem:[%s1 + $0x18] sm:$0xff]
        %v373 = vld [vmem:[%s1 + $0x20] sm:$0xff]
        %v374 = vld [vmem:[%s1 + $0x28] sm:$0xff]
        %v375 = vld [vmem:[%s1 + $0x30] sm:$0xff]
        %v376 = vld [vmem:[%s1 + $0x38] sm:$0xff]
        %v377 = vld [vmem:[%s1 + $0x40] sm:$0xff]
        %v378 = vld [vmem:[%s1 + $0x48] sm:$0xff]
        %v379 = vld [vmem:[%s1 + $0x50] sm:$0xff]
        %v380 = vld [vmem:[%s1 + $0x58] sm:$0xff]
        %v381 = vld [vmem:[%s1 + $0x60] sm:$0xff]
        %v382 = vld [vmem:[%s1 + $0x68] sm:$0xff]
        %v383 = vld [vmem:[%s1 + $0x70] sm:$0xff]
        %v384 = vld [vmem:[%s1 + $0x78] sm:$0xff]
        %v385 = vld [vmem:[%s1 + $0x80] sm:$0xff]
        %v386 = vld [vmem:[%s1 + $0x88] sm:$0xff]
        %v387 = vld [vmem:[%s1 + $0x90] sm:$0xff]
        %v388 = vld [vmem:[%s1 + $0x98] sm:$0xff]
        %v389 = vld [vmem:[%s1 + $0xa0] sm:$0xff]
        %v390 = vld [vmem:[%s1 + $0xa8] sm:$0xff]
        %v391 = vld [vmem:[%s1 + $0xb0] sm:$0xff]
        %v392 = vld [vmem:[%s1 + $0xb8] sm:$0xff]
        %v393 = vld [vmem:[%s1 + $0xc0] sm:$0xff]
        %v394 = vld [vmem:[%s1 + $0xc8] sm:$0xff]
        %v395 = vld [vmem:[%s1 + $0xd0] sm:$0xff]
        %v396 = vld [vmem:[%s1 + $0xd8] sm:$0xff]
        %v397 = vld [vmem:[%s1 + $0xe0] sm:$0xff]
        %v398 = vld [vmem:[%s1 + $0xe8] sm:$0xff]
        %v399 = vld [vmem:[%s1 + $0xf0] sm:$0xff]
        %v400 = vld [vmem:[%s1 + $0xf8] sm:$0xff]
        %v401 = vld [vmem:[%s1 + $0x100] sm:$0xff]
        %v402 = vld [vmem:[%s1 + $0x108] sm:$0xff]
        %v403 = vld [vmem:[%s1 + $0x110] sm:$0xff]
        %v404 = vld [vmem:[%s1 + $0x118] sm:$0xff]
        %v405 = vld [vmem:[%s1 + $0x120] sm:$0xff]
        %v406 = vld [vmem:[%s1 + $0x128] sm:$0xff]
        %v407 = vld [vmem:[%s1 + $0x130] sm:$0xff]
        %v408 = vld [vmem:[%s1 + $0x138] sm:$0xff]
        %v409 = vld [vmem:[%s1 + $0x140] sm:$0xff]
        %v410 = vld [vmem:[%s1 + $0x148] sm:$0xff]
        %v411 = vld [vmem:[%s1 + $0x150] sm:$0xff]
        %v412 = vld [vmem:[%s1 + $0x158] sm:$0xff]
        %v413 = vld [vmem:[%s1 + $0x160] sm:$0xff]
        %v414 = vld [vmem:[%s1 + $0x168] sm:$0xff]
        %v415 = vld [vmem:[%s1 + $0x170] sm:$0xff]
        %v416 = vld [vmem:[%s1 + $0x178] sm:$0xff]
        %v417 = vld [vmem:[%s1 + $0x180] sm:$0xff]
        %v418 = vld [vmem:[%s1 + $0x188] sm:$0xff]
        %v419 = vld [vmem:[%s1 + $0x190] sm:$0xff]
        %v420 = vld [vmem:[%s1 + $0x198] sm:$0xff]
        %v421 = vld [vmem:[%s1 + $0x1a0] sm:$0xff]
        %v422 = vld [vmem:[%s1 + $0x1a8] sm:$0xff]
        %v423 = vld [vmem:[%s1 + $0x1b0] sm:$0xff]
        %v424 = vld [vmem:[%s1 + $0x1b8] sm:$0xff]
        %v425 = vld [vmem:[%s1 + $0x1c0] sm:$0xff]
        %v426 = vld [vmem:[%s1 + $0x1c8] sm:$0xff]
        %v427 = vld [vmem:[%s1 + $0x1d0] sm:$0xff]
        %v428 = vld [vmem:[%s1 + $0x1d8] sm:$0xff]
        %v429 = vld [vmem:[%s1 + $0x1e0] sm:$0xff]
        %v430 = vld [vmem:[%s1 + $0x1e8] sm:$0xff]
        %v431 = vld [vmem:[%s1 + $0x1f0] sm:$0xff]
        %v432 = vld [vmem:[%s1 + $0x1f8] sm:$0xff]
        %v433 = vld [vmem:[%s1 + $0x200] sm:$0xff]
        %v434 = vld [vmem:[%s1 + $0x208] sm:$0xff]
        %v435 = vld [vmem:[%s1 + $0x210] sm:$0xff]
        %v436 = vld [vmem:[%s1 + $0x218] sm:$0xff]
        %v437 = vld [vmem:[%s1 + $0x220] sm:$0xff]
        %v438 = vld [vmem:[%s1 + $0x228] sm:$0xff]
        %v439 = vld [vmem:[%s1 + $0x230] sm:$0xff]
        %v440 = vld [vmem:[%s1 + $0x238] sm:$0xff]
        %v441 = vld [vmem:[%s1 + $0x240] sm:$0xff]
        %v442 = vld [vmem:[%s1 + $0x248] sm:$0xff]
        %v443 = vld [vmem:[%s1 + $0x250] sm:$0xff]
        %v444 = vld [vmem:[%s1 + $0x258] sm:$0xff]
        %v445 = vld [vmem:[%s1 + $0x260] sm:$0xff]
        %v446 = vld [vmem:[%s1 + $0x268] sm:$0xff]
        %v447 = vld [vmem:[%s1 + $0x270] sm:$0xff]
        %v448 = vld [vmem:[%s1 + $0x278] sm:$0xff]
        %v449 = vld [vmem:[%s1 + $0x280] sm:$0xff]
        %v450 = vld [vmem:[%s1 + $0x288] sm:$0xff]
        %v451 = vld [vmem:[%s1 + $0x290] sm:$0xff]
        %v452 = vld [vmem:[%s1 + $0x298] sm:$0xff]
        %v453 = vld [vmem:[%s1 + $0x2a0] sm:$0xff]
        %v454 = vld [vmem:[%s1 + $0x2a8] sm:$0xff]
        %v455 = vld [vmem:[%s1 + $0x2b0] sm:$0xff]
        %v456 = vld [vmem:[%s1 + $0x2b8] sm:$0xff]
        %v457 = vld [vmem:[%s1 + $0x2c0] sm:$0xff]
        %v458 = vld [vmem:[%s1 + $0x2c8] sm:$0xff]
        %v459 = vld [vmem:[%s1 + $0x2d0] sm:$0xff]
        %v460 = vld [vmem:[%s1 + $0x2d8] sm:$0xff]
        %v461 = vld [vmem:[%s1 + $0x2e0] sm:$0xff]
        %v462 = vld [vmem:[%s1 + $0x2e8] sm:$0xff]
        %v463 = vld [vmem:[%s1 + $0x2f0] sm:$0xff]
        %v464 = vld [vmem:[%s1 + $0x2f8] sm:$0xff]
        %v465 = vld [vmem:[%s1 + $0x300] sm:$0xff]
        %v466 = vld [vmem:[%s1 + $0x308] sm:$0xff]
        %v467 = vld [vmem:[%s1 + $0x310] sm:$0xff]
        %v468 = vld [vmem:[%s1 + $0x318] sm:$0xff]
        %v469 = vld [vmem:[%s1 + $0x320] sm:$0xff]
        %v470 = vld [vmem:[%s1 + $0x328] sm:$0xff]
        %v471 = vld [vmem:[%s1 + $0x330] sm:$0xff]
        %v472 = vld [vmem:[%s1 + $0x338] sm:$0xff]
        %v473 = vld [vmem:[%s1 + $0x340] sm:$0xff]
        %v474 = vld [vmem:[%s1 + $0x348] sm:$0xff]
        %v475 = vld [vmem:[%s1 + $0x350] sm:$0xff]
        %v476 = vld [vmem:[%s1 + $0x358] sm:$0xff]
        %v477 = vld [vmem:[%s1 + $0x360] sm:$0xff]
        %v478 = vld [vmem:[%s1 + $0x368] sm:$0xff]
        %v479 = vld [vmem:[%s1 + $0x370] sm:$0xff]
        %v480 = vld [vmem:[%s1 + $0x378] sm:$0xff]
        %v481 = vld [vmem:[%s1 + $0x380] sm:$0xff]
        %v482 = vld [vmem:[%s1 + $0x388] sm:$0xff]
        %v483 = vld [vmem:[%s1 + $0x390] sm:$0xff]
        %v484 = vld [vmem:[%s1 + $0x398] sm:$0xff]
        %v485 = vld [vmem:[%s1 + $0x3a0] sm:$0xff]
        %v486 = vld [vmem:[%s1 + $0x3a8] sm:$0xff]
        %v487 = vld [vmem:[%s1 + $0x3b0] sm:$0xff]
        %v488 = vld [vmem:[%s1 + $0x3b8] sm:$0xff]
        %v489 = vld [vmem:[%s1 + $0x3c0] sm:$0xff]
        %v490 = vld [vmem:[%s1 + $0x3c8] sm:$0xff]
        %v491 = vld [vmem:[%s1 + $0x3d0] sm:$0xff]
        %v492 = vld [vmem:[%s1 + $0x3d8] sm:$0xff]
        %v493 = vld [vmem:[%s1 + $0x3e0] sm:$0xff]
        %v494 = vld [vmem:[%s1 + $0x3e8] sm:$0xff]
        %v495 = vld [vmem:[%s1 + $0x3f0] sm:$0xff]
        %v496 = vld [vmem:[%s1 + $0x3f8] sm:$0xff]
        %v497 = vld [vmem:[%s1 + $0x400] sm:$0xff]
        %v498 = vld [vmem:[%s1 + $0x408] sm:$0xff]
        %v499 = vld [vmem:[%s1 + $0x410] sm:$0xff]
        %v500 = vld [vmem:[%s1 + $0x418] sm:$0xff]
        %v501 = vld [vmem:[%s1 + $0x420] sm:$0xff]
        %v502 = vld [vmem:[%s1 + $0x428] sm:$0xff]
        %v503 = vld [vmem:[%s1 + $0x430] sm:$0xff]
        %v504 = vld [vmem:[%s1 + $0x438] sm:$0xff]
        %v505 = vld [vmem:[%s1 + $0x440] sm:$0xff]
        %v506 = vld [vmem:[%s1 + $0x448] sm:$0xff]
        %v507 = vld [vmem:[%s1 + $0x450] sm:$0xff]
        %v508 = vld [vmem:[%s1 + $0x458] sm:$0xff]
        %v509 = vld [vmem:[%s1 + $0x460] sm:$0xff]
        %v510 = vld [vmem:[%s1 + $0x468] sm:$0xff]
        %v511 = vld [vmem:[%s1 + $0x470] sm:$0xff]
        %v512 = vld [vmem:[%s1 + $0x478] sm:$0xff]
        %v513 = vld [vmem:[%s1 + $0x480] sm:$0xff]
        %v514 = vld [vmem:[%s1 + $0x488] sm:$0xff]
        %v515 = vld [vmem:[%s1 + $0x490] sm:$0xff]
        %v516 = vld [vmem:[%s1 + $0x498] sm:$0xff]
        %v517 = vld [vmem:[%s1 + $0x4a0] sm:$0xff]
        %v518 = vld [vmem:[%s1 + $0x4a8] sm:$0xff]
        %v519 = vld [vmem:[%s1 + $0x4b0] sm:$0xff]
        %v520 = vld [vmem:[%s1 + $0x4b8] sm:$0xff]
        %v521 = vld [vmem:[%s1 + $0x4c0] sm:$0xff]
        %v522 = vld [vmem:[%s1 + $0x4c8] sm:$0xff]
        %v523 = vld [vmem:[%s1 + $0x4d0] sm:$0xff]
        %v524 = vld [vmem:[%s1 + $0x4d8] sm:$0xff]
        %v525 = vld [vmem:[%s1 + $0x4e0] sm:$0xff]
        %v526 = vld [vmem:[%s1 + $0x4e8] sm:$0xff]
        %v527 = vld [vmem:[%s1 + $0x4f0] sm:$0xff]
        %v528 = vld [vmem:[%s1 + $0x4f8] sm:$0xff]
        %v529 = vld [vmem:[%s1 + $0x500] sm:$0xff]
        %v530 = vld [vmem:[%s1 + $0x508] sm:$0xff]
        %v531 = vld [vmem:[%s1 + $0x510] sm:$0xff]
        %v532 = vld [vmem:[%s1 + $0x518] sm:$0xff]
        %v533 = vld [vmem:[%s1 + $0x520] sm:$0xff]
        %v534 = vld [vmem:[%s1 + $0x528] sm:$0xff]
        %v535 = vld [vmem:[%s1 + $0x530] sm:$0xff]
        %v536 = vld [vmem:[%s1 + $0x538] sm:$0xff]
        %v537 = vld [vmem:[%s1 + $0x540] sm:$0xff]
        %v538 = vld [vmem:[%s1 + $0x548] sm:$0xff]
        %v539 = vld [vmem:[%s1 + $0x550] sm:$0xff]
        %v540 = vld [vmem:[%s1 + $0x558] sm:$0xff]
        %v541 = vld [vmem:[%s1 + $0x560] sm:$0xff]
        %v542 = vld [vmem:[%s1 + $0x568] sm:$0xff]
        %v543 = vld [vmem:[%s1 + $0x570] sm:$0xff]
        %v544 = vld [vmem:[%s1 + $0x578] sm:$0xff]
        %v545 = vld [vmem:[%s1 + $0x580] sm:$0xff]
        %v546 = vld [vmem:[%s1 + $0x588] sm:$0xff]
        %v547 = vld [vmem:[%s1 + $0x590] sm:$0xff]
        %v548 = vld [vmem:[%s1 + $0x598] sm:$0xff]
        %v549 = vld [vmem:[%s1 + $0x5a0] sm:$0xff]
        %v550 = vld [vmem:[%s1 + $0x5a8] sm:$0xff]
        %v551 = vld [vmem:[%s1 + $0x5b0] sm:$0xff]
        %v552 = vld [vmem:[%s1 + $0x5b8] sm:$0xff]
        %v553 = vld [vmem:[%s1 + $0x5c0] sm:$0xff]
        %v554 = vld [vmem:[%s1 + $0x5c8] sm:$0xff]
        %v555 = vld [vmem:[%s1 + $0x5d0] sm:$0xff]
        %v556 = vld [vmem:[%s1 + $0x5d8] sm:$0xff]
        %v557 = vld [vmem:[%s1 + $0x5e0] sm:$0xff]
        %v558 = vld [vmem:[%s1 + $0x5e8] sm:$0xff]
        %v559 = vld [vmem:[%s1 + $0x5f0] sm:$0xff]
        %v560 = vld [vmem:[%s1 + $0x5f8] sm:$0xff]
        %v561 = vld [vmem:[%s1 + $0x600] sm:$0xff]
        %v562 = vld [vmem:[%s1 + $0x608] sm:$0xff]
        %v563 = vld [vmem:[%s1 + $0x610] sm:$0xff]
        %v564 = vld [vmem:[%s1 + $0x618] sm:$0xff]
        %v565 = vld [vmem:[%s1 + $0x620] sm:$0xff]
        %v566 = vld [vmem:[%s1 + $0x628] sm:$0xff]
        %v567 = vld [vmem:[%s1 + $0x630] sm:$0xff]
        %v568 = vld [vmem:[%s1 + $0x638] sm:$0xff]
        %v569 = vld [vmem:[%s1 + $0x640] sm:$0xff]
        %v570 = vld [vmem:[%s1 + $0x648] sm:$0xff]
        %v571 = vld [vmem:[%s1 + $0x650] sm:$0xff]
        %v572 = vld [vmem:[%s1 + $0x658] sm:$0xff]
        %v573 = vld [vmem:[%s1 + $0x660] sm:$0xff]
        %v574 = vld [vmem:[%s1 + $0x668] sm:$0xff]
        %v575 = vld [vmem:[%s1 + $0x670] sm:$0xff]
        %v576 = vld [vmem:[%s1 + $0x678] sm:$0xff]
        %v577 = vld [vmem:[%s1 + $0x680] sm:$0xff]
        %v578 = vld [vmem:[%s1 + $0x688] sm:$0xff]
        %v579 = vld [vmem:[%s1 + $0x690] sm:$0xff]
        %v580 = vld [vmem:[%s1 + $0x698] sm:$0xff]
        %v581 = vld [vmem:[%s1 + $0x6a0] sm:$0xff]
        %v582 = vld [vmem:[%s1 + $0x6a8] sm:$0xff]
        %v583 = vld [vmem:[%s1 + $0x6b0] sm:$0xff]
        %v584 = vld [vmem:[%s1 + $0x6b8] sm:$0xff]
        %v585 = vld [vmem:[%s1 + $0x6c0] sm:$0xff]
        %v586 = vld [vmem:[%s1 + $0x6c8] sm:$0xff]
        %v587 = vld [vmem:[%s1 + $0x6d0] sm:$0xff]
        %v588 = vld [vmem:[%s1 + $0x6d8] sm:$0xff]
        %v589 = vld [vmem:[%s1 + $0x6e0] sm:$0xff]
        %v590 = vld [vmem:[%s1 + $0x6e8] sm:$0xff]
        %v591 = vld [vmem:[%s1 + $0x6f0] sm:$0xff]
        %v592 = vld [vmem:[%s1 + $0x6f8] sm:$0xff]
        %v593 = vld [vmem:[%s1 + $0x700] sm:$0xff]
        %v594 = vld [vmem:[%s1 + $0x708] sm:$0xff]
        %v595 = vld [vmem:[%s1 + $0x710] sm:$0xff]
        %v596 = vld [vmem:[%s1 + $0x718] sm:$0xff]
        %v597 = vld [vmem:[%s1 + $0x720] sm:$0xff]
        %v598 = vld [vmem:[%s1 + $0x728] sm:$0xff]
        %v599 = vld [vmem:[%s1 + $0x730] sm:$0xff]
        %v600 = vld [vmem:[%s1 + $0x738] sm:$0xff]
        %v601 = vld [vmem:[%s1 + $0x740] sm:$0xff]
        %v602 = vld [vmem:[%s1 + $0x748] sm:$0xff]
        %v603 = vld [vmem:[%s1 + $0x750] sm:$0xff]
        %v604 = vld [vmem:[%s1 + $0x758] sm:$0xff]
        %v605 = vld [vmem:[%s1 + $0x760] sm:$0xff]
        %v606 = vld [vmem:[%s1 + $0x768] sm:$0xff]
        %v607 = vld [vmem:[%s1 + $0x770] sm:$0xff]
        %v608 = vld [vmem:[%s1 + $0x778] sm:$0xff]
        %v609 = vld [vmem:[%s1 + $0x780] sm:$0xff]
        %v610 = vld [vmem:[%s1 + $0x788] sm:$0xff]
        %v611 = vld [vmem:[%s1 + $0x790] sm:$0xff]
        %v612 = vld [vmem:[%s1 + $0x798] sm:$0xff]
        %v613 = vld [vmem:[%s1 + $0x7a0] sm:$0xff]
        %v614 = vld [vmem:[%s1 + $0x7a8] sm:$0xff]
        %v615 = vld [vmem:[%s1 + $0x7b0] sm:$0xff]
        %v616 = vld [vmem:[%s1 + $0x7b8] sm:$0xff]
        %v617 = vld [vmem:[%s1 + $0x7c0] sm:$0xff]
        %v618 = vld [vmem:[%s1 + $0x7c8] sm:$0xff]
        %v619 = vld [vmem:[%s1 + $0x7d0] sm:$0xff]
        %v620 = vld [vmem:[%s1 + $0x7d8] sm:$0xff]
        %v621 = vld [vmem:[%s1 + $0x7e0] sm:$0xff]
        %v622 = vld [vmem:[%s1 + $0x7e8] sm:$0xff]
        %v623 = vld [vmem:[%s1 + $0x7f0] sm:$0xff]
        %v624 = vld [vmem:[%s1 + $0x7f8] sm:$0xff]
        %625 = vmatprep.subr.mxu0 0.0
        %626 = vmatpush1.msra.mxu0 %v384
        %627 = vmatprep.subr.mxu0 0.0
        %628 = vmatpush1.msra.mxu0 %v383
        %629 = vmatprep.subr.mxu0 0.0
        %630 = vmatpush1.msra.mxu0 %v382
        %631 = vmatprep.subr.mxu0 0.0
        %632 = vmatpush1.msra.mxu0 %v381
        %633 = vmatprep.subr.mxu0 0.0
        %634 = vmatpush1.msra.mxu0 %v380
        %635 = vmatprep.subr.mxu0 0.0
        %636 = vmatpush1.msra.mxu0 %v379
        %637 = vmatprep.subr.mxu0 0.0
        %638 = vmatpush1.msra.mxu0 %v378
        %639 = vmatprep.subr.mxu0 0.0
        %640 = vmatpush1.msra.mxu0 %v377
        %641 = vmatprep.subr.mxu0 0.0
        %642 = vmatpush1.msra.mxu0 %v376
        %643 = vmatprep.subr.mxu0 0.0
        %644 = vmatpush1.msra.mxu0 %v375
        %645 = vmatprep.subr.mxu0 0.0
        %646 = vmatpush1.msra.mxu0 %v374
        %647 = vmatprep.subr.mxu0 0.0
        %648 = vmatpush1.msra.mxu0 %v373
        %649 = vmatprep.subr.mxu0 0.0
        %650 = vmatpush1.msra.mxu0 %v372
        %651 = vmatprep.subr.mxu0 0.0
        %652 = vmatpush1.msra.mxu0 %v371
        %653 = vmatprep.subr.mxu0 0.0
        %654 = vmatpush1.msra.mxu0 %v370
        %655 = vmatprep.subr.mxu0 0.0
        %656 = vmatpush1.msra.mxu0 %v369
        %657 = vmatprep.subr.mxu0 0.0
        %658 = vmatpush2.msra.mxu0 %v400
        %659 = vmatprep.subr.mxu0 0.0
        %660 = vmatpush2.msra.mxu0 %v399
        %661 = vmatprep.subr.mxu0 0.0
        %662 = vmatpush2.msra.mxu0 %v398
        %663 = vmatprep.subr.mxu0 0.0
        %664 = vmatpush2.msra.mxu0 %v397
        %665 = vmatprep.subr.mxu0 0.0
        %666 = vmatpush2.msra.mxu0 %v396
        %667 = vmatprep.subr.mxu0 0.0
        %668 = vmatpush2.msra.mxu0 %v395
        %669 = vmatprep.subr.mxu0 0.0
        %670 = vmatpush2.msra.mxu0 %v394
        %671 = vmatprep.subr.mxu0 0.0
        %672 = vmatpush2.msra.mxu0 %v393
        %673 = vmatprep.subr.mxu0 0.0
        %674 = vmatpush2.msra.mxu0 %v392
        %675 = vmatprep.subr.mxu0 0.0
        %676 = vmatpush2.msra.mxu0 %v391
        %677 = vmatprep.subr.mxu0 0.0
        %678 = vmatpush2.msra.mxu0 %v390
        %679 = vmatprep.subr.mxu0 0.0
        %680 = vmatpush2.msra.mxu0 %v389
        %681 = vmatprep.subr.mxu0 0.0
        %682 = vmatpush2.msra.mxu0 %v388
        %683 = vmatprep.subr.mxu0 0.0
        %684 = vmatpush2.msra.mxu0 %v387
        %685 = vmatprep.subr.mxu0 0.0
        %686 = vmatpush2.msra.mxu0 %v386
        %687 = vmatprep.subr.mxu0 0.0
        %688 = vmatpush2.msra.mxu0 %v385
        %689 = vmatprep.mubr.f32.mxu0 %v338
        %690 = vmatmul.mubr.f32.gmra.mxu0 %v337
        %v691 = vpop.f32.mrf.mxu0
        %v692 = vadd.f32 0.0, %v691
        %v693 = vpop.f32.mrf.mxu0
        %694 = vmatprep.mubr.f32.mxu0 %v354
        %695 = vmatmul.mubr.f32.gmra.mxu0 %v353
        %v696 = vpop.f32.mrf.mxu0
        %v697 = vadd.f32 0.0, %v696
        %v698 = vpop.f32.mrf.mxu0
        %699 = vdwg.mxu0
        %700 = vmatprep.subr.mxu0 0.0
        %701 = vmatpush1.msra.mxu0 %v416
        %702 = vmatprep.subr.mxu0 0.0
        %703 = vmatpush1.msra.mxu0 %v415
        %704 = vmatprep.subr.mxu0 0.0
        %705 = vmatpush1.msra.mxu0 %v414
        %706 = vmatprep.subr.mxu0 0.0
        %707 = vmatpush1.msra.mxu0 %v413
        %708 = vmatprep.subr.mxu0 0.0
        %709 = vmatpush1.msra.mxu0 %v412
        %710 = vmatprep.subr.mxu0 0.0
        %711 = vmatpush1.msra.mxu0 %v411
        %712 = vmatprep.subr.mxu0 0.0
        %713 = vmatpush1.msra.mxu0 %v410
        %714 = vmatprep.subr.mxu0 0.0
        %715 = vmatpush1.msra.mxu0 %v409
        %716 = vmatprep.subr.mxu0 0.0
        %717 = vmatpush1.msra.mxu0 %v408
        %718 = vmatprep.subr.mxu0 0.0
        %719 = vmatpush1.msra.mxu0 %v407
        %720 = vmatprep.subr.mxu0 0.0
        %721 = vmatpush1.msra.mxu0 %v406
        %722 = vmatprep.subr.mxu0 0.0
        %723 = vmatpush1.msra.mxu0 %v405
        %724 = vmatprep.subr.mxu0 0.0
        %725 = vmatpush1.msra.mxu0 %v404
        %726 = vmatprep.subr.mxu0 0.0
        %727 = vmatpush1.msra.mxu0 %v403
        %728 = vmatprep.subr.mxu0 0.0
        %729 = vmatpush1.msra.mxu0 %v402
        %730 = vmatprep.subr.mxu0 0.0
        %731 = vmatpush1.msra.mxu0 %v401
        %732 = vmatprep.subr.mxu0 0.0
        %733 = vmatpush2.msra.mxu0 %v432
        %734 = vmatprep.subr.mxu0 0.0
        %735 = vmatpush2.msra.mxu0 %v431
        %736 = vmatprep.subr.mxu0 0.0
        %737 = vmatpush2.msra.mxu0 %v430
        %738 = vmatprep.subr.mxu0 0.0
        %739 = vmatpush2.msra.mxu0 %v429
        %740 = vmatprep.subr.mxu0 0.0
        %741 = vmatpush2.msra.mxu0 %v428
        %742 = vmatprep.subr.mxu0 0.0
        %743 = vmatpush2.msra.mxu0 %v427
        %744 = vmatprep.subr.mxu0 0.0
        %745 = vmatpush2.msra.mxu0 %v426
        %746 = vmatprep.subr.mxu0 0.0
        %747 = vmatpush2.msra.mxu0 %v425
        %748 = vmatprep.subr.mxu0 0.0
        %749 = vmatpush2.msra.mxu0 %v424
        %750 = vmatprep.subr.mxu0 0.0
        %751 = vmatpush2.msra.mxu0 %v423
        %752 = vmatprep.subr.mxu0 0.0
        %753 = vmatpush2.msra.mxu0 %v422
        %754 = vmatprep.subr.mxu0 0.0
        %755 = vmatpush2.msra.mxu0 %v421
        %756 = vmatprep.subr.mxu0 0.0
        %757 = vmatpush2.msra.mxu0 %v420
        %758 = vmatprep.subr.mxu0 0.0
        %759 = vmatpush2.msra.mxu0 %v419
        %760 = vmatprep.subr.mxu0 0.0
        %761 = vmatpush2.msra.mxu0 %v418
        %762 = vmatprep.subr.mxu0 0.0
        %763 = vmatpush2.msra.mxu0 %v417
        %764 = vmatprep.mubr.f32.mxu0 %v340
        %765 = vmatmul.mubr.f32.gmra.mxu0 %v339
        %v766 = vpop.f32.mrf.mxu0
        %v767 = vadd.f32 %v692, %v766
        %v768 = vpop.f32.mrf.mxu0
        %769 = vmatprep.mubr.f32.mxu0 %v356
        %770 = vmatmul.mubr.f32.gmra.mxu0 %v355
        %v771 = vpop.f32.mrf.mxu0
        %v772 = vadd.f32 %v697, %v771
        %v773 = vpop.f32.mrf.mxu0
        %774 = vdwg.mxu0
        %775 = vmatprep.subr.mxu0 0.0
        %776 = vmatpush1.msra.mxu0 %v448
        %777 = vmatprep.subr.mxu0 0.0
        %778 = vmatpush1.msra.mxu0 %v447
        %779 = vmatprep.subr.mxu0 0.0
        %780 = vmatpush1.msra.mxu0 %v446
        %781 = vmatprep.subr.mxu0 0.0
        %782 = vmatpush1.msra.mxu0 %v445
        %783 = vmatprep.subr.mxu0 0.0
        %784 = vmatpush1.msra.mxu0 %v444
        %785 = vmatprep.subr.mxu0 0.0
        %786 = vmatpush1.msra.mxu0 %v443
        %787 = vmatprep.subr.mxu0 0.0
        %788 = vmatpush1.msra.mxu0 %v442
        %789 = vmatprep.subr.mxu0 0.0
        %790 = vmatpush1.msra.mxu0 %v441
        %791 = vmatprep.subr.mxu0 0.0
        %792 = vmatpush1.msra.mxu0 %v440
        %793 = vmatprep.subr.mxu0 0.0
        %794 = vmatpush1.msra.mxu0 %v439
        %795 = vmatprep.subr.mxu0 0.0
        %796 = vmatpush1.msra.mxu0 %v438
        %797 = vmatprep.subr.mxu0 0.0
        %798 = vmatpush1.msra.mxu0 %v437
        %799 = vmatprep.subr.mxu0 0.0
        %800 = vmatpush1.msra.mxu0 %v436
        %801 = vmatprep.subr.mxu0 0.0
        %802 = vmatpush1.msra.mxu0 %v435
        %803 = vmatprep.subr.mxu0 0.0
        %804 = vmatpush1.msra.mxu0 %v434
        %805 = vmatprep.subr.mxu0 0.0
        %806 = vmatpush1.msra.mxu0 %v433
        %807 = vmatprep.subr.mxu0 0.0
        %808 = vmatpush2.msra.mxu0 %v464
        %809 = vmatprep.subr.mxu0 0.0
        %810 = vmatpush2.msra.mxu0 %v463
        %811 = vmatprep.subr.mxu0 0.0
        %812 = vmatpush2.msra.mxu0 %v462
        %813 = vmatprep.subr.mxu0 0.0
        %814 = vmatpush2.msra.mxu0 %v461
        %815 = vmatprep.subr.mxu0 0.0
        %816 = vmatpush2.msra.mxu0 %v460
        %817 = vmatprep.subr.mxu0 0.0
        %818 = vmatpush2.msra.mxu0 %v459
        %819 = vmatprep.subr.mxu0 0.0
        %820 = vmatpush2.msra.mxu0 %v458
        %821 = vmatprep.subr.mxu0 0.0
        %822 = vmatpush2.msra.mxu0 %v457
        %823 = vmatprep.subr.mxu0 0.0
        %824 = vmatpush2.msra.mxu0 %v456
        %825 = vmatprep.subr.mxu0 0.0
        %826 = vmatpush2.msra.mxu0 %v455
        %827 = vmatprep.subr.mxu0 0.0
        %828 = vmatpush2.msra.mxu0 %v454
        %829 = vmatprep.subr.mxu0 0.0
        %830 = vmatpush2.msra.mxu0 %v453
        %831 = vmatprep.subr.mxu0 0.0
        %832 = vmatpush2.msra.mxu0 %v452
        %833 = vmatprep.subr.mxu0 0.0
        %834 = vmatpush2.msra.mxu0 %v451
        %835 = vmatprep.subr.mxu0 0.0
        %836 = vmatpush2.msra.mxu0 %v450
        %837 = vmatprep.subr.mxu0 0.0
        %838 = vmatpush2.msra.mxu0 %v449
        %839 = vmatprep.mubr.f32.mxu0 %v342
        %840 = vmatmul.mubr.f32.gmra.mxu0 %v341
        %v841 = vpop.f32.mrf.mxu0
        %v842 = vadd.f32 %v767, %v841
        %v843 = vpop.f32.mrf.mxu0
        %844 = vmatprep.mubr.f32.mxu0 %v358
        %845 = vmatmul.mubr.f32.gmra.mxu0 %v357
        %v846 = vpop.f32.mrf.mxu0
        %v847 = vadd.f32 %v772, %v846
        %v848 = vpop.f32.mrf.mxu0
        %849 = vdwg.mxu0
        %850 = vmatprep.subr.mxu0 0.0
        %851 = vmatpush1.msra.mxu0 %v480
        %852 = vmatprep.subr.mxu0 0.0
        %853 = vmatpush1.msra.mxu0 %v479
        %854 = vmatprep.subr.mxu0 0.0
        %855 = vmatpush1.msra.mxu0 %v478
        %856 = vmatprep.subr.mxu0 0.0
        %857 = vmatpush1.msra.mxu0 %v477
        %858 = vmatprep.subr.mxu0 0.0
        %859 = vmatpush1.msra.mxu0 %v476
        %860 = vmatprep.subr.mxu0 0.0
        %861 = vmatpush1.msra.mxu0 %v475
        %862 = vmatprep.subr.mxu0 0.0
        %863 = vmatpush1.msra.mxu0 %v474
        %864 = vmatprep.subr.mxu0 0.0
        %865 = vmatpush1.msra.mxu0 %v473
        %866 = vmatprep.subr.mxu0 0.0
        %867 = vmatpush1.msra.mxu0 %v472
        %868 = vmatprep.subr.mxu0 0.0
        %869 = vmatpush1.msra.mxu0 %v471
        %870 = vmatprep.subr.mxu0 0.0
        %871 = vmatpush1.msra.mxu0 %v470
        %872 = vmatprep.subr.mxu0 0.0
        %873 = vmatpush1.msra.mxu0 %v469
        %874 = vmatprep.subr.mxu0 0.0
        %875 = vmatpush1.msra.mxu0 %v468
        %876 = vmatprep.subr.mxu0 0.0
        %877 = vmatpush1.msra.mxu0 %v467
        %878 = vmatprep.subr.mxu0 0.0
        %879 = vmatpush1.msra.mxu0 %v466
        %880 = vmatprep.subr.mxu0 0.0
        %881 = vmatpush1.msra.mxu0 %v465
        %882 = vmatprep.subr.mxu0 0.0
        %883 = vmatpush2.msra.mxu0 %v496
        %884 = vmatprep.subr.mxu0 0.0
        %885 = vmatpush2.msra.mxu0 %v495
        %886 = vmatprep.subr.mxu0 0.0
        %887 = vmatpush2.msra.mxu0 %v494
        %888 = vmatprep.subr.mxu0 0.0
        %889 = vmatpush2.msra.mxu0 %v493
        %890 = vmatprep.subr.mxu0 0.0
        %891 = vmatpush2.msra.mxu0 %v492
        %892 = vmatprep.subr.mxu0 0.0
        %893 = vmatpush2.msra.mxu0 %v491
        %894 = vmatprep.subr.mxu0 0.0
        %895 = vmatpush2.msra.mxu0 %v490
        %896 = vmatprep.subr.mxu0 0.0
        %897 = vmatpush2.msra.mxu0 %v489
        %898 = vmatprep.subr.mxu0 0.0
        %899 = vmatpush2.msra.mxu0 %v488
        %900 = vmatprep.subr.mxu0 0.0
        %901 = vmatpush2.msra.mxu0 %v487
        %902 = vmatprep.subr.mxu0 0.0
        %903 = vmatpush2.msra.mxu0 %v486
        %904 = vmatprep.subr.mxu0 0.0
        %905 = vmatpush2.msra.mxu0 %v485
        %906 = vmatprep.subr.mxu0 0.0
        %907 = vmatpush2.msra.mxu0 %v484
        %908 = vmatprep.subr.mxu0 0.0
        %909 = vmatpush2.msra.mxu0 %v483
        %910 = vmatprep.subr.mxu0 0.0
        %911 = vmatpush2.msra.mxu0 %v482
        %912 = vmatprep.subr.mxu0 0.0
        %913 = vmatpush2.msra.mxu0 %v481
        %914 = vmatprep.mubr.f32.mxu0 %v344
        %915 = vmatmul.mubr.f32.gmra.mxu0 %v343
        %v916 = vpop.f32.mrf.mxu0
        %v917 = vadd.f32 %v842, %v916
        %v918 = vpop.f32.mrf.mxu0
        %919 = vmatprep.mubr.f32.mxu0 %v360
        %920 = vmatmul.mubr.f32.gmra.mxu0 %v359
        %v921 = vpop.f32.mrf.mxu0
        %v922 = vadd.f32 %v847, %v921
        %v923 = vpop.f32.mrf.mxu0
        %924 = vdwg.mxu0
        %925 = vmatprep.subr.mxu0 0.0
        %926 = vmatpush1.msra.mxu0 %v512
        %927 = vmatprep.subr.mxu0 0.0
        %928 = vmatpush1.msra.mxu0 %v511
        %929 = vmatprep.subr.mxu0 0.0
        %930 = vmatpush1.msra.mxu0 %v510
        %931 = vmatprep.subr.mxu0 0.0
        %932 = vmatpush1.msra.mxu0 %v509
        %933 = vmatprep.subr.mxu0 0.0
        %934 = vmatpush1.msra.mxu0 %v508
        %935 = vmatprep.subr.mxu0 0.0
        %936 = vmatpush1.msra.mxu0 %v507
        %937 = vmatprep.subr.mxu0 0.0
        %938 = vmatpush1.msra.mxu0 %v506
        %939 = vmatprep.subr.mxu0 0.0
        %940 = vmatpush1.msra.mxu0 %v505
        %941 = vmatprep.subr.mxu0 0.0
        %942 = vmatpush1.msra.mxu0 %v504
        %943 = vmatprep.subr.mxu0 0.0
        %944 = vmatpush1.msra.mxu0 %v503
        %945 = vmatprep.subr.mxu0 0.0
        %946 = vmatpush1.msra.mxu0 %v502
        %947 = vmatprep.subr.mxu0 0.0
        %948 = vmatpush1.msra.mxu0 %v501
        %949 = vmatprep.subr.mxu0 0.0
        %950 = vmatpush1.msra.mxu0 %v500
        %951 = vmatprep.subr.mxu0 0.0
        %952 = vmatpush1.msra.mxu0 %v499
        %953 = vmatprep.subr.mxu0 0.0
        %954 = vmatpush1.msra.mxu0 %v498
        %955 = vmatprep.subr.mxu0 0.0
        %956 = vmatpush1.msra.mxu0 %v497
        %957 = vmatprep.subr.mxu0 0.0
        %958 = vmatpush2.msra.mxu0 %v528
        %959 = vmatprep.subr.mxu0 0.0
        %960 = vmatpush2.msra.mxu0 %v527
        %961 = vmatprep.subr.mxu0 0.0
        %962 = vmatpush2.msra.mxu0 %v526
        %963 = vmatprep.subr.mxu0 0.0
        %964 = vmatpush2.msra.mxu0 %v525
        %965 = vmatprep.subr.mxu0 0.0
        %966 = vmatpush2.msra.mxu0 %v524
        %967 = vmatprep.subr.mxu0 0.0
        %968 = vmatpush2.msra.mxu0 %v523
        %969 = vmatprep.subr.mxu0 0.0
        %970 = vmatpush2.msra.mxu0 %v522
        %971 = vmatprep.subr.mxu0 0.0
        %972 = vmatpush2.msra.mxu0 %v521
        %973 = vmatprep.subr.mxu0 0.0
        %974 = vmatpush2.msra.mxu0 %v520
        %975 = vmatprep.subr.mxu0 0.0
        %976 = vmatpush2.msra.mxu0 %v519
        %977 = vmatprep.subr.mxu0 0.0
        %978 = vmatpush2.msra.mxu0 %v518
        %979 = vmatprep.subr.mxu0 0.0
        %980 = vmatpush2.msra.mxu0 %v517
        %981 = vmatprep.subr.mxu0 0.0
        %982 = vmatpush2.msra.mxu0 %v516
        %983 = vmatprep.subr.mxu0 0.0
        %984 = vmatpush2.msra.mxu0 %v515
        %985 = vmatprep.subr.mxu0 0.0
        %986 = vmatpush2.msra.mxu0 %v514
        %987 = vmatprep.subr.mxu0 0.0
        %988 = vmatpush2.msra.mxu0 %v513
        %989 = vmatprep.mubr.f32.mxu0 %v346
        %990 = vmatmul.mubr.f32.gmra.mxu0 %v345
        %v991 = vpop.f32.mrf.mxu0
        %v992 = vadd.f32 %v917, %v991
        %v993 = vpop.f32.mrf.mxu0
        %994 = vmatprep.mubr.f32.mxu0 %v362
        %995 = vmatmul.mubr.f32.gmra.mxu0 %v361
        %v996 = vpop.f32.mrf.mxu0
        %v997 = vadd.f32 %v922, %v996
        %v998 = vpop.f32.mrf.mxu0
        %999 = vdwg.mxu0
        %1000 = vmatprep.subr.mxu0 0.0
        %1001 = vmatpush1.msra.mxu0 %v544
        %1002 = vmatprep.subr.mxu0 0.0
        %1003 = vmatpush1.msra.mxu0 %v543
        %1004 = vmatprep.subr.mxu0 0.0
        %1005 = vmatpush1.msra.mxu0 %v542
        %1006 = vmatprep.subr.mxu0 0.0
        %1007 = vmatpush1.msra.mxu0 %v541
        %1008 = vmatprep.subr.mxu0 0.0
        %1009 = vmatpush1.msra.mxu0 %v540
        %1010 = vmatprep.subr.mxu0 0.0
        %1011 = vmatpush1.msra.mxu0 %v539
        %1012 = vmatprep.subr.mxu0 0.0
        %1013 = vmatpush1.msra.mxu0 %v538
        %1014 = vmatprep.subr.mxu0 0.0
        %1015 = vmatpush1.msra.mxu0 %v537
        %1016 = vmatprep.subr.mxu0 0.0
        %1017 = vmatpush1.msra.mxu0 %v536
        %1018 = vmatprep.subr.mxu0 0.0
        %1019 = vmatpush1.msra.mxu0 %v535
        %1020 = vmatprep.subr.mxu0 0.0
        %1021 = vmatpush1.msra.mxu0 %v534
        %1022 = vmatprep.subr.mxu0 0.0
        %1023 = vmatpush1.msra.mxu0 %v533
        %1024 = vmatprep.subr.mxu0 0.0
        %1025 = vmatpush1.msra.mxu0 %v532
        %1026 = vmatprep.subr.mxu0 0.0
        %1027 = vmatpush1.msra.mxu0 %v531
        %1028 = vmatprep.subr.mxu0 0.0
        %1029 = vmatpush1.msra.mxu0 %v530
        %1030 = vmatprep.subr.mxu0 0.0
        %1031 = vmatpush1.msra.mxu0 %v529
        %1032 = vmatprep.subr.mxu0 0.0
        %1033 = vmatpush2.msra.mxu0 %v560
        %1034 = vmatprep.subr.mxu0 0.0
        %1035 = vmatpush2.msra.mxu0 %v559
        %1036 = vmatprep.subr.mxu0 0.0
        %1037 = vmatpush2.msra.mxu0 %v558
        %1038 = vmatprep.subr.mxu0 0.0
        %1039 = vmatpush2.msra.mxu0 %v557
        %1040 = vmatprep.subr.mxu0 0.0
        %1041 = vmatpush2.msra.mxu0 %v556
        %1042 = vmatprep.subr.mxu0 0.0
        %1043 = vmatpush2.msra.mxu0 %v555
        %1044 = vmatprep.subr.mxu0 0.0
        %1045 = vmatpush2.msra.mxu0 %v554
        %1046 = vmatprep.subr.mxu0 0.0
        %1047 = vmatpush2.msra.mxu0 %v553
        %1048 = vmatprep.subr.mxu0 0.0
        %1049 = vmatpush2.msra.mxu0 %v552
        %1050 = vmatprep.subr.mxu0 0.0
        %1051 = vmatpush2.msra.mxu0 %v551
        %1052 = vmatprep.subr.mxu0 0.0
        %1053 = vmatpush2.msra.mxu0 %v550
        %1054 = vmatprep.subr.mxu0 0.0
        %1055 = vmatpush2.msra.mxu0 %v549
        %1056 = vmatprep.subr.mxu0 0.0
        %1057 = vmatpush2.msra.mxu0 %v548
        %1058 = vmatprep.subr.mxu0 0.0
        %1059 = vmatpush2.msra.mxu0 %v547
        %1060 = vmatprep.subr.mxu0 0.0
        %1061 = vmatpush2.msra.mxu0 %v546
        %1062 = vmatprep.subr.mxu0 0.0
        %1063 = vmatpush2.msra.mxu0 %v545
        %1064 = vmatprep.mubr.f32.mxu0 %v348
        %1065 = vmatmul.mubr.f32.gmra.mxu0 %v347
        %v1066 = vpop.f32.mrf.mxu0
        %v1067 = vadd.f32 %v992, %v1066
        %v1068 = vpop.f32.mrf.mxu0
        %1069 = vmatprep.mubr.f32.mxu0 %v364
        %1070 = vmatmul.mubr.f32.gmra.mxu0 %v363
        %v1071 = vpop.f32.mrf.mxu0
        %v1072 = vadd.f32 %v997, %v1071
        %v1073 = vpop.f32.mrf.mxu0
        %1074 = vdwg.mxu0
        %1075 = vmatprep.subr.mxu0 0.0
        %1076 = vmatpush1.msra.mxu0 %v576
        %1077 = vmatprep.subr.mxu0 0.0
        %1078 = vmatpush1.msra.mxu0 %v575
        %1079 = vmatprep.subr.mxu0 0.0
        %1080 = vmatpush1.msra.mxu0 %v574
        %1081 = vmatprep.subr.mxu0 0.0
        %1082 = vmatpush1.msra.mxu0 %v573
        %1083 = vmatprep.subr.mxu0 0.0
        %1084 = vmatpush1.msra.mxu0 %v572
        %1085 = vmatprep.subr.mxu0 0.0
        %1086 = vmatpush1.msra.mxu0 %v571
        %1087 = vmatprep.subr.mxu0 0.0
        %1088 = vmatpush1.msra.mxu0 %v570
        %1089 = vmatprep.subr.mxu0 0.0
        %1090 = vmatpush1.msra.mxu0 %v569
        %1091 = vmatprep.subr.mxu0 0.0
        %1092 = vmatpush1.msra.mxu0 %v568
        %1093 = vmatprep.subr.mxu0 0.0
        %1094 = vmatpush1.msra.mxu0 %v567
        %1095 = vmatprep.subr.mxu0 0.0
        %1096 = vmatpush1.msra.mxu0 %v566
        %1097 = vmatprep.subr.mxu0 0.0
        %1098 = vmatpush1.msra.mxu0 %v565
        %1099 = vmatprep.subr.mxu0 0.0
        %1100 = vmatpush1.msra.mxu0 %v564
        %1101 = vmatprep.subr.mxu0 0.0
        %1102 = vmatpush1.msra.mxu0 %v563
        %1103 = vmatprep.subr.mxu0 0.0
        %1104 = vmatpush1.msra.mxu0 %v562
        %1105 = vmatprep.subr.mxu0 0.0
        %1106 = vmatpush1.msra.mxu0 %v561
        %1107 = vmatprep.subr.mxu0 0.0
        %1108 = vmatpush2.msra.mxu0 %v592
        %1109 = vmatprep.subr.mxu0 0.0
        %1110 = vmatpush2.msra.mxu0 %v591
        %1111 = vmatprep.subr.mxu0 0.0
        %1112 = vmatpush2.msra.mxu0 %v590
        %1113 = vmatprep.subr.mxu0 0.0
        %1114 = vmatpush2.msra.mxu0 %v589
        %1115 = vmatprep.subr.mxu0 0.0
        %1116 = vmatpush2.msra.mxu0 %v588
        %1117 = vmatprep.subr.mxu0 0.0
        %1118 = vmatpush2.msra.mxu0 %v587
        %1119 = vmatprep.subr.mxu0 0.0
        %1120 = vmatpush2.msra.mxu0 %v586
        %1121 = vmatprep.subr.mxu0 0.0
        %1122 = vmatpush2.msra.mxu0 %v585
        %1123 = vmatprep.subr.mxu0 0.0
        %1124 = vmatpush2.msra.mxu0 %v584
        %1125 = vmatprep.subr.mxu0 0.0
        %1126 = vmatpush2.msra.mxu0 %v583
        %1127 = vmatprep.subr.mxu0 0.0
        %1128 = vmatpush2.msra.mxu0 %v582
        %1129 = vmatprep.subr.mxu0 0.0
        %1130 = vmatpush2.msra.mxu0 %v581
        %1131 = vmatprep.subr.mxu0 0.0
        %1132 = vmatpush2.msra.mxu0 %v580
        %1133 = vmatprep.subr.mxu0 0.0
        %1134 = vmatpush2.msra.mxu0 %v579
        %1135 = vmatprep.subr.mxu0 0.0
        %1136 = vmatpush2.msra.mxu0 %v578
        %1137 = vmatprep.subr.mxu0 0.0
        %1138 = vmatpush2.msra.mxu0 %v577
        %1139 = vmatprep.mubr.f32.mxu0 %v350
        %1140 = vmatmul.mubr.f32.gmra.mxu0 %v349
        %v1141 = vpop.f32.mrf.mxu0
        %v1142 = vadd.f32 %v1067, %v1141
        %v1143 = vpop.f32.mrf.mxu0
        %1144 = vmatprep.mubr.f32.mxu0 %v366
        %1145 = vmatmul.mubr.f32.gmra.mxu0 %v365
        %v1146 = vpop.f32.mrf.mxu0
        %v1147 = vadd.f32 %v1072, %v1146
        %v1148 = vpop.f32.mrf.mxu0
        %1149 = vdwg.mxu0
        %1150 = vmatprep.subr.mxu0 0.0
        %1151 = vmatpush1.msra.mxu0 %v608
        %1152 = vmatprep.subr.mxu0 0.0
        %1153 = vmatpush1.msra.mxu0 %v607
        %1154 = vmatprep.subr.mxu0 0.0
        %1155 = vmatpush1.msra.mxu0 %v606
        %1156 = vmatprep.subr.mxu0 0.0
        %1157 = vmatpush1.msra.mxu0 %v605
        %1158 = vmatprep.subr.mxu0 0.0
        %1159 = vmatpush1.msra.mxu0 %v604
        %1160 = vmatprep.subr.mxu0 0.0
        %1161 = vmatpush1.msra.mxu0 %v603
        %1162 = vmatprep.subr.mxu0 0.0
        %1163 = vmatpush1.msra.mxu0 %v602
        %1164 = vmatprep.subr.mxu0 0.0
        %1165 = vmatpush1.msra.mxu0 %v601
        %1166 = vmatprep.subr.mxu0 0.0
        %1167 = vmatpush1.msra.mxu0 %v600
        %1168 = vmatprep.subr.mxu0 0.0
        %1169 = vmatpush1.msra.mxu0 %v599
        %1170 = vmatprep.subr.mxu0 0.0
        %1171 = vmatpush1.msra.mxu0 %v598
        %1172 = vmatprep.subr.mxu0 0.0
        %1173 = vmatpush1.msra.mxu0 %v597
        %1174 = vmatprep.subr.mxu0 0.0
        %1175 = vmatpush1.msra.mxu0 %v596
        %1176 = vmatprep.subr.mxu0 0.0
        %1177 = vmatpush1.msra.mxu0 %v595
        %1178 = vmatprep.subr.mxu0 0.0
        %1179 = vmatpush1.msra.mxu0 %v594
        %1180 = vmatprep.subr.mxu0 0.0
        %1181 = vmatpush1.msra.mxu0 %v593
        %1182 = vmatprep.subr.mxu0 0.0
        %1183 = vmatpush2.msra.mxu0 %v624
        %1184 = vmatprep.subr.mxu0 0.0
        %1185 = vmatpush2.msra.mxu0 %v623
        %1186 = vmatprep.subr.mxu0 0.0
        %1187 = vmatpush2.msra.mxu0 %v622
        %1188 = vmatprep.subr.mxu0 0.0
        %1189 = vmatpush2.msra.mxu0 %v621
        %1190 = vmatprep.subr.mxu0 0.0
        %1191 = vmatpush2.msra.mxu0 %v620
        %1192 = vmatprep.subr.mxu0 0.0
        %1193 = vmatpush2.msra.mxu0 %v619
        %1194 = vmatprep.subr.mxu0 0.0
        %1195 = vmatpush2.msra.mxu0 %v618
        %1196 = vmatprep.subr.mxu0 0.0
        %1197 = vmatpush2.msra.mxu0 %v617
        %1198 = vmatprep.subr.mxu0 0.0
        %1199 = vmatpush2.msra.mxu0 %v616
        %1200 = vmatprep.subr.mxu0 0.0
        %1201 = vmatpush2.msra.mxu0 %v615
        %1202 = vmatprep.subr.mxu0 0.0
        %1203 = vmatpush2.msra.mxu0 %v614
        %1204 = vmatprep.subr.mxu0 0.0
        %1205 = vmatpush2.msra.mxu0 %v613
        %1206 = vmatprep.subr.mxu0 0.0
        %1207 = vmatpush2.msra.mxu0 %v612
        %1208 = vmatprep.subr.mxu0 0.0
        %1209 = vmatpush2.msra.mxu0 %v611
        %1210 = vmatprep.subr.mxu0 0.0
        %1211 = vmatpush2.msra.mxu0 %v610
        %1212 = vmatprep.subr.mxu0 0.0
        %1213 = vmatpush2.msra.mxu0 %v609
        %1214 = vmatprep.mubr.f32.mxu0 %v352
        %1215 = vmatmul.mubr.f32.gmra.mxu0 %v351
        %v1216 = vpop.f32.mrf.mxu0
        %v1217 = vadd.f32 %v1142, %v1216
        %v1218 = vpop.f32.mrf.mxu0
        %1219 = vmatprep.mubr.f32.mxu0 %v368
        %1220 = vmatmul.mubr.f32.gmra.mxu0 %v367
        %v1221 = vpop.f32.mrf.mxu0
        %v1222 = vadd.f32 %v1147, %v1221
        %v1223 = vpop.f32.mrf.mxu0
        %1224 = vdwg.mxu0
        %v1225 = vld [vmem:[%s2] sm:$0xff]
        %v1226 = vld [vmem:[%s2 + $0x8] sm:$0xff]
        %v1227 = vld [vmem:[%s2 + $0x10] sm:$0xff]
        %v1228 = vld [vmem:[%s2 + $0x18] sm:$0xff]
        %v1229 = vld [vmem:[%s2 + $0x20] sm:$0xff]
        %v1230 = vld [vmem:[%s2 + $0x28] sm:$0xff]
        %v1231 = vld [vmem:[%s2 + $0x30] sm:$0xff]
        %v1232 = vld [vmem:[%s2 + $0x38] sm:$0xff]
        %v1233 = vld [vmem:[%s2 + $0x40] sm:$0xff]
        %v1234 = vld [vmem:[%s2 + $0x48] sm:$0xff]
        %v1235 = vld [vmem:[%s2 + $0x50] sm:$0xff]
        %v1236 = vld [vmem:[%s2 + $0x58] sm:$0xff]
        %v1237 = vld [vmem:[%s2 + $0x60] sm:$0xff]
        %v1238 = vld [vmem:[%s2 + $0x68] sm:$0xff]
        %v1239 = vld [vmem:[%s2 + $0x70] sm:$0xff]
        %v1240 = vld [vmem:[%s2 + $0x78] sm:$0xff]
        %v1241 = vld [vmem:[%s2 + $0x80] sm:$0xff]
        %v1242 = vld [vmem:[%s2 + $0x88] sm:$0xff]
        %v1243 = vld [vmem:[%s2 + $0x90] sm:$0xff]
        %v1244 = vld [vmem:[%s2 + $0x98] sm:$0xff]
        %v1245 = vld [vmem:[%s2 + $0xa0] sm:$0xff]
        %v1246 = vld [vmem:[%s2 + $0xa8] sm:$0xff]
        %v1247 = vld [vmem:[%s2 + $0xb0] sm:$0xff]
        %v1248 = vld [vmem:[%s2 + $0xb8] sm:$0xff]
        %v1249 = vld [vmem:[%s2 + $0xc0] sm:$0xff]
        %v1250 = vld [vmem:[%s2 + $0xc8] sm:$0xff]
        %v1251 = vld [vmem:[%s2 + $0xd0] sm:$0xff]
        %v1252 = vld [vmem:[%s2 + $0xd8] sm:$0xff]
        %v1253 = vld [vmem:[%s2 + $0xe0] sm:$0xff]
        %v1254 = vld [vmem:[%s2 + $0xe8] sm:$0xff]
        %v1255 = vld [vmem:[%s2 + $0xf0] sm:$0xff]
        %v1256 = vld [vmem:[%s2 + $0xf8] sm:$0xff]
        %v1257 = vld [vmem:[%s2 + $0x100] sm:$0xff]
        %v1258 = vld [vmem:[%s2 + $0x108] sm:$0xff]
        %v1259 = vld [vmem:[%s2 + $0x110] sm:$0xff]
        %v1260 = vld [vmem:[%s2 + $0x118] sm:$0xff]
        %v1261 = vld [vmem:[%s2 + $0x120] sm:$0xff]
        %v1262 = vld [vmem:[%s2 + $0x128] sm:$0xff]
        %v1263 = vld [vmem:[%s2 + $0x130] sm:$0xff]
        %v1264 = vld [vmem:[%s2 + $0x138] sm:$0xff]
        %v1265 = vld [vmem:[%s2 + $0x140] sm:$0xff]
        %v1266 = vld [vmem:[%s2 + $0x148] sm:$0xff]
        %v1267 = vld [vmem:[%s2 + $0x150] sm:$0xff]
        %v1268 = vld [vmem:[%s2 + $0x158] sm:$0xff]
        %v1269 = vld [vmem:[%s2 + $0x160] sm:$0xff]
        %v1270 = vld [vmem:[%s2 + $0x168] sm:$0xff]
        %v1271 = vld [vmem:[%s2 + $0x170] sm:$0xff]
        %v1272 = vld [vmem:[%s2 + $0x178] sm:$0xff]
        %v1273 = vld [vmem:[%s2 + $0x180] sm:$0xff]
        %v1274 = vld [vmem:[%s2 + $0x188] sm:$0xff]
        %v1275 = vld [vmem:[%s2 + $0x190] sm:$0xff]
        %v1276 = vld [vmem:[%s2 + $0x198] sm:$0xff]
        %v1277 = vld [vmem:[%s2 + $0x1a0] sm:$0xff]
        %v1278 = vld [vmem:[%s2 + $0x1a8] sm:$0xff]
        %v1279 = vld [vmem:[%s2 + $0x1b0] sm:$0xff]
        %v1280 = vld [vmem:[%s2 + $0x1b8] sm:$0xff]
        %v1281 = vld [vmem:[%s2 + $0x1c0] sm:$0xff]
        %v1282 = vld [vmem:[%s2 + $0x1c8] sm:$0xff]
        %v1283 = vld [vmem:[%s2 + $0x1d0] sm:$0xff]
        %v1284 = vld [vmem:[%s2 + $0x1d8] sm:$0xff]
        %v1285 = vld [vmem:[%s2 + $0x1e0] sm:$0xff]
        %v1286 = vld [vmem:[%s2 + $0x1e8] sm:$0xff]
        %v1287 = vld [vmem:[%s2 + $0x1f0] sm:$0xff]
        %v1288 = vld [vmem:[%s2 + $0x1f8] sm:$0xff]
        %v1289 = vld [vmem:[%s2 + $0x200] sm:$0xff]
        %v1290 = vld [vmem:[%s2 + $0x208] sm:$0xff]
        %v1291 = vld [vmem:[%s2 + $0x210] sm:$0xff]
        %v1292 = vld [vmem:[%s2 + $0x218] sm:$0xff]
        %v1293 = vld [vmem:[%s2 + $0x220] sm:$0xff]
        %v1294 = vld [vmem:[%s2 + $0x228] sm:$0xff]
        %v1295 = vld [vmem:[%s2 + $0x230] sm:$0xff]
        %v1296 = vld [vmem:[%s2 + $0x238] sm:$0xff]
        %v1297 = vld [vmem:[%s2 + $0x240] sm:$0xff]
        %v1298 = vld [vmem:[%s2 + $0x248] sm:$0xff]
        %v1299 = vld [vmem:[%s2 + $0x250] sm:$0xff]
        %v1300 = vld [vmem:[%s2 + $0x258] sm:$0xff]
        %v1301 = vld [vmem:[%s2 + $0x260] sm:$0xff]
        %v1302 = vld [vmem:[%s2 + $0x268] sm:$0xff]
        %v1303 = vld [vmem:[%s2 + $0x270] sm:$0xff]
        %v1304 = vld [vmem:[%s2 + $0x278] sm:$0xff]
        %v1305 = vld [vmem:[%s2 + $0x280] sm:$0xff]
        %v1306 = vld [vmem:[%s2 + $0x288] sm:$0xff]
        %v1307 = vld [vmem:[%s2 + $0x290] sm:$0xff]
        %v1308 = vld [vmem:[%s2 + $0x298] sm:$0xff]
        %v1309 = vld [vmem:[%s2 + $0x2a0] sm:$0xff]
        %v1310 = vld [vmem:[%s2 + $0x2a8] sm:$0xff]
        %v1311 = vld [vmem:[%s2 + $0x2b0] sm:$0xff]
        %v1312 = vld [vmem:[%s2 + $0x2b8] sm:$0xff]
        %v1313 = vld [vmem:[%s2 + $0x2c0] sm:$0xff]
        %v1314 = vld [vmem:[%s2 + $0x2c8] sm:$0xff]
        %v1315 = vld [vmem:[%s2 + $0x2d0] sm:$0xff]
        %v1316 = vld [vmem:[%s2 + $0x2d8] sm:$0xff]
        %v1317 = vld [vmem:[%s2 + $0x2e0] sm:$0xff]
        %v1318 = vld [vmem:[%s2 + $0x2e8] sm:$0xff]
        %v1319 = vld [vmem:[%s2 + $0x2f0] sm:$0xff]
        %v1320 = vld [vmem:[%s2 + $0x2f8] sm:$0xff]
        %v1321 = vld [vmem:[%s2 + $0x300] sm:$0xff]
        %v1322 = vld [vmem:[%s2 + $0x308] sm:$0xff]
        %v1323 = vld [vmem:[%s2 + $0x310] sm:$0xff]
        %v1324 = vld [vmem:[%s2 + $0x318] sm:$0xff]
        %v1325 = vld [vmem:[%s2 + $0x320] sm:$0xff]
        %v1326 = vld [vmem:[%s2 + $0x328] sm:$0xff]
        %v1327 = vld [vmem:[%s2 + $0x330] sm:$0xff]
        %v1328 = vld [vmem:[%s2 + $0x338] sm:$0xff]
        %v1329 = vld [vmem:[%s2 + $0x340] sm:$0xff]
        %v1330 = vld [vmem:[%s2 + $0x348] sm:$0xff]
        %v1331 = vld [vmem:[%s2 + $0x350] sm:$0xff]
        %v1332 = vld [vmem:[%s2 + $0x358] sm:$0xff]
        %v1333 = vld [vmem:[%s2 + $0x360] sm:$0xff]
        %v1334 = vld [vmem:[%s2 + $0x368] sm:$0xff]
        %v1335 = vld [vmem:[%s2 + $0x370] sm:$0xff]
        %v1336 = vld [vmem:[%s2 + $0x378] sm:$0xff]
        %v1337 = vld [vmem:[%s2 + $0x380] sm:$0xff]
        %v1338 = vld [vmem:[%s2 + $0x388] sm:$0xff]
        %v1339 = vld [vmem:[%s2 + $0x390] sm:$0xff]
        %v1340 = vld [vmem:[%s2 + $0x398] sm:$0xff]
        %v1341 = vld [vmem:[%s2 + $0x3a0] sm:$0xff]
        %v1342 = vld [vmem:[%s2 + $0x3a8] sm:$0xff]
        %v1343 = vld [vmem:[%s2 + $0x3b0] sm:$0xff]
        %v1344 = vld [vmem:[%s2 + $0x3b8] sm:$0xff]
        %v1345 = vld [vmem:[%s2 + $0x3c0] sm:$0xff]
        %v1346 = vld [vmem:[%s2 + $0x3c8] sm:$0xff]
        %v1347 = vld [vmem:[%s2 + $0x3d0] sm:$0xff]
        %v1348 = vld [vmem:[%s2 + $0x3d8] sm:$0xff]
        %v1349 = vld [vmem:[%s2 + $0x3e0] sm:$0xff]
        %v1350 = vld [vmem:[%s2 + $0x3e8] sm:$0xff]
        %v1351 = vld [vmem:[%s2 + $0x3f0] sm:$0xff]
        %v1352 = vld [vmem:[%s2 + $0x3f8] sm:$0xff]
        %v1353 = vld [vmem:[%s3] sm:$0xff]
        %v1354 = vld [vmem:[%s3 + $0x8] sm:$0xff]
        %v1355 = vld [vmem:[%s3 + $0x10] sm:$0xff]
        %v1356 = vld [vmem:[%s3 + $0x18] sm:$0xff]
        %v1357 = vld [vmem:[%s4] sm:$0xff]
        %v1358 = vld [vmem:[%s4 + $0x8] sm:$0xff]
        %v1359 = vld [vmem:[%s4 + $0x10] sm:$0xff]
        %v1360 = vld [vmem:[%s4 + $0x18] sm:$0xff]
        %1362 = vset.pattern.permute.xlu0 0
        %1363 = vperm.xlu0 %1362, %v1357
        %v1364 = vpop.permute.xlu0 %1363
        %1367 = vset.pattern.permute.xlu0 0
        %1368 = vperm.xlu0 %1367, %v1358
        %v1369 = vpop.permute.xlu0 %1368
        %1372 = vset.pattern.permute.xlu0 0
        %1373 = vperm.xlu0 %1372, %v1359
        %v1374 = vpop.permute.xlu0 %1373
        %1377 = vset.pattern.permute.xlu0 0
        %1378 = vperm.xlu0 %1377, %v1360
        %v1379 = vpop.permute.xlu0 %1378
        %vm1381 = vcmask 130048
        %v1383 = vsel %vm1381, %v1353, 0
        %v1386 = vsel %vm1381, %v1354, 0
        %v1389 = vsel %vm1381, %v1355, 0
        %v1392 = vsel %vm1381, %v1356, 0
        %1394 = vmatprep.subr.mxu0 0.0
        %1395 = vmatpush1.msra.mxu0 0.0
        %1396 = vmatprep.subr.mxu0 0.0
        %1397 = vmatpush1.msra.mxu0 0.0
        %1398 = vmatprep.subr.mxu0 0.0
        %1399 = vmatpush1.msra.mxu0 0.0
        %1400 = vmatprep.subr.mxu0 0.0
        %1401 = vmatpush1.msra.mxu0 0.0
        %1402 = vmatprep.subr.mxu0 0.0
        %1403 = vmatpush1.msra.mxu0 0.0
        %1404 = vmatprep.subr.mxu0 0.0
        %1405 = vmatpush1.msra.mxu0 0.0
        %1406 = vmatprep.subr.mxu0 0.0
        %1407 = vmatpush1.msra.mxu0 0.0
        %1408 = vmatprep.subr.mxu0 0.0
        %1409 = vmatpush1.msra.mxu0 0.0
        %1410 = vmatprep.subr.mxu0 0.0
        %1411 = vmatpush1.msra.mxu0 0.0
        %1412 = vmatprep.subr.mxu0 0.0
        %1413 = vmatpush1.msra.mxu0 0.0
        %1414 = vmatprep.subr.mxu0 0.0
        %1415 = vmatpush1.msra.mxu0 0.0
        %1416 = vmatprep.subr.mxu0 0.0
        %1417 = vmatpush1.msra.mxu0 0.0
        %1418 = vmatprep.subr.mxu0 0.0
        %1419 = vmatpush1.msra.mxu0 0.0
        %1420 = vmatprep.subr.mxu0 0.0
        %1421 = vmatpush1.msra.mxu0 0.0
        %1422 = vmatprep.subr.mxu0 0.0
        %1423 = vmatpush1.msra.mxu0 %v1222
        %1424 = vmatprep.subr.mxu0 0.0
        %1425 = vmatpush1.msra.mxu0 %v1217
        %1426 = vmatprep.subr.mxu0 0.0
        %1427 = vmatpush2.msra.mxu0 0.0
        %1428 = vmatprep.subr.mxu0 0.0
        %1429 = vmatpush2.msra.mxu0 0.0
        %1430 = vmatprep.subr.mxu0 0.0
        %1431 = vmatpush2.msra.mxu0 0.0
        %1432 = vmatprep.subr.mxu0 0.0
        %1433 = vmatpush2.msra.mxu0 0.0
        %1434 = vmatprep.subr.mxu0 0.0
        %1435 = vmatpush2.msra.mxu0 0.0
        %1436 = vmatprep.subr.mxu0 0.0
        %1437 = vmatpush2.msra.mxu0 0.0
        %1438 = vmatprep.subr.mxu0 0.0
        %1439 = vmatpush2.msra.mxu0 0.0
        %1440 = vmatprep.subr.mxu0 0.0
        %1441 = vmatpush2.msra.mxu0 0.0
        %1442 = vmatprep.subr.mxu0 0.0
        %1443 = vmatpush2.msra.mxu0 0.0
        %1444 = vmatprep.subr.mxu0 0.0
        %1445 = vmatpush2.msra.mxu0 0.0
        %1446 = vmatprep.subr.mxu0 0.0
        %1447 = vmatpush2.msra.mxu0 0.0
        %1448 = vmatprep.subr.mxu0 0.0
        %1449 = vmatpush2.msra.mxu0 0.0
        %1450 = vmatprep.subr.mxu0 0.0
        %1451 = vmatpush2.msra.mxu0 0.0
        %1452 = vmatprep.subr.mxu0 0.0
        %1453 = vmatpush2.msra.mxu0 0.0
        %1454 = vmatprep.subr.mxu0 0.0
        %1455 = vmatpush2.msra.mxu0 0.0
        %1456 = vmatprep.subr.mxu0 0.0
        %1457 = vmatpush2.msra.mxu0 0.0
        %1458 = vmatprep.mubr.f32.mxu0 0.0
        %1459 = vmatmul.mubr.f32.gmra.mxu0 %v1383
        %v1460 = vpop.f32.mrf.mxu0
        %v1461 = vadd.f32 %v1364, %v1460
        %v1462 = vpop.f32.mrf.mxu0
        %1463 = vmatprep.mubr.f32.mxu0 0.0
        %1464 = vmatmul.mubr.f32.gmra.mxu0 %v1386
        %v1465 = vpop.f32.mrf.mxu0
        %v1466 = vadd.f32 %v1369, %v1465
        %v1467 = vpop.f32.mrf.mxu0
        %1468 = vmatprep.mubr.f32.mxu0 0.0
        %1469 = vmatmul.mubr.f32.gmra.mxu0 %v1389
        %v1470 = vpop.f32.mrf.mxu0
        %v1471 = vadd.f32 %v1374, %v1470
        %v1472 = vpop.f32.mrf.mxu0
        %1473 = vmatprep.mubr.f32.mxu0 0.0
        %1474 = vmatmul.mubr.f32.gmra.mxu0 %v1392
        %v1475 = vpop.f32.mrf.mxu0
        %v1476 = vadd.f32 %v1379, %v1475
        %v1477 = vpop.f32.mrf.mxu0
        %1478 = vdwg.mxu0
        %v1479 = vmax.f32 %v1461, 0.0
        %v1480 = vmax.f32 %v1466, 0.0
        %v1481 = vmax.f32 %v1471, 0.0
        %v1482 = vmax.f32 %v1476, 0.0
        %v1483 = vld [vmem:[%s5] sm:$0x3f]
        %vm1484 = vcmask 261120
        %v1486 = vsel %vm1484, %v1483, 0
        %1488 = vmatprep.subr.mxu0 0.0
        %1489 = vmatpush1.msra.mxu0 0.0
        %1490 = vmatprep.subr.mxu0 0.0
        %1491 = vmatpush1.msra.mxu0 0.0
        %1492 = vmatprep.subr.mxu0 0.0
        %1493 = vmatpush1.msra.mxu0 0.0
        %1494 = vmatprep.subr.mxu0 0.0
        %1495 = vmatpush1.msra.mxu0 0.0
        %1496 = vmatprep.subr.mxu0 0.0
        %1497 = vmatpush1.msra.mxu0 0.0
        %1498 = vmatprep.subr.mxu0 0.0
        %1499 = vmatpush1.msra.mxu0 0.0
        %1500 = vmatprep.subr.mxu0 0.0
        %1501 = vmatpush1.msra.mxu0 0.0
        %1502 = vmatprep.subr.mxu0 0.0
        %1503 = vmatpush1.msra.mxu0 0.0
        %1504 = vmatprep.subr.mxu0 0.0
        %1505 = vmatpush1.msra.mxu0 0.0
        %1506 = vmatprep.subr.mxu0 0.0
        %1507 = vmatpush1.msra.mxu0 0.0
        %1508 = vmatprep.subr.mxu0 0.0
        %1509 = vmatpush1.msra.mxu0 0.0
        %1510 = vmatprep.subr.mxu0 0.0
        %1511 = vmatpush1.msra.mxu0 0.0
        %1512 = vmatprep.subr.mxu0 0.0
        %1513 = vmatpush1.msra.mxu0 %v1482
        %1514 = vmatprep.subr.mxu0 0.0
        %1515 = vmatpush1.msra.mxu0 %v1481
        %1516 = vmatprep.subr.mxu0 0.0
        %1517 = vmatpush1.msra.mxu0 %v1480
        %1518 = vmatprep.subr.mxu0 0.0
        %1519 = vmatpush1.msra.mxu0 %v1479
        %1520 = vmatprep.subr.mxu0 0.0
        %1521 = vmatpush2.msra.mxu0 0.0
        %1522 = vmatprep.subr.mxu0 0.0
        %1523 = vmatpush2.msra.mxu0 0.0
        %1524 = vmatprep.subr.mxu0 0.0
        %1525 = vmatpush2.msra.mxu0 0.0
        %1526 = vmatprep.subr.mxu0 0.0
        %1527 = vmatpush2.msra.mxu0 0.0
        %1528 = vmatprep.subr.mxu0 0.0
        %1529 = vmatpush2.msra.mxu0 0.0
        %1530 = vmatprep.subr.mxu0 0.0
        %1531 = vmatpush2.msra.mxu0 0.0
        %1532 = vmatprep.subr.mxu0 0.0
        %1533 = vmatpush2.msra.mxu0 0.0
        %1534 = vmatprep.subr.mxu0 0.0
        %1535 = vmatpush2.msra.mxu0 0.0
        %1536 = vmatprep.subr.mxu0 0.0
        %1537 = vmatpush2.msra.mxu0 0.0
        %1538 = vmatprep.subr.mxu0 0.0
        %1539 = vmatpush2.msra.mxu0 0.0
        %1540 = vmatprep.subr.mxu0 0.0
        %1541 = vmatpush2.msra.mxu0 0.0
        %1542 = vmatprep.subr.mxu0 0.0
        %1543 = vmatpush2.msra.mxu0 0.0
        %1544 = vmatprep.subr.mxu0 0.0
        %1545 = vmatpush2.msra.mxu0 0.0
        %1546 = vmatprep.subr.mxu0 0.0
        %1547 = vmatpush2.msra.mxu0 0.0
        %1548 = vmatprep.subr.mxu0 0.0
        %1549 = vmatpush2.msra.mxu0 0.0
        %1550 = vmatprep.subr.mxu0 0.0
        %1551 = vmatpush2.msra.mxu0 0.0
        %1552 = vmatprep.mubr.f32.mxu0 0.0
        %1553 = vmatmul.mubr.f32.gmra.mxu0 %v1486
        %v1554 = vpop.f32.mrf.mxu0
        %v1555 = vadd.f32 0.0, %v1554
        %v1556 = vpop.f32.mrf.mxu0
        %1557 = vdwg.mxu0
        %v1559 = vcombine.high %v1555, %v1555
        %v1561 = vunpack.c.l.s4 1966171168
        %v1562 = vunpack.c.0.s8 %v1561
        %v1563 = vlaneseq
        %v1564 = vshrl.u32 %v1563, 7
        %v1565 = vsub.s32 %v1562, %v1564
        %v1566 = vrot.slane %v1555, %v1565
        %v1568 = vunpack.c.l.s4 1966171168
        %v1569 = vunpack.c.0.s8 %v1568
        %v1570 = vlaneseq
        %v1571 = vshrl.u32 %v1570, 7
        %v1572 = vsub.s32 %v1569, %v1571
        %v1573 = vrot.slane %v1559, %v1572
        %v1574 = vcombine.high %v1566, %v1566
        %v1575 = vcombine.high %v1573, %v1573
        %v1577 = vunpack.c.l.s4 1966171168
        %v1578 = vunpack.c.0.s8 %v1577
        %v1579 = vlaneseq
        %v1580 = vshrl.u32 %v1579, 7
        %v1581 = vsub.s32 %v1578, %v1580
        %v1582 = vrot.slane %v1566, %v1581
        %v1584 = vunpack.c.l.s4 1966171168
        %v1585 = vunpack.c.0.s8 %v1584
        %v1586 = vlaneseq
        %v1587 = vshrl.u32 %v1586, 7
        %v1588 = vsub.s32 %v1585, %v1587
        %v1589 = vrot.slane %v1573, %v1588
        %v1591 = vunpack.c.l.s4 1966171168
        %v1592 = vunpack.c.0.s8 %v1591
        %v1593 = vlaneseq
        %v1594 = vshrl.u32 %v1593, 7
        %v1595 = vsub.s32 %v1592, %v1594
        %v1596 = vrot.slane %v1574, %v1595
        %v1598 = vunpack.c.l.s4 1966171168
        %v1599 = vunpack.c.0.s8 %v1598
        %v1600 = vlaneseq
        %v1601 = vshrl.u32 %v1600, 7
        %v1602 = vsub.s32 %v1599, %v1601
        %v1603 = vrot.slane %v1575, %v1602
        %v1604 = vcombine.high %v1582, %v1582
        %v1605 = vcombine.high %v1596, %v1596
        %v1612 = vcombine.low %v1582, %v1596
        %v1614 = vunpack.c.l.s4 1966171168
        %v1615 = vunpack.c.0.s8 %v1614
        %v1616 = vlaneseq
        %v1617 = vshrl.u32 %v1616, 7
        %v1618 = vsub.s32 %v1615, %v1617
        %v1619 = vrot.slane %v1612, %v1618
        %v1621 = vunpack.c.l.s4 1966171168
        %v1622 = vunpack.c.0.s8 %v1621
        %v1623 = vlaneseq
        %v1624 = vshrl.u32 %v1623, 7
        %v1625 = vsub.s32 %v1622, %v1624
        %v1626 = vrot.slane %v1604, %v1625
        %v1627 = vcombine.low %v1619, %v1626
        %v1629 = vunpack.c.l.s4 1966171168
        %v1630 = vunpack.c.0.s8 %v1629
        %v1631 = vlaneseq
        %v1632 = vshrl.u32 %v1631, 7
        %v1633 = vsub.s32 %v1630, %v1632
        %v1634 = vrot.slane %v1627, %v1633
        %v1635 = vcombine.low %v1605, %v1589
        %v1637 = vunpack.c.l.s4 1966171168
        %v1638 = vunpack.c.0.s8 %v1637
        %v1639 = vlaneseq
        %v1640 = vshrl.u32 %v1639, 7
        %v1641 = vsub.s32 %v1638, %v1640
        %v1642 = vrot.slane %v1635, %v1641
        %v1644 = vunpack.c.l.s4 1966171168
        %v1645 = vunpack.c.0.s8 %v1644
        %v1646 = vlaneseq
        %v1647 = vshrl.u32 %v1646, 7
        %v1648 = vsub.s32 %v1645, %v1647
        %v1649 = vrot.slane %v1603, %v1648
        %v1650 = vcombine.low %v1642, %v1649
        %v1652 = vunpack.c.l.s4 1966171168
        %v1653 = vunpack.c.0.s8 %v1652
        %v1654 = vlaneseq
        %v1655 = vshrl.u32 %v1654, 7
        %v1656 = vsub.s32 %v1653, %v1655
        %v1657 = vrot.slane %v1650, %v1656
        %vm1660 = vcmask 518144
        %v1661 = vsel %vm1660, %v1634, -inf
        %v1662 = vrot.slane %v1661, 4
        %v1663 = vmax.f32 %v1661, %v1662
        %v1664 = vrot.slane %v1663, 2
        %v1665 = vmax.f32 %v1663, %v1664
        %v1666 = vrot.slane %v1665, 1
        %v1667 = vmax.f32 %v1665, %v1666
        %v1668 = vsel %vm1660, %v1657, -inf
        %v1669 = vrot.slane %v1668, 4
        %v1670 = vmax.f32 %v1668, %v1669
        %v1671 = vrot.slane %v1670, 2
        %v1672 = vmax.f32 %v1670, %v1671
        %v1673 = vrot.slane %v1672, 1
        %v1674 = vmax.f32 %v1672, %v1673
        %v1678 = vunpack.c.l.s4 1966171168
        %v1679 = vunpack.c.0.s8 %v1678
        %v1680 = vlaneseq
        %v1681 = vshrl.u32 %v1680, 7
        %v1682 = vsub.s32 %v1679, %v1681
        %v1683 = vrot.slane %v1667, %v1682
        %v1684 = vcombine.high %v1683, %v1683
        %v1686 = vunpack.c.l.s4 1966171168
        %v1687 = vunpack.c.0.s8 %v1686
        %v1688 = vlaneseq
        %v1689 = vshrl.u32 %v1688, 7
        %v1690 = vsub.s32 %v1687, %v1689
        %v1691 = vrot.slane %v1683, %v1690
        %v1693 = vunpack.c.l.s4 1966171168
        %v1694 = vunpack.c.0.s8 %v1693
        %v1695 = vlaneseq
        %v1696 = vshrl.u32 %v1695, 7
        %v1697 = vsub.s32 %v1694, %v1696
        %v1698 = vrot.slane %v1684, %v1697
        %v1699 = vcombine.high %v1691, %v1691
        %v1701 = vunpack.c.l.s4 1966171168
        %v1702 = vunpack.c.0.s8 %v1701
        %v1703 = vlaneseq
        %v1704 = vshrl.u32 %v1703, 7
        %v1705 = vsub.s32 %v1702, %v1704
        %v1706 = vrot.slane %v1674, %v1705
        %v1707 = vcombine.high %v1706, %v1706
        %v1709 = vunpack.c.l.s4 1966171168
        %v1710 = vunpack.c.0.s8 %v1709
        %v1711 = vlaneseq
        %v1712 = vshrl.u32 %v1711, 7
        %v1713 = vsub.s32 %v1710, %v1712
        %v1714 = vrot.slane %v1706, %v1713
        %v1716 = vunpack.c.l.s4 1966171168
        %v1717 = vunpack.c.0.s8 %v1716
        %v1718 = vlaneseq
        %v1719 = vshrl.u32 %v1718, 7
        %v1720 = vsub.s32 %v1717, %v1719
        %v1721 = vrot.slane %v1707, %v1720
        %v1722 = vcombine.high %v1714, %v1714
        %v1729 = vsub.f32 %v1582, %v1691
        %v1730 = vsub.f32 %v1596, %v1698
        %v1731 = vsub.f32 %v1604, %v1699
        %v1732 = vsub.f32 %v1605, %v1714
        %v1733 = vsub.f32 %v1589, %v1721
        %v1734 = vsub.f32 %v1603, %v1722
        %v1735 = vmul.f32 %v1729, 1.442695
        %v1736 = vpow.pop %v1735
        %v1737 = vmul.f32 %v1730, 1.442695
        %v1738 = vpow.pop %v1737
        %v1739 = vmul.f32 %v1731, 1.442695
        %v1740 = vpow.pop %v1739
        %v1741 = vmul.f32 %v1732, 1.442695
        %v1742 = vpow.pop %v1741
        %v1743 = vmul.f32 %v1733, 1.442695
        %v1744 = vpow.pop %v1743
        %v1745 = vmul.f32 %v1734, 1.442695
        %v1746 = vpow.pop %v1745
        %v1753 = vcombine.low %v1736, %v1738
        %v1755 = vunpack.c.l.s4 1966171168
        %v1756 = vunpack.c.0.s8 %v1755
        %v1757 = vlaneseq
        %v1758 = vshrl.u32 %v1757, 7
        %v1759 = vsub.s32 %v1756, %v1758
        %v1760 = vrot.slane %v1753, %v1759
        %v1762 = vunpack.c.l.s4 1966171168
        %v1763 = vunpack.c.0.s8 %v1762
        %v1764 = vlaneseq
        %v1765 = vshrl.u32 %v1764, 7
        %v1766 = vsub.s32 %v1763, %v1765
        %v1767 = vrot.slane %v1740, %v1766
        %v1768 = vcombine.low %v1760, %v1767
        %v1770 = vunpack.c.l.s4 1966171168
        %v1771 = vunpack.c.0.s8 %v1770
        %v1772 = vlaneseq
        %v1773 = vshrl.u32 %v1772, 7
        %v1774 = vsub.s32 %v1771, %v1773
        %v1775 = vrot.slane %v1768, %v1774
        %v1776 = vcombine.low %v1742, %v1744
        %v1778 = vunpack.c.l.s4 1966171168
        %v1779 = vunpack.c.0.s8 %v1778
        %v1780 = vlaneseq
        %v1781 = vshrl.u32 %v1780, 7
        %v1782 = vsub.s32 %v1779, %v1781
        %v1783 = vrot.slane %v1776, %v1782
        %v1785 = vunpack.c.l.s4 1966171168
        %v1786 = vunpack.c.0.s8 %v1785
        %v1787 = vlaneseq
        %v1788 = vshrl.u32 %v1787, 7
        %v1789 = vsub.s32 %v1786, %v1788
        %v1790 = vrot.slane %v1746, %v1789
        %v1791 = vcombine.low %v1783, %v1790
        %v1793 = vunpack.c.l.s4 1966171168
        %v1794 = vunpack.c.0.s8 %v1793
        %v1795 = vlaneseq
        %v1796 = vshrl.u32 %v1795, 7
        %v1797 = vsub.s32 %v1794, %v1796
        %v1798 = vrot.slane %v1791, %v1797
        %v1801 = vsel %vm1660, %v1775, 0.0
        %v1802 = vrot.slane %v1801, 4
        %v1803 = vadd.f32 %v1801, %v1802
        %v1804 = vrot.slane %v1803, 2
        %v1805 = vadd.f32 %v1803, %v1804
        %v1806 = vrot.slane %v1805, 1
        %v1807 = vadd.f32 %v1805, %v1806
        %v1808 = vsel %vm1660, %v1798, 0.0
        %v1809 = vrot.slane %v1808, 4
        %v1810 = vadd.f32 %v1808, %v1809
        %v1811 = vrot.slane %v1810, 2
        %v1812 = vadd.f32 %v1810, %v1811
        %v1813 = vrot.slane %v1812, 1
        %v1814 = vadd.f32 %v1812, %v1813
        %v1818 = vunpack.c.l.s4 1966171168
        %v1819 = vunpack.c.0.s8 %v1818
        %v1820 = vlaneseq
        %v1821 = vshrl.u32 %v1820, 7
        %v1822 = vsub.s32 %v1819, %v1821
        %v1823 = vrot.slane %v1807, %v1822
        %v1824 = vcombine.high %v1823, %v1823
        %v1826 = vunpack.c.l.s4 1966171168
        %v1827 = vunpack.c.0.s8 %v1826
        %v1828 = vlaneseq
        %v1829 = vshrl.u32 %v1828, 7
        %v1830 = vsub.s32 %v1827, %v1829
        %v1831 = vrot.slane %v1823, %v1830
        %v1833 = vunpack.c.l.s4 1966171168
        %v1834 = vunpack.c.0.s8 %v1833
        %v1835 = vlaneseq
        %v1836 = vshrl.u32 %v1835, 7
        %v1837 = vsub.s32 %v1834, %v1836
        %v1838 = vrot.slane %v1824, %v1837
        %v1839 = vcombine.high %v1831, %v1831
        %v1841 = vunpack.c.l.s4 1966171168
        %v1842 = vunpack.c.0.s8 %v1841
        %v1843 = vlaneseq
        %v1844 = vshrl.u32 %v1843, 7
        %v1845 = vsub.s32 %v1842, %v1844
        %v1846 = vrot.slane %v1814, %v1845
        %v1847 = vcombine.high %v1846, %v1846
        %v1849 = vunpack.c.l.s4 1966171168
        %v1850 = vunpack.c.0.s8 %v1849
        %v1851 = vlaneseq
        %v1852 = vshrl.u32 %v1851, 7
        %v1853 = vsub.s32 %v1850, %v1852
        %v1854 = vrot.slane %v1846, %v1853
        %v1856 = vunpack.c.l.s4 1966171168
        %v1857 = vunpack.c.0.s8 %v1856
        %v1858 = vlaneseq
        %v1859 = vshrl.u32 %v1858, 7
        %v1860 = vsub.s32 %v1857, %v1859
        %v1861 = vrot.slane %v1847, %v1860
        %v1862 = vcombine.high %v1854, %v1854
        %v1869 = vrcp.pop %v1831
        %v1870 = vmul.f32 %v1736, %v1869
        %v1871 = vrcp.pop %v1838
        %v1872 = vmul.f32 %v1738, %v1871
        %v1873 = vrcp.pop %v1839
        %v1874 = vmul.f32 %v1740, %v1873
        %v1875 = vrcp.pop %v1854
        %v1876 = vmul.f32 %v1742, %v1875
        %v1877 = vrcp.pop %v1861
        %v1878 = vmul.f32 %v1744, %v1877
        %v1879 = vrcp.pop %v1862
        %v1880 = vmul.f32 %v1746, %v1879
        %v1887 = vcombine.low %v1870, %v1872
        %v1888 = vcombine.low %v1874, %v1876
        %v1889 = vcombine.low %v1878, %v1880
        %v1891 = vunpack.c.l.s4 1966171168
        %v1892 = vunpack.c.0.s8 %v1891
        %v1893 = vlaneseq
        %v1894 = vshrl.u32 %v1893, 7
        %v1895 = vsub.s32 %v1892, %v1894
        %v1896 = vrot.slane %v1887, %v1895
        %v1898 = vunpack.c.l.s4 1966171168
        %v1899 = vunpack.c.0.s8 %v1898
        %v1900 = vlaneseq
        %v1901 = vshrl.u32 %v1900, 7
        %v1902 = vsub.s32 %v1899, %v1901
        %v1903 = vrot.slane %v1888, %v1902
        %v1905 = vunpack.c.l.s4 1966171168
        %v1906 = vunpack.c.0.s8 %v1905
        %v1907 = vlaneseq
        %v1908 = vshrl.u32 %v1907, 7
        %v1909 = vsub.s32 %v1906, %v1908
        %v1910 = vrot.slane %v1889, %v1909
        %v1911 = vcombine.low %v1896, %v1903
        %v1913 = vunpack.c.l.s4 1966171168
        %v1914 = vunpack.c.0.s8 %v1913
        %v1915 = vlaneseq
        %v1916 = vshrl.u32 %v1915, 7
        %v1917 = vsub.s32 %v1914, %v1916
        %v1918 = vrot.slane %v1911, %v1917
        %v1920 = vunpack.c.l.s4 1966171168
        %v1921 = vunpack.c.0.s8 %v1920
        %v1922 = vlaneseq
        %v1923 = vshrl.u32 %v1922, 7
        %v1924 = vsub.s32 %v1921, %v1923
        %v1925 = vrot.slane %v1910, %v1924
        %v1926 = vcombine.low %v1918, %v1925
        %vm1927 = vcmask 523264
        %v1928 = vsel %vm1927, %v1926, 0
        %1930 = vmatprep.subr.mxu0 0.0
        %1931 = vmatpush1.msra.mxu0 0.0
        %1932 = vmatprep.subr.mxu0 0.0
        %1933 = vmatpush1.msra.mxu0 0.0
        %1934 = vmatprep.subr.mxu0 0.0
        %1935 = vmatpush1.msra.mxu0 0.0
        %1936 = vmatprep.subr.mxu0 0.0
        %1937 = vmatpush1.msra.mxu0 0.0
        %1938 = vmatprep.subr.mxu0 0.0
        %1939 = vmatpush1.msra.mxu0 0.0
        %1940 = vmatprep.subr.mxu0 0.0
        %1941 = vmatpush1.msra.mxu0 0.0
        %1942 = vmatprep.subr.mxu0 0.0
        %1943 = vmatpush1.msra.mxu0 0.0
        %1944 = vmatprep.subr.mxu0 0.0
        %1945 = vmatpush1.msra.mxu0 0.0
        %1946 = vmatprep.subr.mxu0 %v1338
        %1947 = vmatpush1.msra.mxu0 %v1337
        %1948 = vmatprep.subr.mxu0 %v1322
        %1949 = vmatpush1.msra.mxu0 %v1321
        %1950 = vmatprep.subr.mxu0 %v1306
        %1951 = vmatpush1.msra.mxu0 %v1305
        %1952 = vmatprep.subr.mxu0 %v1290
        %1953 = vmatpush1.msra.mxu0 %v1289
        %1954 = vmatprep.subr.mxu0 %v1274
        %1955 = vmatpush1.msra.mxu0 %v1273
        %1956 = vmatprep.subr.mxu0 %v1258
        %1957 = vmatpush1.msra.mxu0 %v1257
        %1958 = vmatprep.subr.mxu0 %v1242
        %1959 = vmatpush1.msra.mxu0 %v1241
        %1960 = vmatprep.subr.mxu0 %v1226
        %1961 = vmatpush1.msra.mxu0 %v1225
        %1962 = vmatprep.subr.mxu0 0.0
        %1963 = vmatpush2.msra.mxu0 0.0
        %1964 = vmatprep.subr.mxu0 0.0
        %1965 = vmatpush2.msra.mxu0 0.0
        %1966 = vmatprep.subr.mxu0 0.0
        %1967 = vmatpush2.msra.mxu0 0.0
        %1968 = vmatprep.subr.mxu0 0.0
        %1969 = vmatpush2.msra.mxu0 0.0
        %1970 = vmatprep.subr.mxu0 0.0
        %1971 = vmatpush2.msra.mxu0 0.0
        %1972 = vmatprep.subr.mxu0 0.0
        %1973 = vmatpush2.msra.mxu0 0.0
        %1974 = vmatprep.subr.mxu0 0.0
        %1975 = vmatpush2.msra.mxu0 0.0
        %1976 = vmatprep.subr.mxu0 0.0
        %1977 = vmatpush2.msra.mxu0 0.0
        %1978 = vmatprep.subr.mxu0 0.0
        %1979 = vmatpush2.msra.mxu0 0.0
        %1980 = vmatprep.subr.mxu0 0.0
        %1981 = vmatpush2.msra.mxu0 0.0
        %1982 = vmatprep.subr.mxu0 0.0
        %1983 = vmatpush2.msra.mxu0 0.0
        %1984 = vmatprep.subr.mxu0 0.0
        %1985 = vmatpush2.msra.mxu0 0.0
        %1986 = vmatprep.subr.mxu0 0.0
        %1987 = vmatpush2.msra.mxu0 0.0
        %1988 = vmatprep.subr.mxu0 0.0
        %1989 = vmatpush2.msra.mxu0 0.0
        %1990 = vmatprep.subr.mxu0 0.0
        %1991 = vmatpush2.msra.mxu0 0.0
        %1992 = vmatprep.subr.mxu0 0.0
        %1993 = vmatpush2.msra.mxu0 0.0
        %1994 = vmatprep.mubr.f32.mxu0 0.0
        %1995 = vmatmul.mubr.f32.gmra.mxu0 %v1928
        %v1996 = vpop.f32.mrf.mxu0
        %v1997 = vadd.f32 0.0, %v1996
        %v1998 = vpop.f32.mrf.mxu0
        %v1999 = vadd.f32 0.0, %v1998
        %2000 = vdwg.mxu0
        %2001 = vmatprep.subr.mxu0 0.0
        %2002 = vmatpush1.msra.mxu0 0.0
        %2003 = vmatprep.subr.mxu0 0.0
        %2004 = vmatpush1.msra.mxu0 0.0
        %2005 = vmatprep.subr.mxu0 0.0
        %2006 = vmatpush1.msra.mxu0 0.0
        %2007 = vmatprep.subr.mxu0 0.0
        %2008 = vmatpush1.msra.mxu0 0.0
        %2009 = vmatprep.subr.mxu0 0.0
        %2010 = vmatpush1.msra.mxu0 0.0
        %2011 = vmatprep.subr.mxu0 0.0
        %2012 = vmatpush1.msra.mxu0 0.0
        %2013 = vmatprep.subr.mxu0 0.0
        %2014 = vmatpush1.msra.mxu0 0.0
        %2015 = vmatprep.subr.mxu0 0.0
        %2016 = vmatpush1.msra.mxu0 0.0
        %2017 = vmatprep.subr.mxu0 %v1340
        %2018 = vmatpush1.msra.mxu0 %v1339
        %2019 = vmatprep.subr.mxu0 %v1324
        %2020 = vmatpush1.msra.mxu0 %v1323
        %2021 = vmatprep.subr.mxu0 %v1308
        %2022 = vmatpush1.msra.mxu0 %v1307
        %2023 = vmatprep.subr.mxu0 %v1292
        %2024 = vmatpush1.msra.mxu0 %v1291
        %2025 = vmatprep.subr.mxu0 %v1276
        %2026 = vmatpush1.msra.mxu0 %v1275
        %2027 = vmatprep.subr.mxu0 %v1260
        %2028 = vmatpush1.msra.mxu0 %v1259
        %2029 = vmatprep.subr.mxu0 %v1244
        %2030 = vmatpush1.msra.mxu0 %v1243
        %2031 = vmatprep.subr.mxu0 %v1228
        %2032 = vmatpush1.msra.mxu0 %v1227
        %2033 = vmatprep.subr.mxu0 0.0
        %2034 = vmatpush2.msra.mxu0 0.0
        %2035 = vmatprep.subr.mxu0 0.0
        %2036 = vmatpush2.msra.mxu0 0.0
        %2037 = vmatprep.subr.mxu0 0.0
        %2038 = vmatpush2.msra.mxu0 0.0
        %2039 = vmatprep.subr.mxu0 0.0
        %2040 = vmatpush2.msra.mxu0 0.0
        %2041 = vmatprep.subr.mxu0 0.0
        %2042 = vmatpush2.msra.mxu0 0.0
        %2043 = vmatprep.subr.mxu0 0.0
        %2044 = vmatpush2.msra.mxu0 0.0
        %2045 = vmatprep.subr.mxu0 0.0
        %2046 = vmatpush2.msra.mxu0 0.0
        %2047 = vmatprep.subr.mxu0 0.0
        %2048 = vmatpush2.msra.mxu0 0.0
        %2049 = vmatprep.subr.mxu0 0.0
        %2050 = vmatpush2.msra.mxu0 0.0
        %2051 = vmatprep.subr.mxu0 0.0
        %2052 = vmatpush2.msra.mxu0 0.0
        %2053 = vmatprep.subr.mxu0 0.0
        %2054 = vmatpush2.msra.mxu0 0.0
        %2055 = vmatprep.subr.mxu0 0.0
        %2056 = vmatpush2.msra.mxu0 0.0
        %2057 = vmatprep.subr.mxu0 0.0
        %2058 = vmatpush2.msra.mxu0 0.0
        %2059 = vmatprep.subr.mxu0 0.0
        %2060 = vmatpush2.msra.mxu0 0.0
        %2061 = vmatprep.subr.mxu0 0.0
        %2062 = vmatpush2.msra.mxu0 0.0
        %2063 = vmatprep.subr.mxu0 0.0
        %2064 = vmatpush2.msra.mxu0 0.0
        %2065 = vmatprep.mubr.f32.mxu0 0.0
        %2066 = vmatmul.mubr.f32.gmra.mxu0 %v1928
        %v2067 = vpop.f32.mrf.mxu0
        %v2068 = vadd.f32 0.0, %v2067
        %v2069 = vpop.f32.mrf.mxu0
        %v2070 = vadd.f32 0.0, %v2069
        %2071 = vdwg.mxu0
        %2072 = vmatprep.subr.mxu0 0.0
        %2073 = vmatpush1.msra.mxu0 0.0
        %2074 = vmatprep.subr.mxu0 0.0
        %2075 = vmatpush1.msra.mxu0 0.0
        %2076 = vmatprep.subr.mxu0 0.0
        %2077 = vmatpush1.msra.mxu0 0.0
        %2078 = vmatprep.subr.mxu0 0.0
        %2079 = vmatpush1.msra.mxu0 0.0
        %2080 = vmatprep.subr.mxu0 0.0
        %2081 = vmatpush1.msra.mxu0 0.0
        %2082 = vmatprep.subr.mxu0 0.0
        %2083 = vmatpush1.msra.mxu0 0.0
        %2084 = vmatprep.subr.mxu0 0.0
        %2085 = vmatpush1.msra.mxu0 0.0
        %2086 = vmatprep.subr.mxu0 0.0
        %2087 = vmatpush1.msra.mxu0 0.0
        %2088 = vmatprep.subr.mxu0 %v1342
        %2089 = vmatpush1.msra.mxu0 %v1341
        %2090 = vmatprep.subr.mxu0 %v1326
        %2091 = vmatpush1.msra.mxu0 %v1325
        %2092 = vmatprep.subr.mxu0 %v1310
        %2093 = vmatpush1.msra.mxu0 %v1309
        %2094 = vmatprep.subr.mxu0 %v1294
        %2095 = vmatpush1.msra.mxu0 %v1293
        %2096 = vmatprep.subr.mxu0 %v1278
        %2097 = vmatpush1.msra.mxu0 %v1277
        %2098 = vmatprep.subr.mxu0 %v1262
        %2099 = vmatpush1.msra.mxu0 %v1261
        %2100 = vmatprep.subr.mxu0 %v1246
        %2101 = vmatpush1.msra.mxu0 %v1245
        %2102 = vmatprep.subr.mxu0 %v1230
        %2103 = vmatpush1.msra.mxu0 %v1229
        %2104 = vmatprep.subr.mxu0 0.0
        %2105 = vmatpush2.msra.mxu0 0.0
        %2106 = vmatprep.subr.mxu0 0.0
        %2107 = vmatpush2.msra.mxu0 0.0
        %2108 = vmatprep.subr.mxu0 0.0
        %2109 = vmatpush2.msra.mxu0 0.0
        %2110 = vmatprep.subr.mxu0 0.0
        %2111 = vmatpush2.msra.mxu0 0.0
        %2112 = vmatprep.subr.mxu0 0.0
        %2113 = vmatpush2.msra.mxu0 0.0
        %2114 = vmatprep.subr.mxu0 0.0
        %2115 = vmatpush2.msra.mxu0 0.0
        %2116 = vmatprep.subr.mxu0 0.0
        %2117 = vmatpush2.msra.mxu0 0.0
        %2118 = vmatprep.subr.mxu0 0.0
        %2119 = vmatpush2.msra.mxu0 0.0
        %2120 = vmatprep.subr.mxu0 0.0
        %2121 = vmatpush2.msra.mxu0 0.0
        %2122 = vmatprep.subr.mxu0 0.0
        %2123 = vmatpush2.msra.mxu0 0.0
        %2124 = vmatprep.subr.mxu0 0.0
        %2125 = vmatpush2.msra.mxu0 0.0
        %2126 = vmatprep.subr.mxu0 0.0
        %2127 = vmatpush2.msra.mxu0 0.0
        %2128 = vmatprep.subr.mxu0 0.0
        %2129 = vmatpush2.msra.mxu0 0.0
        %2130 = vmatprep.subr.mxu0 0.0
        %2131 = vmatpush2.msra.mxu0 0.0
        %2132 = vmatprep.subr.mxu0 0.0
        %2133 = vmatpush2.msra.mxu0 0.0
        %2134 = vmatprep.subr.mxu0 0.0
        %2135 = vmatpush2.msra.mxu0 0.0
        %2136 = vmatprep.mubr.f32.mxu0 0.0
        %2137 = vmatmul.mubr.f32.gmra.mxu0 %v1928
        %v2138 = vpop.f32.mrf.mxu0
        %v2139 = vadd.f32 0.0, %v2138
        %v2140 = vpop.f32.mrf.mxu0
        %v2141 = vadd.f32 0.0, %v2140
        %2142 = vdwg.mxu0
        %2143 = vmatprep.subr.mxu0 0.0
        %2144 = vmatpush1.msra.mxu0 0.0
        %2145 = vmatprep.subr.mxu0 0.0
        %2146 = vmatpush1.msra.mxu0 0.0
        %2147 = vmatprep.subr.mxu0 0.0
        %2148 = vmatpush1.msra.mxu0 0.0
        %2149 = vmatprep.subr.mxu0 0.0
        %2150 = vmatpush1.msra.mxu0 0.0
        %2151 = vmatprep.subr.mxu0 0.0
        %2152 = vmatpush1.msra.mxu0 0.0
        %2153 = vmatprep.subr.mxu0 0.0
        %2154 = vmatpush1.msra.mxu0 0.0
        %2155 = vmatprep.subr.mxu0 0.0
        %2156 = vmatpush1.msra.mxu0 0.0
        %2157 = vmatprep.subr.mxu0 0.0
        %2158 = vmatpush1.msra.mxu0 0.0
        %2159 = vmatprep.subr.mxu0 %v1344
        %2160 = vmatpush1.msra.mxu0 %v1343
        %2161 = vmatprep.subr.mxu0 %v1328
        %2162 = vmatpush1.msra.mxu0 %v1327
        %2163 = vmatprep.subr.mxu0 %v1312
        %2164 = vmatpush1.msra.mxu0 %v1311
        %2165 = vmatprep.subr.mxu0 %v1296
        %2166 = vmatpush1.msra.mxu0 %v1295
        %2167 = vmatprep.subr.mxu0 %v1280
        %2168 = vmatpush1.msra.mxu0 %v1279
        %2169 = vmatprep.subr.mxu0 %v1264
        %2170 = vmatpush1.msra.mxu0 %v1263
        %2171 = vmatprep.subr.mxu0 %v1248
        %2172 = vmatpush1.msra.mxu0 %v1247
        %2173 = vmatprep.subr.mxu0 %v1232
        %2174 = vmatpush1.msra.mxu0 %v1231
        %2175 = vmatprep.subr.mxu0 0.0
        %2176 = vmatpush2.msra.mxu0 0.0
        %2177 = vmatprep.subr.mxu0 0.0
        %2178 = vmatpush2.msra.mxu0 0.0
        %2179 = vmatprep.subr.mxu0 0.0
        %2180 = vmatpush2.msra.mxu0 0.0
        %2181 = vmatprep.subr.mxu0 0.0
        %2182 = vmatpush2.msra.mxu0 0.0
        %2183 = vmatprep.subr.mxu0 0.0
        %2184 = vmatpush2.msra.mxu0 0.0
        %2185 = vmatprep.subr.mxu0 0.0
        %2186 = vmatpush2.msra.mxu0 0.0
        %2187 = vmatprep.subr.mxu0 0.0
        %2188 = vmatpush2.msra.mxu0 0.0
        %2189 = vmatprep.subr.mxu0 0.0
        %2190 = vmatpush2.msra.mxu0 0.0
        %2191 = vmatprep.subr.mxu0 0.0
        %2192 = vmatpush2.msra.mxu0 0.0
        %2193 = vmatprep.subr.mxu0 0.0
        %2194 = vmatpush2.msra.mxu0 0.0
        %2195 = vmatprep.subr.mxu0 0.0
        %2196 = vmatpush2.msra.mxu0 0.0
        %2197 = vmatprep.subr.mxu0 0.0
        %2198 = vmatpush2.msra.mxu0 0.0
        %2199 = vmatprep.subr.mxu0 0.0
        %2200 = vmatpush2.msra.mxu0 0.0
        %2201 = vmatprep.subr.mxu0 0.0
        %2202 = vmatpush2.msra.mxu0 0.0
        %2203 = vmatprep.subr.mxu0 0.0
        %2204 = vmatpush2.msra.mxu0 0.0
        %2205 = vmatprep.subr.mxu0 0.0
        %2206 = vmatpush2.msra.mxu0 0.0
        %2207 = vmatprep.mubr.f32.mxu0 0.0
        %2208 = vmatmul.mubr.f32.gmra.mxu0 %v1928
        %v2209 = vpop.f32.mrf.mxu0
        %v2210 = vadd.f32 0.0, %v2209
        %v2211 = vpop.f32.mrf.mxu0
        %v2212 = vadd.f32 0.0, %v2211
        %2213 = vdwg.mxu0
        %2214 = vmatprep.subr.mxu0 0.0
        %2215 = vmatpush1.msra.mxu0 0.0
        %2216 = vmatprep.subr.mxu0 0.0
        %2217 = vmatpush1.msra.mxu0 0.0
        %2218 = vmatprep.subr.mxu0 0.0
        %2219 = vmatpush1.msra.mxu0 0.0
        %2220 = vmatprep.subr.mxu0 0.0
        %2221 = vmatpush1.msra.mxu0 0.0
        %2222 = vmatprep.subr.mxu0 0.0
        %2223 = vmatpush1.msra.mxu0 0.0
        %2224 = vmatprep.subr.mxu0 0.0
        %2225 = vmatpush1.msra.mxu0 0.0
        %2226 = vmatprep.subr.mxu0 0.0
        %2227 = vmatpush1.msra.mxu0 0.0
        %2228 = vmatprep.subr.mxu0 0.0
        %2229 = vmatpush1.msra.mxu0 0.0
        %2230 = vmatprep.subr.mxu0 %v1346
        %2231 = vmatpush1.msra.mxu0 %v1345
        %2232 = vmatprep.subr.mxu0 %v1330
        %2233 = vmatpush1.msra.mxu0 %v1329
        %2234 = vmatprep.subr.mxu0 %v1314
        %2235 = vmatpush1.msra.mxu0 %v1313
        %2236 = vmatprep.subr.mxu0 %v1298
        %2237 = vmatpush1.msra.mxu0 %v1297
        %2238 = vmatprep.subr.mxu0 %v1282
        %2239 = vmatpush1.msra.mxu0 %v1281
        %2240 = vmatprep.subr.mxu0 %v1266
        %2241 = vmatpush1.msra.mxu0 %v1265
        %2242 = vmatprep.subr.mxu0 %v1250
        %2243 = vmatpush1.msra.mxu0 %v1249
        %2244 = vmatprep.subr.mxu0 %v1234
        %2245 = vmatpush1.msra.mxu0 %v1233
        %2246 = vmatprep.subr.mxu0 0.0
        %2247 = vmatpush2.msra.mxu0 0.0
        %2248 = vmatprep.subr.mxu0 0.0
        %2249 = vmatpush2.msra.mxu0 0.0
        %2250 = vmatprep.subr.mxu0 0.0
        %2251 = vmatpush2.msra.mxu0 0.0
        %2252 = vmatprep.subr.mxu0 0.0
        %2253 = vmatpush2.msra.mxu0 0.0
        %2254 = vmatprep.subr.mxu0 0.0
        %2255 = vmatpush2.msra.mxu0 0.0
        %2256 = vmatprep.subr.mxu0 0.0
        %2257 = vmatpush2.msra.mxu0 0.0
        %2258 = vmatprep.subr.mxu0 0.0
        %2259 = vmatpush2.msra.mxu0 0.0
        %2260 = vmatprep.subr.mxu0 0.0
        %2261 = vmatpush2.msra.mxu0 0.0
        %2262 = vmatprep.subr.mxu0 0.0
        %2263 = vmatpush2.msra.mxu0 0.0
        %2264 = vmatprep.subr.mxu0 0.0
        %2265 = vmatpush2.msra.mxu0 0.0
        %2266 = vmatprep.subr.mxu0 0.0
        %2267 = vmatpush2.msra.mxu0 0.0
        %2268 = vmatprep.subr.mxu0 0.0
        %2269 = vmatpush2.msra.mxu0 0.0
        %2270 = vmatprep.subr.mxu0 0.0
        %2271 = vmatpush2.msra.mxu0 0.0
        %2272 = vmatprep.subr.mxu0 0.0
        %2273 = vmatpush2.msra.mxu0 0.0
        %2274 = vmatprep.subr.mxu0 0.0
        %2275 = vmatpush2.msra.mxu0 0.0
        %2276 = vmatprep.subr.mxu0 0.0
        %2277 = vmatpush2.msra.mxu0 0.0
        %2278 = vmatprep.mubr.f32.mxu0 0.0
        %2279 = vmatmul.mubr.f32.gmra.mxu0 %v1928
        %v2280 = vpop.f32.mrf.mxu0
        %v2281 = vadd.f32 0.0, %v2280
        %v2282 = vpop.f32.mrf.mxu0
        %v2283 = vadd.f32 0.0, %v2282
        %2284 = vdwg.mxu0
        %2285 = vmatprep.subr.mxu0 0.0
        %2286 = vmatpush1.msra.mxu0 0.0
        %2287 = vmatprep.subr.mxu0 0.0
        %2288 = vmatpush1.msra.mxu0 0.0
        %2289 = vmatprep.subr.mxu0 0.0
        %2290 = vmatpush1.msra.mxu0 0.0
        %2291 = vmatprep.subr.mxu0 0.0
        %2292 = vmatpush1.msra.mxu0 0.0
        %2293 = vmatprep.subr.mxu0 0.0
        %2294 = vmatpush1.msra.mxu0 0.0
        %2295 = vmatprep.subr.mxu0 0.0
        %2296 = vmatpush1.msra.mxu0 0.0
        %2297 = vmatprep.subr.mxu0 0.0
        %2298 = vmatpush1.msra.mxu0 0.0
        %2299 = vmatprep.subr.mxu0 0.0
        %2300 = vmatpush1.msra.mxu0 0.0
        %2301 = vmatprep.subr.mxu0 %v1348
        %2302 = vmatpush1.msra.mxu0 %v1347
        %2303 = vmatprep.subr.mxu0 %v1332
        %2304 = vmatpush1.msra.mxu0 %v1331
        %2305 = vmatprep.subr.mxu0 %v1316
        %2306 = vmatpush1.msra.mxu0 %v1315
        %2307 = vmatprep.subr.mxu0 %v1300
        %2308 = vmatpush1.msra.mxu0 %v1299
        %2309 = vmatprep.subr.mxu0 %v1284
        %2310 = vmatpush1.msra.mxu0 %v1283
        %2311 = vmatprep.subr.mxu0 %v1268
        %2312 = vmatpush1.msra.mxu0 %v1267
        %2313 = vmatprep.subr.mxu0 %v1252
        %2314 = vmatpush1.msra.mxu0 %v1251
        %2315 = vmatprep.subr.mxu0 %v1236
        %2316 = vmatpush1.msra.mxu0 %v1235
        %2317 = vmatprep.subr.mxu0 0.0
        %2318 = vmatpush2.msra.mxu0 0.0
        %2319 = vmatprep.subr.mxu0 0.0
        %2320 = vmatpush2.msra.mxu0 0.0
        %2321 = vmatprep.subr.mxu0 0.0
        %2322 = vmatpush2.msra.mxu0 0.0
        %2323 = vmatprep.subr.mxu0 0.0
        %2324 = vmatpush2.msra.mxu0 0.0
        %2325 = vmatprep.subr.mxu0 0.0
        %2326 = vmatpush2.msra.mxu0 0.0
        %2327 = vmatprep.subr.mxu0 0.0
        %2328 = vmatpush2.msra.mxu0 0.0
        %2329 = vmatprep.subr.mxu0 0.0
        %2330 = vmatpush2.msra.mxu0 0.0
        %2331 = vmatprep.subr.mxu0 0.0
        %2332 = vmatpush2.msra.mxu0 0.0
        %2333 = vmatprep.subr.mxu0 0.0
        %2334 = vmatpush2.msra.mxu0 0.0
        %2335 = vmatprep.subr.mxu0 0.0
        %2336 = vmatpush2.msra.mxu0 0.0
        %2337 = vmatprep.subr.mxu0 0.0
        %2338 = vmatpush2.msra.mxu0 0.0
        %2339 = vmatprep.subr.mxu0 0.0
        %2340 = vmatpush2.msra.mxu0 0.0
        %2341 = vmatprep.subr.mxu0 0.0
        %2342 = vmatpush2.msra.mxu0 0.0
        %2343 = vmatprep.subr.mxu0 0.0
        %2344 = vmatpush2.msra.mxu0 0.0
        %2345 = vmatprep.subr.mxu0 0.0
        %2346 = vmatpush2.msra.mxu0 0.0
        %2347 = vmatprep.subr.mxu0 0.0
        %2348 = vmatpush2.msra.mxu0 0.0
        %2349 = vmatprep.mubr.f32.mxu0 0.0
        %2350 = vmatmul.mubr.f32.gmra.mxu0 %v1928
        %v2351 = vpop.f32.mrf.mxu0
        %v2352 = vadd.f32 0.0, %v2351
        %v2353 = vpop.f32.mrf.mxu0
        %v2354 = vadd.f32 0.0, %v2353
        %2355 = vdwg.mxu0
        %2356 = vmatprep.subr.mxu0 0.0
        %2357 = vmatpush1.msra.mxu0 0.0
        %2358 = vmatprep.subr.mxu0 0.0
        %2359 = vmatpush1.msra.mxu0 0.0
        %2360 = vmatprep.subr.mxu0 0.0
        %2361 = vmatpush1.msra.mxu0 0.0
        %2362 = vmatprep.subr.mxu0 0.0
        %2363 = vmatpush1.msra.mxu0 0.0
        %2364 = vmatprep.subr.mxu0 0.0
        %2365 = vmatpush1.msra.mxu0 0.0
        %2366 = vmatprep.subr.mxu0 0.0
        %2367 = vmatpush1.msra.mxu0 0.0
        %2368 = vmatprep.subr.mxu0 0.0
        %2369 = vmatpush1.msra.mxu0 0.0
        %2370 = vmatprep.subr.mxu0 0.0
        %2371 = vmatpush1.msra.mxu0 0.0
        %2372 = vmatprep.subr.mxu0 %v1350
        %2373 = vmatpush1.msra.mxu0 %v1349
        %2374 = vmatprep.subr.mxu0 %v1334
        %2375 = vmatpush1.msra.mxu0 %v1333
        %2376 = vmatprep.subr.mxu0 %v1318
        %2377 = vmatpush1.msra.mxu0 %v1317
        %2378 = vmatprep.subr.mxu0 %v1302
        %2379 = vmatpush1.msra.mxu0 %v1301
        %2380 = vmatprep.subr.mxu0 %v1286
        %2381 = vmatpush1.msra.mxu0 %v1285
        %2382 = vmatprep.subr.mxu0 %v1270
        %2383 = vmatpush1.msra.mxu0 %v1269
        %2384 = vmatprep.subr.mxu0 %v1254
        %2385 = vmatpush1.msra.mxu0 %v1253
        %2386 = vmatprep.subr.mxu0 %v1238
        %2387 = vmatpush1.msra.mxu0 %v1237
        %2388 = vmatprep.subr.mxu0 0.0
        %2389 = vmatpush2.msra.mxu0 0.0
        %2390 = vmatprep.subr.mxu0 0.0
        %2391 = vmatpush2.msra.mxu0 0.0
        %2392 = vmatprep.subr.mxu0 0.0
        %2393 = vmatpush2.msra.mxu0 0.0
        %2394 = vmatprep.subr.mxu0 0.0
        %2395 = vmatpush2.msra.mxu0 0.0
        %2396 = vmatprep.subr.mxu0 0.0
        %2397 = vmatpush2.msra.mxu0 0.0
        %2398 = vmatprep.subr.mxu0 0.0
        %2399 = vmatpush2.msra.mxu0 0.0
        %2400 = vmatprep.subr.mxu0 0.0
        %2401 = vmatpush2.msra.mxu0 0.0
        %2402 = vmatprep.subr.mxu0 0.0
        %2403 = vmatpush2.msra.mxu0 0.0
        %2404 = vmatprep.subr.mxu0 0.0
        %2405 = vmatpush2.msra.mxu0 0.0
        %2406 = vmatprep.subr.mxu0 0.0
        %2407 = vmatpush2.msra.mxu0 0.0
        %2408 = vmatprep.subr.mxu0 0.0
        %2409 = vmatpush2.msra.mxu0 0.0
        %2410 = vmatprep.subr.mxu0 0.0
        %2411 = vmatpush2.msra.mxu0 0.0
        %2412 = vmatprep.subr.mxu0 0.0
        %2413 = vmatpush2.msra.mxu0 0.0
        %2414 = vmatprep.subr.mxu0 0.0
        %2415 = vmatpush2.msra.mxu0 0.0
        %2416 = vmatprep.subr.mxu0 0.0
        %2417 = vmatpush2.msra.mxu0 0.0
        %2418 = vmatprep.subr.mxu0 0.0
        %2419 = vmatpush2.msra.mxu0 0.0
        %2420 = vmatprep.mubr.f32.mxu0 0.0
        %2421 = vmatmul.mubr.f32.gmra.mxu0 %v1928
        %v2422 = vpop.f32.mrf.mxu0
        %v2423 = vadd.f32 0.0, %v2422
        %v2424 = vpop.f32.mrf.mxu0
        %v2425 = vadd.f32 0.0, %v2424
        %2426 = vdwg.mxu0
        %2427 = vmatprep.subr.mxu0 0.0
        %2428 = vmatpush1.msra.mxu0 0.0
        %2429 = vmatprep.subr.mxu0 0.0
        %2430 = vmatpush1.msra.mxu0 0.0
        %2431 = vmatprep.subr.mxu0 0.0
        %2432 = vmatpush1.msra.mxu0 0.0
        %2433 = vmatprep.subr.mxu0 0.0
        %2434 = vmatpush1.msra.mxu0 0.0
        %2435 = vmatprep.subr.mxu0 0.0
        %2436 = vmatpush1.msra.mxu0 0.0
        %2437 = vmatprep.subr.mxu0 0.0
        %2438 = vmatpush1.msra.mxu0 0.0
        %2439 = vmatprep.subr.mxu0 0.0
        %2440 = vmatpush1.msra.mxu0 0.0
        %2441 = vmatprep.subr.mxu0 0.0
        %2442 = vmatpush1.msra.mxu0 0.0
        %2443 = vmatprep.subr.mxu0 %v1352
        %2444 = vmatpush1.msra.mxu0 %v1351
        %2445 = vmatprep.subr.mxu0 %v1336
        %2446 = vmatpush1.msra.mxu0 %v1335
        %2447 = vmatprep.subr.mxu0 %v1320
        %2448 = vmatpush1.msra.mxu0 %v1319
        %2449 = vmatprep.subr.mxu0 %v1304
        %2450 = vmatpush1.msra.mxu0 %v1303
        %2451 = vmatprep.subr.mxu0 %v1288
        %2452 = vmatpush1.msra.mxu0 %v1287
        %2453 = vmatprep.subr.mxu0 %v1272
        %2454 = vmatpush1.msra.mxu0 %v1271
        %2455 = vmatprep.subr.mxu0 %v1256
        %2456 = vmatpush1.msra.mxu0 %v1255
        %2457 = vmatprep.subr.mxu0 %v1240
        %2458 = vmatpush1.msra.mxu0 %v1239
        %2459 = vmatprep.subr.mxu0 0.0
        %2460 = vmatpush2.msra.mxu0 0.0
        %2461 = vmatprep.subr.mxu0 0.0
        %2462 = vmatpush2.msra.mxu0 0.0
        %2463 = vmatprep.subr.mxu0 0.0
        %2464 = vmatpush2.msra.mxu0 0.0
        %2465 = vmatprep.subr.mxu0 0.0
        %2466 = vmatpush2.msra.mxu0 0.0
        %2467 = vmatprep.subr.mxu0 0.0
        %2468 = vmatpush2.msra.mxu0 0.0
        %2469 = vmatprep.subr.mxu0 0.0
        %2470 = vmatpush2.msra.mxu0 0.0
        %2471 = vmatprep.subr.mxu0 0.0
        %2472 = vmatpush2.msra.mxu0 0.0
        %2473 = vmatprep.subr.mxu0 0.0
        %2474 = vmatpush2.msra.mxu0 0.0
        %2475 = vmatprep.subr.mxu0 0.0
        %2476 = vmatpush2.msra.mxu0 0.0
        %2477 = vmatprep.subr.mxu0 0.0
        %2478 = vmatpush2.msra.mxu0 0.0
        %2479 = vmatprep.subr.mxu0 0.0
        %2480 = vmatpush2.msra.mxu0 0.0
        %2481 = vmatprep.subr.mxu0 0.0
        %2482 = vmatpush2.msra.mxu0 0.0
        %2483 = vmatprep.subr.mxu0 0.0
        %2484 = vmatpush2.msra.mxu0 0.0
        %2485 = vmatprep.subr.mxu0 0.0
        %2486 = vmatpush2.msra.mxu0 0.0
        %2487 = vmatprep.subr.mxu0 0.0
        %2488 = vmatpush2.msra.mxu0 0.0
        %2489 = vmatprep.subr.mxu0 0.0
        %2490 = vmatpush2.msra.mxu0 0.0
        %2491 = vmatprep.mubr.f32.mxu0 0.0
        %2492 = vmatmul.mubr.f32.gmra.mxu0 %v1928
        %v2493 = vpop.f32.mrf.mxu0
        %v2494 = vadd.f32 0.0, %v2493
        %v2495 = vpop.f32.mrf.mxu0
        %v2496 = vadd.f32 0.0, %v2495
        %2497 = vdwg.mxu0
        %v2514 = vcombine.low %v1997, %v1999
        %v2515 = vcombine.high %v1997, %v1999
        %v2516 = vcombine.low %v2068, %v2070
        %v2517 = vcombine.high %v2068, %v2070
        %v2518 = vcombine.low %v2139, %v2141
        %v2519 = vcombine.high %v2139, %v2141
        %v2520 = vcombine.low %v2210, %v2212
        %v2521 = vcombine.high %v2210, %v2212
        %v2523 = vunpack.c.l.s4 1966171168
        %v2524 = vunpack.c.0.s8 %v2523
        %v2525 = vlaneseq
        %v2526 = vshrl.u32 %v2525, 7
        %v2527 = vsub.s32 %v2524, %v2526
        %v2528 = vrot.slane %v2514, %v2527
        %v2530 = vunpack.c.l.s4 1966171168
        %v2531 = vunpack.c.0.s8 %v2530
        %v2532 = vlaneseq
        %v2533 = vshrl.u32 %v2532, 7
        %v2534 = vsub.s32 %v2531, %v2533
        %v2535 = vrot.slane %v2515, %v2534
        %v2537 = vunpack.c.l.s4 1966171168
        %v2538 = vunpack.c.0.s8 %v2537
        %v2539 = vlaneseq
        %v2540 = vshrl.u32 %v2539, 7
        %v2541 = vsub.s32 %v2538, %v2540
        %v2542 = vrot.slane %v2516, %v2541
        %v2544 = vunpack.c.l.s4 1966171168
        %v2545 = vunpack.c.0.s8 %v2544
        %v2546 = vlaneseq
        %v2547 = vshrl.u32 %v2546, 7
        %v2548 = vsub.s32 %v2545, %v2547
        %v2549 = vrot.slane %v2517, %v2548
        %v2551 = vunpack.c.l.s4 1966171168
        %v2552 = vunpack.c.0.s8 %v2551
        %v2553 = vlaneseq
        %v2554 = vshrl.u32 %v2553, 7
        %v2555 = vsub.s32 %v2552, %v2554
        %v2556 = vrot.slane %v2518, %v2555
        %v2558 = vunpack.c.l.s4 1966171168
        %v2559 = vunpack.c.0.s8 %v2558
        %v2560 = vlaneseq
        %v2561 = vshrl.u32 %v2560, 7
        %v2562 = vsub.s32 %v2559, %v2561
        %v2563 = vrot.slane %v2519, %v2562
        %v2565 = vunpack.c.l.s4 1966171168
        %v2566 = vunpack.c.0.s8 %v2565
        %v2567 = vlaneseq
        %v2568 = vshrl.u32 %v2567, 7
        %v2569 = vsub.s32 %v2566, %v2568
        %v2570 = vrot.slane %v2520, %v2569
        %v2572 = vunpack.c.l.s4 1966171168
        %v2573 = vunpack.c.0.s8 %v2572
        %v2574 = vlaneseq
        %v2575 = vshrl.u32 %v2574, 7
        %v2576 = vsub.s32 %v2573, %v2575
        %v2577 = vrot.slane %v2521, %v2576
        %v2578 = vcombine.low %v2528, %v2542
        %v2579 = vcombine.high %v2528, %v2542
        %v2580 = vcombine.low %v2535, %v2549
        %v2581 = vcombine.high %v2535, %v2549
        %v2582 = vcombine.low %v2556, %v2570
        %v2583 = vcombine.high %v2556, %v2570
        %v2584 = vcombine.low %v2563, %v2577
        %v2585 = vcombine.high %v2563, %v2577
        %v2587 = vunpack.c.l.s4 1966171168
        %v2588 = vunpack.c.0.s8 %v2587
        %v2589 = vlaneseq
        %v2590 = vshrl.u32 %v2589, 7
        %v2591 = vsub.s32 %v2588, %v2590
        %v2592 = vrot.slane %v2578, %v2591
        %v2594 = vunpack.c.l.s4 1966171168
        %v2595 = vunpack.c.0.s8 %v2594
        %v2596 = vlaneseq
        %v2597 = vshrl.u32 %v2596, 7
        %v2598 = vsub.s32 %v2595, %v2597
        %v2599 = vrot.slane %v2580, %v2598
        %v2601 = vunpack.c.l.s4 1966171168
        %v2602 = vunpack.c.0.s8 %v2601
        %v2603 = vlaneseq
        %v2604 = vshrl.u32 %v2603, 7
        %v2605 = vsub.s32 %v2602, %v2604
        %v2606 = vrot.slane %v2579, %v2605
        %v2608 = vunpack.c.l.s4 1966171168
        %v2609 = vunpack.c.0.s8 %v2608
        %v2610 = vlaneseq
        %v2611 = vshrl.u32 %v2610, 7
        %v2612 = vsub.s32 %v2609, %v2611
        %v2613 = vrot.slane %v2581, %v2612
        %v2615 = vunpack.c.l.s4 1966171168
        %v2616 = vunpack.c.0.s8 %v2615
        %v2617 = vlaneseq
        %v2618 = vshrl.u32 %v2617, 7
        %v2619 = vsub.s32 %v2616, %v2618
        %v2620 = vrot.slane %v2582, %v2619
        %v2622 = vunpack.c.l.s4 1966171168
        %v2623 = vunpack.c.0.s8 %v2622
        %v2624 = vlaneseq
        %v2625 = vshrl.u32 %v2624, 7
        %v2626 = vsub.s32 %v2623, %v2625
        %v2627 = vrot.slane %v2584, %v2626
        %v2629 = vunpack.c.l.s4 1966171168
        %v2630 = vunpack.c.0.s8 %v2629
        %v2631 = vlaneseq
        %v2632 = vshrl.u32 %v2631, 7
        %v2633 = vsub.s32 %v2630, %v2632
        %v2634 = vrot.slane %v2583, %v2633
        %v2636 = vunpack.c.l.s4 1966171168
        %v2637 = vunpack.c.0.s8 %v2636
        %v2638 = vlaneseq
        %v2639 = vshrl.u32 %v2638, 7
        %v2640 = vsub.s32 %v2637, %v2639
        %v2641 = vrot.slane %v2585, %v2640
        %v2642 = vcombine.low %v2592, %v2620
        %v2643 = vcombine.high %v2592, %v2620
        %v2644 = vcombine.low %v2599, %v2627
        %v2645 = vcombine.low %v2606, %v2634
        %v2646 = vcombine.high %v2606, %v2634
        %v2647 = vcombine.low %v2613, %v2641
        %v2648 = vcombine.low %v2281, %v2283
        %v2649 = vcombine.high %v2281, %v2283
        %v2650 = vcombine.low %v2352, %v2354
        %v2651 = vcombine.high %v2352, %v2354
        %v2652 = vcombine.low %v2423, %v2425
        %v2653 = vcombine.high %v2423, %v2425
        %v2654 = vcombine.low %v2494, %v2496
        %v2655 = vcombine.high %v2494, %v2496
        %v2657 = vunpack.c.l.s4 1966171168
        %v2658 = vunpack.c.0.s8 %v2657
        %v2659 = vlaneseq
        %v2660 = vshrl.u32 %v2659, 7
        %v2661 = vsub.s32 %v2658, %v2660
        %v2662 = vrot.slane %v2648, %v2661
        %v2664 = vunpack.c.l.s4 1966171168
        %v2665 = vunpack.c.0.s8 %v2664
        %v2666 = vlaneseq
        %v2667 = vshrl.u32 %v2666, 7
        %v2668 = vsub.s32 %v2665, %v2667
        %v2669 = vrot.slane %v2649, %v2668
        %v2671 = vunpack.c.l.s4 1966171168
        %v2672 = vunpack.c.0.s8 %v2671
        %v2673 = vlaneseq
        %v2674 = vshrl.u32 %v2673, 7
        %v2675 = vsub.s32 %v2672, %v2674
        %v2676 = vrot.slane %v2650, %v2675
        %v2678 = vunpack.c.l.s4 1966171168
        %v2679 = vunpack.c.0.s8 %v2678
        %v2680 = vlaneseq
        %v2681 = vshrl.u32 %v2680, 7
        %v2682 = vsub.s32 %v2679, %v2681
        %v2683 = vrot.slane %v2651, %v2682
        %v2685 = vunpack.c.l.s4 1966171168
        %v2686 = vunpack.c.0.s8 %v2685
        %v2687 = vlaneseq
        %v2688 = vshrl.u32 %v2687, 7
        %v2689 = vsub.s32 %v2686, %v2688
        %v2690 = vrot.slane %v2652, %v2689
        %v2692 = vunpack.c.l.s4 1966171168
        %v2693 = vunpack.c.0.s8 %v2692
        %v2694 = vlaneseq
        %v2695 = vshrl.u32 %v2694, 7
        %v2696 = vsub.s32 %v2693, %v2695
        %v2697 = vrot.slane %v2653, %v2696
        %v2699 = vunpack.c.l.s4 1966171168
        %v2700 = vunpack.c.0.s8 %v2699
        %v2701 = vlaneseq
        %v2702 = vshrl.u32 %v2701, 7
        %v2703 = vsub.s32 %v2700, %v2702
        %v2704 = vrot.slane %v2654, %v2703
        %v2706 = vunpack.c.l.s4 1966171168
        %v2707 = vunpack.c.0.s8 %v2706
        %v2708 = vlaneseq
        %v2709 = vshrl.u32 %v2708, 7
        %v2710 = vsub.s32 %v2707, %v2709
        %v2711 = vrot.slane %v2655, %v2710
        %v2712 = vcombine.low %v2662, %v2676
        %v2713 = vcombine.high %v2662, %v2676
        %v2714 = vcombine.low %v2669, %v2683
        %v2715 = vcombine.high %v2669, %v2683
        %v2716 = vcombine.low %v2690, %v2704
        %v2717 = vcombine.high %v2690, %v2704
        %v2718 = vcombine.low %v2697, %v2711
        %v2719 = vcombine.high %v2697, %v2711
        %v2721 = vunpack.c.l.s4 1966171168
        %v2722 = vunpack.c.0.s8 %v2721
        %v2723 = vlaneseq
        %v2724 = vshrl.u32 %v2723, 7
        %v2725 = vsub.s32 %v2722, %v2724
        %v2726 = vrot.slane %v2712, %v2725
        %v2728 = vunpack.c.l.s4 1966171168
        %v2729 = vunpack.c.0.s8 %v2728
        %v2730 = vlaneseq
        %v2731 = vshrl.u32 %v2730, 7
        %v2732 = vsub.s32 %v2729, %v2731
        %v2733 = vrot.slane %v2714, %v2732
        %v2735 = vunpack.c.l.s4 1966171168
        %v2736 = vunpack.c.0.s8 %v2735
        %v2737 = vlaneseq
        %v2738 = vshrl.u32 %v2737, 7
        %v2739 = vsub.s32 %v2736, %v2738
        %v2740 = vrot.slane %v2713, %v2739
        %v2742 = vunpack.c.l.s4 1966171168
        %v2743 = vunpack.c.0.s8 %v2742
        %v2744 = vlaneseq
        %v2745 = vshrl.u32 %v2744, 7
        %v2746 = vsub.s32 %v2743, %v2745
        %v2747 = vrot.slane %v2715, %v2746
        %v2749 = vunpack.c.l.s4 1966171168
        %v2750 = vunpack.c.0.s8 %v2749
        %v2751 = vlaneseq
        %v2752 = vshrl.u32 %v2751, 7
        %v2753 = vsub.s32 %v2750, %v2752
        %v2754 = vrot.slane %v2716, %v2753
        %v2756 = vunpack.c.l.s4 1966171168
        %v2757 = vunpack.c.0.s8 %v2756
        %v2758 = vlaneseq
        %v2759 = vshrl.u32 %v2758, 7
        %v2760 = vsub.s32 %v2757, %v2759
        %v2761 = vrot.slane %v2718, %v2760
        %v2763 = vunpack.c.l.s4 1966171168
        %v2764 = vunpack.c.0.s8 %v2763
        %v2765 = vlaneseq
        %v2766 = vshrl.u32 %v2765, 7
        %v2767 = vsub.s32 %v2764, %v2766
        %v2768 = vrot.slane %v2717, %v2767
        %v2770 = vunpack.c.l.s4 1966171168
        %v2771 = vunpack.c.0.s8 %v2770
        %v2772 = vlaneseq
        %v2773 = vshrl.u32 %v2772, 7
        %v2774 = vsub.s32 %v2771, %v2773
        %v2775 = vrot.slane %v2719, %v2774
        %v2776 = vcombine.low %v2726, %v2754
        %v2777 = vcombine.high %v2726, %v2754
        %v2778 = vcombine.low %v2733, %v2761
        %v2779 = vcombine.low %v2740, %v2768
        %v2780 = vcombine.high %v2740, %v2768
        %v2781 = vcombine.low %v2747, %v2775
        %v2784 = vrot.slane %v1217, 7
        %v2785 = vrot.slane %v1222, 7
        %vm2788 = vcmask 1040384
        %v2789 = vsel %vm2788, 0.0, %v2784
        %v2790 = vsel %vm2788, 0.0, %v2785
        %v2791 = vrot.slane %v1217, 1
        %v2792 = vrot.slane %v1222, 1
        %vm2795 = vcmask 1046528
        %v2796 = vsel %vm2795, %v2791, 0.0
        %v2797 = vsel %vm2795, %v2792, 0.0
        %2798 = vrot.lane.b32.xlu0 %v1217, 64
        %v2799 = vpop.permute.xlu0 %2798
        %2800 = vrot.lane.b32.xlu0 %v1222, 64
        %v2801 = vpop.permute.xlu0 %2800
        %v2804 = vsel %vm1927, %v2789, %v2799
        %v2805 = vsel %vm1927, %v2790, %v2801
        %v2806 = vld [vmem:[%s6] sm:$0xff]
        %v2807 = vld [vmem:[%s6 + $0x8] sm:$0xff]
        %v2808 = vld [vmem:[%s6 + $0x10] sm:$0xff]
        %v2809 = vld [vmem:[%s6 + $0x18] sm:$0xff]
        %v2810 = vld [vmem:[%s6 + $0x20] sm:$0xff]
        %v2811 = vld [vmem:[%s6 + $0x28] sm:$0xff]
        %v2812 = vld [vmem:[%s6 + $0x30] sm:$0xff]
        %v2813 = vld [vmem:[%s6 + $0x38] sm:$0xff]
        %v2814 = vld [vmem:[%s6 + $0x40] sm:$0xff]
        %v2815 = vld [vmem:[%s6 + $0x48] sm:$0xff]
        %v2816 = vld [vmem:[%s6 + $0x50] sm:$0xff]
        %v2817 = vld [vmem:[%s6 + $0x58] sm:$0xff]
        %v2818 = vld [vmem:[%s6 + $0x60] sm:$0xff]
        %v2819 = vld [vmem:[%s6 + $0x68] sm:$0xff]
        %v2820 = vld [vmem:[%s6 + $0x70] sm:$0xff]
        %v2821 = vld [vmem:[%s6 + $0x78] sm:$0xff]
        %v2822 = vld [vmem:[%s6 + $0x80] sm:$0xff]
        %v2823 = vld [vmem:[%s6 + $0x88] sm:$0xff]
        %v2824 = vld [vmem:[%s6 + $0x90] sm:$0xff]
        %v2825 = vld [vmem:[%s6 + $0x98] sm:$0xff]
        %v2826 = vld [vmem:[%s6 + $0xa0] sm:$0xff]
        %v2827 = vld [vmem:[%s6 + $0xa8] sm:$0xff]
        %v2828 = vld [vmem:[%s6 + $0xb0] sm:$0xff]
        %v2829 = vld [vmem:[%s6 + $0xb8] sm:$0xff]
        %v2830 = vld [vmem:[%s7] sm:$0x1]
        %v2832 = vlaneseq
        %v2833 = vshrl.u32 %v2832, 7
        %v2834 = vsub.s32 0, %v2833
        %v2835 = vrot.slane %v2830, %v2834
        %v2838 = vsel %vm1927, %v2796, 0
        %v2841 = vsel %vm1927, %v2797, 0
        %2843 = vmatprep.subr.mxu0 0.0
        %2844 = vmatpush1.msra.mxu0 %v2821
        %2845 = vmatprep.subr.mxu0 0.0
        %2846 = vmatpush1.msra.mxu0 %v2820
        %2847 = vmatprep.subr.mxu0 0.0
        %2848 = vmatpush1.msra.mxu0 %v2819
        %2849 = vmatprep.subr.mxu0 0.0
        %2850 = vmatpush1.msra.mxu0 %v2818
        %2851 = vmatprep.subr.mxu0 0.0
        %2852 = vmatpush1.msra.mxu0 %v2817
        %2853 = vmatprep.subr.mxu0 0.0
        %2854 = vmatpush1.msra.mxu0 %v2816
        %2855 = vmatprep.subr.mxu0 0.0
        %2856 = vmatpush1.msra.mxu0 %v2815
        %2857 = vmatprep.subr.mxu0 0.0
        %2858 = vmatpush1.msra.mxu0 %v2814
        %2859 = vmatprep.subr.mxu0 0.0
        %2860 = vmatpush1.msra.mxu0 %v2813
        %2861 = vmatprep.subr.mxu0 0.0
        %2862 = vmatpush1.msra.mxu0 %v2812
        %2863 = vmatprep.subr.mxu0 0.0
        %2864 = vmatpush1.msra.mxu0 %v2811
        %2865 = vmatprep.subr.mxu0 0.0
        %2866 = vmatpush1.msra.mxu0 %v2810
        %2867 = vmatprep.subr.mxu0 0.0
        %2868 = vmatpush1.msra.mxu0 %v2809
        %2869 = vmatprep.subr.mxu0 0.0
        %2870 = vmatpush1.msra.mxu0 %v2808
        %2871 = vmatprep.subr.mxu0 0.0
        %2872 = vmatpush1.msra.mxu0 %v2807
        %2873 = vmatprep.subr.mxu0 0.0
        %2874 = vmatpush1.msra.mxu0 %v2806
        %2875 = vmatprep.subr.mxu0 0.0
        %2876 = vmatpush2.msra.mxu0 0.0
        %2877 = vmatprep.subr.mxu0 0.0
        %2878 = vmatpush2.msra.mxu0 0.0
        %2879 = vmatprep.subr.mxu0 0.0
        %2880 = vmatpush2.msra.mxu0 0.0
        %2881 = vmatprep.subr.mxu0 0.0
        %2882 = vmatpush2.msra.mxu0 0.0
        %2883 = vmatprep.subr.mxu0 0.0
        %2884 = vmatpush2.msra.mxu0 0.0
        %2885 = vmatprep.subr.mxu0 0.0
        %2886 = vmatpush2.msra.mxu0 0.0
        %2887 = vmatprep.subr.mxu0 0.0
        %2888 = vmatpush2.msra.mxu0 0.0
        %2889 = vmatprep.subr.mxu0 0.0
        %2890 = vmatpush2.msra.mxu0 0.0
        %2891 = vmatprep.subr.mxu0 0.0
        %2892 = vmatpush2.msra.mxu0 %v2829
        %2893 = vmatprep.subr.mxu0 0.0
        %2894 = vmatpush2.msra.mxu0 %v2828
        %2895 = vmatprep.subr.mxu0 0.0
        %2896 = vmatpush2.msra.mxu0 %v2827
        %2897 = vmatprep.subr.mxu0 0.0
        %2898 = vmatpush2.msra.mxu0 %v2826
        %2899 = vmatprep.subr.mxu0 0.0
        %2900 = vmatpush2.msra.mxu0 %v2825
        %2901 = vmatprep.subr.mxu0 0.0
        %2902 = vmatpush2.msra.mxu0 %v2824
        %2903 = vmatprep.subr.mxu0 0.0
        %2904 = vmatpush2.msra.mxu0 %v2823
        %2905 = vmatprep.subr.mxu0 0.0
        %2906 = vmatpush2.msra.mxu0 %v2822
        %2907 = vmatprep.mubr.f32.mxu0 %v2838
        %2908 = vmatmul.mubr.f32.gmra.mxu0 %v2804
        %v2909 = vpop.f32.mrf.mxu0
        %v2910 = vadd.f32 %v2835, %v2909
        %v2911 = vpop.f32.mrf.mxu0
        %2912 = vmatprep.mubr.f32.mxu0 %v2841
        %2913 = vmatmul.mubr.f32.gmra.mxu0 %v2805
        %v2914 = vpop.f32.mrf.mxu0
        %v2915 = vadd.f32 %v2835, %v2914
        %v2916 = vpop.f32.mrf.mxu0
        %2917 = vdwg.mxu0
        %v2918 = vmax.f32 %v2910, 0.0
        %v2919 = vmax.f32 %v2915, 0.0
        %v2920 = vld [vmem:[%s8] sm:$0xff]
        %v2921 = vld [vmem:[%s8 + $0x8] sm:$0xff]
        %v2923 = vsel %vm1381, %v2918, 0
        %v2926 = vsel %vm1381, %v2919, 0
        %2928 = vmatprep.subr.mxu0 0.0
        %2929 = vmatpush1.msra.mxu0 0.0
        %2930 = vmatprep.subr.mxu0 0.0
        %2931 = vmatpush1.msra.mxu0 0.0
        %2932 = vmatprep.subr.mxu0 0.0
        %2933 = vmatpush1.msra.mxu0 0.0
        %2934 = vmatprep.subr.mxu0 0.0
        %2935 = vmatpush1.msra.mxu0 0.0
        %2936 = vmatprep.subr.mxu0 0.0
        %2937 = vmatpush1.msra.mxu0 0.0
        %2938 = vmatprep.subr.mxu0 0.0
        %2939 = vmatpush1.msra.mxu0 0.0
        %2940 = vmatprep.subr.mxu0 0.0
        %2941 = vmatpush1.msra.mxu0 0.0
        %2942 = vmatprep.subr.mxu0 0.0
        %2943 = vmatpush1.msra.mxu0 0.0
        %2944 = vmatprep.subr.mxu0 0.0
        %2945 = vmatpush1.msra.mxu0 0.0
        %2946 = vmatprep.subr.mxu0 0.0
        %2947 = vmatpush1.msra.mxu0 0.0
        %2948 = vmatprep.subr.mxu0 0.0
        %2949 = vmatpush1.msra.mxu0 0.0
        %2950 = vmatprep.subr.mxu0 0.0
        %2951 = vmatpush1.msra.mxu0 0.0
        %2952 = vmatprep.subr.mxu0 0.0
        %2953 = vmatpush1.msra.mxu0 0.0
        %2954 = vmatprep.subr.mxu0 0.0
        %2955 = vmatpush1.msra.mxu0 0.0
        %2956 = vmatprep.subr.mxu0 0.0
        %2957 = vmatpush1.msra.mxu0 %v2921
        %2958 = vmatprep.subr.mxu0 0.0
        %2959 = vmatpush1.msra.mxu0 %v2920
        %2960 = vmatprep.subr.mxu0 0.0
        %2961 = vmatpush2.msra.mxu0 0.0
        %2962 = vmatprep.subr.mxu0 0.0
        %2963 = vmatpush2.msra.mxu0 0.0
        %2964 = vmatprep.subr.mxu0 0.0
        %2965 = vmatpush2.msra.mxu0 0.0
        %2966 = vmatprep.subr.mxu0 0.0
        %2967 = vmatpush2.msra.mxu0 0.0
        %2968 = vmatprep.subr.mxu0 0.0
        %2969 = vmatpush2.msra.mxu0 0.0
        %2970 = vmatprep.subr.mxu0 0.0
        %2971 = vmatpush2.msra.mxu0 0.0
        %2972 = vmatprep.subr.mxu0 0.0
        %2973 = vmatpush2.msra.mxu0 0.0
        %2974 = vmatprep.subr.mxu0 0.0
        %2975 = vmatpush2.msra.mxu0 0.0
        %2976 = vmatprep.subr.mxu0 0.0
        %2977 = vmatpush2.msra.mxu0 0.0
        %2978 = vmatprep.subr.mxu0 0.0
        %2979 = vmatpush2.msra.mxu0 0.0
        %2980 = vmatprep.subr.mxu0 0.0
        %2981 = vmatpush2.msra.mxu0 0.0
        %2982 = vmatprep.subr.mxu0 0.0
        %2983 = vmatpush2.msra.mxu0 0.0
        %2984 = vmatprep.subr.mxu0 0.0
        %2985 = vmatpush2.msra.mxu0 0.0
        %2986 = vmatprep.subr.mxu0 0.0
        %2987 = vmatpush2.msra.mxu0 0.0
        %2988 = vmatprep.subr.mxu0 0.0
        %2989 = vmatpush2.msra.mxu0 0.0
        %2990 = vmatprep.subr.mxu0 0.0
        %2991 = vmatpush2.msra.mxu0 0.0
        %2992 = vmatprep.mubr.f32.mxu0 0.0
        %2993 = vmatmul.mubr.f32.gmra.mxu0 %v2923
        %v2994 = vpop.f32.mrf.mxu0
        %v2995 = vadd.f32 0.0, %v2994
        %v2996 = vpop.f32.mrf.mxu0
        %2997 = vmatprep.mubr.f32.mxu0 0.0
        %2998 = vmatmul.mubr.f32.gmra.mxu0 %v2926
        %v2999 = vpop.f32.mrf.mxu0
        %v3000 = vadd.f32 0.0, %v2999
        %v3001 = vpop.f32.mrf.mxu0
        %3002 = vdwg.mxu0
        %v3003 = vsub.f32 0.0, %v2995
        %v3004 = vsub.f32 0.0, %v3000
        %v3005 = vmul.f32 %v3003, 1.442695
        %v3006 = vpow.pop %v3005
        %v3007 = vmul.f32 %v3004, 1.442695
        %v3008 = vpow.pop %v3007
        %v3009 = vadd.f32 %v3006, 1.0
        %v3010 = vadd.f32 %v3008, 1.0
        %v3011 = vrcp.pop %v3009
        %v3012 = vmul.f32 1.0, %v3011
        %v3013 = vrcp.pop %v3010
        %v3014 = vmul.f32 1.0, %v3013
        %v3016 = vsel %vm1927, %v3012, 0
        %v3019 = vsel %vm1927, %v3014, 0
        %3021 = vmatprep.subr.mxu0 0.0
        %3022 = vmatpush1.msra.mxu0 0.0
        %3023 = vmatprep.subr.mxu0 0.0
        %3024 = vmatpush1.msra.mxu0 0.0
        %3025 = vmatprep.subr.mxu0 0.0
        %3026 = vmatpush1.msra.mxu0 0.0
        %3027 = vmatprep.subr.mxu0 0.0
        %3028 = vmatpush1.msra.mxu0 0.0
        %3029 = vmatprep.subr.mxu0 0.0
        %3030 = vmatpush1.msra.mxu0 0.0
        %3031 = vmatprep.subr.mxu0 0.0
        %3032 = vmatpush1.msra.mxu0 0.0
        %3033 = vmatprep.subr.mxu0 0.0
        %3034 = vmatpush1.msra.mxu0 0.0
        %3035 = vmatprep.subr.mxu0 0.0
        %3036 = vmatpush1.msra.mxu0 0.0
        %3037 = vmatprep.subr.mxu0 %v1338
        %3038 = vmatpush1.msra.mxu0 %v1337
        %3039 = vmatprep.subr.mxu0 %v1322
        %3040 = vmatpush1.msra.mxu0 %v1321
        %3041 = vmatprep.subr.mxu0 %v1306
        %3042 = vmatpush1.msra.mxu0 %v1305
        %3043 = vmatprep.subr.mxu0 %v1290
        %3044 = vmatpush1.msra.mxu0 %v1289
        %3045 = vmatprep.subr.mxu0 %v1274
        %3046 = vmatpush1.msra.mxu0 %v1273
        %3047 = vmatprep.subr.mxu0 %v1258
        %3048 = vmatpush1.msra.mxu0 %v1257
        %3049 = vmatprep.subr.mxu0 %v1242
        %3050 = vmatpush1.msra.mxu0 %v1241
        %3051 = vmatprep.subr.mxu0 %v1226
        %3052 = vmatpush1.msra.mxu0 %v1225
        %3053 = vmatprep.subr.mxu0 0.0
        %3054 = vmatpush2.msra.mxu0 0.0
        %3055 = vmatprep.subr.mxu0 0.0
        %3056 = vmatpush2.msra.mxu0 0.0
        %3057 = vmatprep.subr.mxu0 0.0
        %3058 = vmatpush2.msra.mxu0 0.0
        %3059 = vmatprep.subr.mxu0 0.0
        %3060 = vmatpush2.msra.mxu0 0.0
        %3061 = vmatprep.subr.mxu0 0.0
        %3062 = vmatpush2.msra.mxu0 0.0
        %3063 = vmatprep.subr.mxu0 0.0
        %3064 = vmatpush2.msra.mxu0 0.0
        %3065 = vmatprep.subr.mxu0 0.0
        %3066 = vmatpush2.msra.mxu0 0.0
        %3067 = vmatprep.subr.mxu0 0.0
        %3068 = vmatpush2.msra.mxu0 0.0
        %3069 = vmatprep.subr.mxu0 0.0
        %3070 = vmatpush2.msra.mxu0 0.0
        %3071 = vmatprep.subr.mxu0 0.0
        %3072 = vmatpush2.msra.mxu0 0.0
        %3073 = vmatprep.subr.mxu0 0.0
        %3074 = vmatpush2.msra.mxu0 0.0
        %3075 = vmatprep.subr.mxu0 0.0
        %3076 = vmatpush2.msra.mxu0 0.0
        %3077 = vmatprep.subr.mxu0 0.0
        %3078 = vmatpush2.msra.mxu0 0.0
        %3079 = vmatprep.subr.mxu0 0.0
        %3080 = vmatpush2.msra.mxu0 0.0
        %3081 = vmatprep.subr.mxu0 0.0
        %3082 = vmatpush2.msra.mxu0 0.0
        %3083 = vmatprep.subr.mxu0 0.0
        %3084 = vmatpush2.msra.mxu0 0.0
        %3085 = vmatprep.mubr.f32.mxu0 0.0
        %3086 = vmatmul.mubr.f32.gmra.mxu0 %v3016
        %v3087 = vpop.f32.mrf.mxu0
        %v3088 = vadd.f32 0.0, %v3087
        %v3089 = vpop.f32.mrf.mxu0
        %v3090 = vadd.f32 0.0, %v3089
        %3091 = vmatprep.mubr.f32.mxu0 0.0
        %3092 = vmatmul.mubr.f32.gmra.mxu0 %v3019
        %v3093 = vpop.f32.mrf.mxu0
        %v3094 = vadd.f32 0.0, %v3093
        %v3095 = vpop.f32.mrf.mxu0
        %v3096 = vadd.f32 0.0, %v3095
        %3097 = vdwg.mxu0
        %3098 = vmatprep.subr.mxu0 0.0
        %3099 = vmatpush1.msra.mxu0 0.0
        %3100 = vmatprep.subr.mxu0 0.0
        %3101 = vmatpush1.msra.mxu0 0.0
        %3102 = vmatprep.subr.mxu0 0.0
        %3103 = vmatpush1.msra.mxu0 0.0
        %3104 = vmatprep.subr.mxu0 0.0
        %3105 = vmatpush1.msra.mxu0 0.0
        %3106 = vmatprep.subr.mxu0 0.0
        %3107 = vmatpush1.msra.mxu0 0.0
        %3108 = vmatprep.subr.mxu0 0.0
        %3109 = vmatpush1.msra.mxu0 0.0
        %3110 = vmatprep.subr.mxu0 0.0
        %3111 = vmatpush1.msra.mxu0 0.0
        %3112 = vmatprep.subr.mxu0 0.0
        %3113 = vmatpush1.msra.mxu0 0.0
        %3114 = vmatprep.subr.mxu0 %v1340
        %3115 = vmatpush1.msra.mxu0 %v1339
        %3116 = vmatprep.subr.mxu0 %v1324
        %3117 = vmatpush1.msra.mxu0 %v1323
        %3118 = vmatprep.subr.mxu0 %v1308
        %3119 = vmatpush1.msra.mxu0 %v1307
        %3120 = vmatprep.subr.mxu0 %v1292
        %3121 = vmatpush1.msra.mxu0 %v1291
        %3122 = vmatprep.subr.mxu0 %v1276
        %3123 = vmatpush1.msra.mxu0 %v1275
        %3124 = vmatprep.subr.mxu0 %v1260
        %3125 = vmatpush1.msra.mxu0 %v1259
        %3126 = vmatprep.subr.mxu0 %v1244
        %3127 = vmatpush1.msra.mxu0 %v1243
        %3128 = vmatprep.subr.mxu0 %v1228
        %3129 = vmatpush1.msra.mxu0 %v1227
        %3130 = vmatprep.subr.mxu0 0.0
        %3131 = vmatpush2.msra.mxu0 0.0
        %3132 = vmatprep.subr.mxu0 0.0
        %3133 = vmatpush2.msra.mxu0 0.0
        %3134 = vmatprep.subr.mxu0 0.0
        %3135 = vmatpush2.msra.mxu0 0.0
        %3136 = vmatprep.subr.mxu0 0.0
        %3137 = vmatpush2.msra.mxu0 0.0
        %3138 = vmatprep.subr.mxu0 0.0
        %3139 = vmatpush2.msra.mxu0 0.0
        %3140 = vmatprep.subr.mxu0 0.0
        %3141 = vmatpush2.msra.mxu0 0.0
        %3142 = vmatprep.subr.mxu0 0.0
        %3143 = vmatpush2.msra.mxu0 0.0
        %3144 = vmatprep.subr.mxu0 0.0
        %3145 = vmatpush2.msra.mxu0 0.0
        %3146 = vmatprep.subr.mxu0 0.0
        %3147 = vmatpush2.msra.mxu0 0.0
        %3148 = vmatprep.subr.mxu0 0.0
        %3149 = vmatpush2.msra.mxu0 0.0
        %3150 = vmatprep.subr.mxu0 0.0
        %3151 = vmatpush2.msra.mxu0 0.0
        %3152 = vmatprep.subr.mxu0 0.0
        %3153 = vmatpush2.msra.mxu0 0.0
        %3154 = vmatprep.subr.mxu0 0.0
        %3155 = vmatpush2.msra.mxu0 0.0
        %3156 = vmatprep.subr.mxu0 0.0
        %3157 = vmatpush2.msra.mxu0 0.0
        %3158 = vmatprep.subr.mxu0 0.0
        %3159 = vmatpush2.msra.mxu0 0.0
        %3160 = vmatprep.subr.mxu0 0.0
        %3161 = vmatpush2.msra.mxu0 0.0
        %3162 = vmatprep.mubr.f32.mxu0 0.0
        %3163 = vmatmul.mubr.f32.gmra.mxu0 %v3016
        %v3164 = vpop.f32.mrf.mxu0
        %v3165 = vadd.f32 0.0, %v3164
        %v3166 = vpop.f32.mrf.mxu0
        %v3167 = vadd.f32 0.0, %v3166
        %3168 = vmatprep.mubr.f32.mxu0 0.0
        %3169 = vmatmul.mubr.f32.gmra.mxu0 %v3019
        %v3170 = vpop.f32.mrf.mxu0
        %v3171 = vadd.f32 0.0, %v3170
        %v3172 = vpop.f32.mrf.mxu0
        %v3173 = vadd.f32 0.0, %v3172
        %3174 = vdwg.mxu0
        %3175 = vmatprep.subr.mxu0 0.0
        %3176 = vmatpush1.msra.mxu0 0.0
        %3177 = vmatprep.subr.mxu0 0.0
        %3178 = vmatpush1.msra.mxu0 0.0
        %3179 = vmatprep.subr.mxu0 0.0
        %3180 = vmatpush1.msra.mxu0 0.0
        %3181 = vmatprep.subr.mxu0 0.0
        %3182 = vmatpush1.msra.mxu0 0.0
        %3183 = vmatprep.subr.mxu0 0.0
        %3184 = vmatpush1.msra.mxu0 0.0
        %3185 = vmatprep.subr.mxu0 0.0
        %3186 = vmatpush1.msra.mxu0 0.0
        %3187 = vmatprep.subr.mxu0 0.0
        %3188 = vmatpush1.msra.mxu0 0.0
        %3189 = vmatprep.subr.mxu0 0.0
        %3190 = vmatpush1.msra.mxu0 0.0
        %3191 = vmatprep.subr.mxu0 %v1342
        %3192 = vmatpush1.msra.mxu0 %v1341
        %3193 = vmatprep.subr.mxu0 %v1326
        %3194 = vmatpush1.msra.mxu0 %v1325
        %3195 = vmatprep.subr.mxu0 %v1310
        %3196 = vmatpush1.msra.mxu0 %v1309
        %3197 = vmatprep.subr.mxu0 %v1294
        %3198 = vmatpush1.msra.mxu0 %v1293
        %3199 = vmatprep.subr.mxu0 %v1278
        %3200 = vmatpush1.msra.mxu0 %v1277
        %3201 = vmatprep.subr.mxu0 %v1262
        %3202 = vmatpush1.msra.mxu0 %v1261
        %3203 = vmatprep.subr.mxu0 %v1246
        %3204 = vmatpush1.msra.mxu0 %v1245
        %3205 = vmatprep.subr.mxu0 %v1230
        %3206 = vmatpush1.msra.mxu0 %v1229
        %3207 = vmatprep.subr.mxu0 0.0
        %3208 = vmatpush2.msra.mxu0 0.0
        %3209 = vmatprep.subr.mxu0 0.0
        %3210 = vmatpush2.msra.mxu0 0.0
        %3211 = vmatprep.subr.mxu0 0.0
        %3212 = vmatpush2.msra.mxu0 0.0
        %3213 = vmatprep.subr.mxu0 0.0
        %3214 = vmatpush2.msra.mxu0 0.0
        %3215 = vmatprep.subr.mxu0 0.0
        %3216 = vmatpush2.msra.mxu0 0.0
        %3217 = vmatprep.subr.mxu0 0.0
        %3218 = vmatpush2.msra.mxu0 0.0
        %3219 = vmatprep.subr.mxu0 0.0
        %3220 = vmatpush2.msra.mxu0 0.0
        %3221 = vmatprep.subr.mxu0 0.0
        %3222 = vmatpush2.msra.mxu0 0.0
        %3223 = vmatprep.subr.mxu0 0.0
        %3224 = vmatpush2.msra.mxu0 0.0
        %3225 = vmatprep.subr.mxu0 0.0
        %3226 = vmatpush2.msra.mxu0 0.0
        %3227 = vmatprep.subr.mxu0 0.0
        %3228 = vmatpush2.msra.mxu0 0.0
        %3229 = vmatprep.subr.mxu0 0.0
        %3230 = vmatpush2.msra.mxu0 0.0
        %3231 = vmatprep.subr.mxu0 0.0
        %3232 = vmatpush2.msra.mxu0 0.0
        %3233 = vmatprep.subr.mxu0 0.0
        %3234 = vmatpush2.msra.mxu0 0.0
        %3235 = vmatprep.subr.mxu0 0.0
        %3236 = vmatpush2.msra.mxu0 0.0
        %3237 = vmatprep.subr.mxu0 0.0
        %3238 = vmatpush2.msra.mxu0 0.0
        %3239 = vmatprep.mubr.f32.mxu0 0.0
        %3240 = vmatmul.mubr.f32.gmra.mxu0 %v3016
        %v3241 = vpop.f32.mrf.mxu0
        %v3242 = vadd.f32 0.0, %v3241
        %v3243 = vpop.f32.mrf.mxu0
        %v3244 = vadd.f32 0.0, %v3243
        %3245 = vmatprep.mubr.f32.mxu0 0.0
        %3246 = vmatmul.mubr.f32.gmra.mxu0 %v3019
        %v3247 = vpop.f32.mrf.mxu0
        %v3248 = vadd.f32 0.0, %v3247
        %v3249 = vpop.f32.mrf.mxu0
        %v3250 = vadd.f32 0.0, %v3249
        %3251 = vdwg.mxu0
        %3252 = vmatprep.subr.mxu0 0.0
        %3253 = vmatpush1.msra.mxu0 0.0
        %3254 = vmatprep.subr.mxu0 0.0
        %3255 = vmatpush1.msra.mxu0 0.0
        %3256 = vmatprep.subr.mxu0 0.0
        %3257 = vmatpush1.msra.mxu0 0.0
        %3258 = vmatprep.subr.mxu0 0.0
        %3259 = vmatpush1.msra.mxu0 0.0
        %3260 = vmatprep.subr.mxu0 0.0
        %3261 = vmatpush1.msra.mxu0 0.0
        %3262 = vmatprep.subr.mxu0 0.0
        %3263 = vmatpush1.msra.mxu0 0.0
        %3264 = vmatprep.subr.mxu0 0.0
        %3265 = vmatpush1.msra.mxu0 0.0
        %3266 = vmatprep.subr.mxu0 0.0
        %3267 = vmatpush1.msra.mxu0 0.0
        %3268 = vmatprep.subr.mxu0 %v1344
        %3269 = vmatpush1.msra.mxu0 %v1343
        %3270 = vmatprep.subr.mxu0 %v1328
        %3271 = vmatpush1.msra.mxu0 %v1327
        %3272 = vmatprep.subr.mxu0 %v1312
        %3273 = vmatpush1.msra.mxu0 %v1311
        %3274 = vmatprep.subr.mxu0 %v1296
        %3275 = vmatpush1.msra.mxu0 %v1295
        %3276 = vmatprep.subr.mxu0 %v1280
        %3277 = vmatpush1.msra.mxu0 %v1279
        %3278 = vmatprep.subr.mxu0 %v1264
        %3279 = vmatpush1.msra.mxu0 %v1263
        %3280 = vmatprep.subr.mxu0 %v1248
        %3281 = vmatpush1.msra.mxu0 %v1247
        %3282 = vmatprep.subr.mxu0 %v1232
        %3283 = vmatpush1.msra.mxu0 %v1231
        %3284 = vmatprep.subr.mxu0 0.0
        %3285 = vmatpush2.msra.mxu0 0.0
        %3286 = vmatprep.subr.mxu0 0.0
        %3287 = vmatpush2.msra.mxu0 0.0
        %3288 = vmatprep.subr.mxu0 0.0
        %3289 = vmatpush2.msra.mxu0 0.0
        %3290 = vmatprep.subr.mxu0 0.0
        %3291 = vmatpush2.msra.mxu0 0.0
        %3292 = vmatprep.subr.mxu0 0.0
        %3293 = vmatpush2.msra.mxu0 0.0
        %3294 = vmatprep.subr.mxu0 0.0
        %3295 = vmatpush2.msra.mxu0 0.0
        %3296 = vmatprep.subr.mxu0 0.0
        %3297 = vmatpush2.msra.mxu0 0.0
        %3298 = vmatprep.subr.mxu0 0.0
        %3299 = vmatpush2.msra.mxu0 0.0
        %3300 = vmatprep.subr.mxu0 0.0
        %3301 = vmatpush2.msra.mxu0 0.0
        %3302 = vmatprep.subr.mxu0 0.0
        %3303 = vmatpush2.msra.mxu0 0.0
        %3304 = vmatprep.subr.mxu0 0.0
        %3305 = vmatpush2.msra.mxu0 0.0
        %3306 = vmatprep.subr.mxu0 0.0
        %3307 = vmatpush2.msra.mxu0 0.0
        %3308 = vmatprep.subr.mxu0 0.0
        %3309 = vmatpush2.msra.mxu0 0.0
        %3310 = vmatprep.subr.mxu0 0.0
        %3311 = vmatpush2.msra.mxu0 0.0
        %3312 = vmatprep.subr.mxu0 0.0
        %3313 = vmatpush2.msra.mxu0 0.0
        %3314 = vmatprep.subr.mxu0 0.0
        %3315 = vmatpush2.msra.mxu0 0.0
        %3316 = vmatprep.mubr.f32.mxu0 0.0
        %3317 = vmatmul.mubr.f32.gmra.mxu0 %v3016
        %v3318 = vpop.f32.mrf.mxu0
        %v3319 = vadd.f32 0.0, %v3318
        %v3320 = vpop.f32.mrf.mxu0
        %v3321 = vadd.f32 0.0, %v3320
        %3322 = vmatprep.mubr.f32.mxu0 0.0
        %3323 = vmatmul.mubr.f32.gmra.mxu0 %v3019
        %v3324 = vpop.f32.mrf.mxu0
        %v3325 = vadd.f32 0.0, %v3324
        %v3326 = vpop.f32.mrf.mxu0
        %v3327 = vadd.f32 0.0, %v3326
        %3328 = vdwg.mxu0
        %3329 = vmatprep.subr.mxu0 0.0
        %3330 = vmatpush1.msra.mxu0 0.0
        %3331 = vmatprep.subr.mxu0 0.0
        %3332 = vmatpush1.msra.mxu0 0.0
        %3333 = vmatprep.subr.mxu0 0.0
        %3334 = vmatpush1.msra.mxu0 0.0
        %3335 = vmatprep.subr.mxu0 0.0
        %3336 = vmatpush1.msra.mxu0 0.0
        %3337 = vmatprep.subr.mxu0 0.0
        %3338 = vmatpush1.msra.mxu0 0.0
        %3339 = vmatprep.subr.mxu0 0.0
        %3340 = vmatpush1.msra.mxu0 0.0
        %3341 = vmatprep.subr.mxu0 0.0
        %3342 = vmatpush1.msra.mxu0 0.0
        %3343 = vmatprep.subr.mxu0 0.0
        %3344 = vmatpush1.msra.mxu0 0.0
        %3345 = vmatprep.subr.mxu0 %v1346
        %3346 = vmatpush1.msra.mxu0 %v1345
        %3347 = vmatprep.subr.mxu0 %v1330
        %3348 = vmatpush1.msra.mxu0 %v1329
        %3349 = vmatprep.subr.mxu0 %v1314
        %3350 = vmatpush1.msra.mxu0 %v1313
        %3351 = vmatprep.subr.mxu0 %v1298
        %3352 = vmatpush1.msra.mxu0 %v1297
        %3353 = vmatprep.subr.mxu0 %v1282
        %3354 = vmatpush1.msra.mxu0 %v1281
        %3355 = vmatprep.subr.mxu0 %v1266
        %3356 = vmatpush1.msra.mxu0 %v1265
        %3357 = vmatprep.subr.mxu0 %v1250
        %3358 = vmatpush1.msra.mxu0 %v1249
        %3359 = vmatprep.subr.mxu0 %v1234
        %3360 = vmatpush1.msra.mxu0 %v1233
        %3361 = vmatprep.subr.mxu0 0.0
        %3362 = vmatpush2.msra.mxu0 0.0
        %3363 = vmatprep.subr.mxu0 0.0
        %3364 = vmatpush2.msra.mxu0 0.0
        %3365 = vmatprep.subr.mxu0 0.0
        %3366 = vmatpush2.msra.mxu0 0.0
        %3367 = vmatprep.subr.mxu0 0.0
        %3368 = vmatpush2.msra.mxu0 0.0
        %3369 = vmatprep.subr.mxu0 0.0
        %3370 = vmatpush2.msra.mxu0 0.0
        %3371 = vmatprep.subr.mxu0 0.0
        %3372 = vmatpush2.msra.mxu0 0.0
        %3373 = vmatprep.subr.mxu0 0.0
        %3374 = vmatpush2.msra.mxu0 0.0
        %3375 = vmatprep.subr.mxu0 0.0
        %3376 = vmatpush2.msra.mxu0 0.0
        %3377 = vmatprep.subr.mxu0 0.0
        %3378 = vmatpush2.msra.mxu0 0.0
        %3379 = vmatprep.subr.mxu0 0.0
        %3380 = vmatpush2.msra.mxu0 0.0
        %3381 = vmatprep.subr.mxu0 0.0
        %3382 = vmatpush2.msra.mxu0 0.0
        %3383 = vmatprep.subr.mxu0 0.0
        %3384 = vmatpush2.msra.mxu0 0.0
        %3385 = vmatprep.subr.mxu0 0.0
        %3386 = vmatpush2.msra.mxu0 0.0
        %3387 = vmatprep.subr.mxu0 0.0
        %3388 = vmatpush2.msra.mxu0 0.0
        %3389 = vmatprep.subr.mxu0 0.0
        %3390 = vmatpush2.msra.mxu0 0.0
        %3391 = vmatprep.subr.mxu0 0.0
        %3392 = vmatpush2.msra.mxu0 0.0
        %3393 = vmatprep.mubr.f32.mxu0 0.0
        %3394 = vmatmul.mubr.f32.gmra.mxu0 %v3016
        %v3395 = vpop.f32.mrf.mxu0
        %v3396 = vadd.f32 0.0, %v3395
        %v3397 = vpop.f32.mrf.mxu0
        %v3398 = vadd.f32 0.0, %v3397
        %3399 = vmatprep.mubr.f32.mxu0 0.0
        %3400 = vmatmul.mubr.f32.gmra.mxu0 %v3019
        %v3401 = vpop.f32.mrf.mxu0
        %v3402 = vadd.f32 0.0, %v3401
        %v3403 = vpop.f32.mrf.mxu0
        %v3404 = vadd.f32 0.0, %v3403
        %3405 = vdwg.mxu0
        %3406 = vmatprep.subr.mxu0 0.0
        %3407 = vmatpush1.msra.mxu0 0.0
        %3408 = vmatprep.subr.mxu0 0.0
        %3409 = vmatpush1.msra.mxu0 0.0
        %3410 = vmatprep.subr.mxu0 0.0
        %3411 = vmatpush1.msra.mxu0 0.0
        %3412 = vmatprep.subr.mxu0 0.0
        %3413 = vmatpush1.msra.mxu0 0.0
        %3414 = vmatprep.subr.mxu0 0.0
        %3415 = vmatpush1.msra.mxu0 0.0
        %3416 = vmatprep.subr.mxu0 0.0
        %3417 = vmatpush1.msra.mxu0 0.0
        %3418 = vmatprep.subr.mxu0 0.0
        %3419 = vmatpush1.msra.mxu0 0.0
        %3420 = vmatprep.subr.mxu0 0.0
        %3421 = vmatpush1.msra.mxu0 0.0
        %3422 = vmatprep.subr.mxu0 %v1348
        %3423 = vmatpush1.msra.mxu0 %v1347
        %3424 = vmatprep.subr.mxu0 %v1332
        %3425 = vmatpush1.msra.mxu0 %v1331
        %3426 = vmatprep.subr.mxu0 %v1316
        %3427 = vmatpush1.msra.mxu0 %v1315
        %3428 = vmatprep.subr.mxu0 %v1300
        %3429 = vmatpush1.msra.mxu0 %v1299
        %3430 = vmatprep.subr.mxu0 %v1284
        %3431 = vmatpush1.msra.mxu0 %v1283
        %3432 = vmatprep.subr.mxu0 %v1268
        %3433 = vmatpush1.msra.mxu0 %v1267
        %3434 = vmatprep.subr.mxu0 %v1252
        %3435 = vmatpush1.msra.mxu0 %v1251
        %3436 = vmatprep.subr.mxu0 %v1236
        %3437 = vmatpush1.msra.mxu0 %v1235
        %3438 = vmatprep.subr.mxu0 0.0
        %3439 = vmatpush2.msra.mxu0 0.0
        %3440 = vmatprep.subr.mxu0 0.0
        %3441 = vmatpush2.msra.mxu0 0.0
        %3442 = vmatprep.subr.mxu0 0.0
        %3443 = vmatpush2.msra.mxu0 0.0
        %3444 = vmatprep.subr.mxu0 0.0
        %3445 = vmatpush2.msra.mxu0 0.0
        %3446 = vmatprep.subr.mxu0 0.0
        %3447 = vmatpush2.msra.mxu0 0.0
        %3448 = vmatprep.subr.mxu0 0.0
        %3449 = vmatpush2.msra.mxu0 0.0
        %3450 = vmatprep.subr.mxu0 0.0
        %3451 = vmatpush2.msra.mxu0 0.0
        %3452 = vmatprep.subr.mxu0 0.0
        %3453 = vmatpush2.msra.mxu0 0.0
        %3454 = vmatprep.subr.mxu0 0.0
        %3455 = vmatpush2.msra.mxu0 0.0
        %3456 = vmatprep.subr.mxu0 0.0
        %3457 = vmatpush2.msra.mxu0 0.0
        %3458 = vmatprep.subr.mxu0 0.0
        %3459 = vmatpush2.msra.mxu0 0.0
        %3460 = vmatprep.subr.mxu0 0.0
        %3461 = vmatpush2.msra.mxu0 0.0
        %3462 = vmatprep.subr.mxu0 0.0
        %3463 = vmatpush2.msra.mxu0 0.0
        %3464 = vmatprep.subr.mxu0 0.0
        %3465 = vmatpush2.msra.mxu0 0.0
        %3466 = vmatprep.subr.mxu0 0.0
        %3467 = vmatpush2.msra.mxu0 0.0
        %3468 = vmatprep.subr.mxu0 0.0
        %3469 = vmatpush2.msra.mxu0 0.0
        %3470 = vmatprep.mubr.f32.mxu0 0.0
        %3471 = vmatmul.mubr.f32.gmra.mxu0 %v3016
        %v3472 = vpop.f32.mrf.mxu0
        %v3473 = vadd.f32 0.0, %v3472
        %v3474 = vpop.f32.mrf.mxu0
        %v3475 = vadd.f32 0.0, %v3474
        %3476 = vmatprep.mubr.f32.mxu0 0.0
        %3477 = vmatmul.mubr.f32.gmra.mxu0 %v3019
        %v3478 = vpop.f32.mrf.mxu0
        %v3479 = vadd.f32 0.0, %v3478
        %v3480 = vpop.f32.mrf.mxu0
        %v3481 = vadd.f32 0.0, %v3480
        %3482 = vdwg.mxu0
        %3483 = vmatprep.subr.mxu0 0.0
        %3484 = vmatpush1.msra.mxu0 0.0
        %3485 = vmatprep.subr.mxu0 0.0
        %3486 = vmatpush1.msra.mxu0 0.0
        %3487 = vmatprep.subr.mxu0 0.0
        %3488 = vmatpush1.msra.mxu0 0.0
        %3489 = vmatprep.subr.mxu0 0.0
        %3490 = vmatpush1.msra.mxu0 0.0
        %3491 = vmatprep.subr.mxu0 0.0
        %3492 = vmatpush1.msra.mxu0 0.0
        %3493 = vmatprep.subr.mxu0 0.0
        %3494 = vmatpush1.msra.mxu0 0.0
        %3495 = vmatprep.subr.mxu0 0.0
        %3496 = vmatpush1.msra.mxu0 0.0
        %3497 = vmatprep.subr.mxu0 0.0
        %3498 = vmatpush1.msra.mxu0 0.0
        %3499 = vmatprep.subr.mxu0 %v1350
        %3500 = vmatpush1.msra.mxu0 %v1349
        %3501 = vmatprep.subr.mxu0 %v1334
        %3502 = vmatpush1.msra.mxu0 %v1333
        %3503 = vmatprep.subr.mxu0 %v1318
        %3504 = vmatpush1.msra.mxu0 %v1317
        %3505 = vmatprep.subr.mxu0 %v1302
        %3506 = vmatpush1.msra.mxu0 %v1301
        %3507 = vmatprep.subr.mxu0 %v1286
        %3508 = vmatpush1.msra.mxu0 %v1285
        %3509 = vmatprep.subr.mxu0 %v1270
        %3510 = vmatpush1.msra.mxu0 %v1269
        %3511 = vmatprep.subr.mxu0 %v1254
        %3512 = vmatpush1.msra.mxu0 %v1253
        %3513 = vmatprep.subr.mxu0 %v1238
        %3514 = vmatpush1.msra.mxu0 %v1237
        %3515 = vmatprep.subr.mxu0 0.0
        %3516 = vmatpush2.msra.mxu0 0.0
        %3517 = vmatprep.subr.mxu0 0.0
        %3518 = vmatpush2.msra.mxu0 0.0
        %3519 = vmatprep.subr.mxu0 0.0
        %3520 = vmatpush2.msra.mxu0 0.0
        %3521 = vmatprep.subr.mxu0 0.0
        %3522 = vmatpush2.msra.mxu0 0.0
        %3523 = vmatprep.subr.mxu0 0.0
        %3524 = vmatpush2.msra.mxu0 0.0
        %3525 = vmatprep.subr.mxu0 0.0
        %3526 = vmatpush2.msra.mxu0 0.0
        %3527 = vmatprep.subr.mxu0 0.0
        %3528 = vmatpush2.msra.mxu0 0.0
        %3529 = vmatprep.subr.mxu0 0.0
        %3530 = vmatpush2.msra.mxu0 0.0
        %3531 = vmatprep.subr.mxu0 0.0
        %3532 = vmatpush2.msra.mxu0 0.0
        %3533 = vmatprep.subr.mxu0 0.0
        %3534 = vmatpush2.msra.mxu0 0.0
        %3535 = vmatprep.subr.mxu0 0.0
        %3536 = vmatpush2.msra.mxu0 0.0
        %3537 = vmatprep.subr.mxu0 0.0
        %3538 = vmatpush2.msra.mxu0 0.0
        %3539 = vmatprep.subr.mxu0 0.0
        %3540 = vmatpush2.msra.mxu0 0.0
        %3541 = vmatprep.subr.mxu0 0.0
        %3542 = vmatpush2.msra.mxu0 0.0
        %3543 = vmatprep.subr.mxu0 0.0
        %3544 = vmatpush2.msra.mxu0 0.0
        %3545 = vmatprep.subr.mxu0 0.0
        %3546 = vmatpush2.msra.mxu0 0.0
        %3547 = vmatprep.mubr.f32.mxu0 0.0
        %3548 = vmatmul.mubr.f32.gmra.mxu0 %v3016
        %v3549 = vpop.f32.mrf.mxu0
        %v3550 = vadd.f32 0.0, %v3549
        %v3551 = vpop.f32.mrf.mxu0
        %v3552 = vadd.f32 0.0, %v3551
        %3553 = vmatprep.mubr.f32.mxu0 0.0
        %3554 = vmatmul.mubr.f32.gmra.mxu0 %v3019
        %v3555 = vpop.f32.mrf.mxu0
        %v3556 = vadd.f32 0.0, %v3555
        %v3557 = vpop.f32.mrf.mxu0
        %v3558 = vadd.f32 0.0, %v3557
        %3559 = vdwg.mxu0
        %3560 = vmatprep.subr.mxu0 0.0
        %3561 = vmatpush1.msra.mxu0 0.0
        %3562 = vmatprep.subr.mxu0 0.0
        %3563 = vmatpush1.msra.mxu0 0.0
        %3564 = vmatprep.subr.mxu0 0.0
        %3565 = vmatpush1.msra.mxu0 0.0
        %3566 = vmatprep.subr.mxu0 0.0
        %3567 = vmatpush1.msra.mxu0 0.0
        %3568 = vmatprep.subr.mxu0 0.0
        %3569 = vmatpush1.msra.mxu0 0.0
        %3570 = vmatprep.subr.mxu0 0.0
        %3571 = vmatpush1.msra.mxu0 0.0
        %3572 = vmatprep.subr.mxu0 0.0
        %3573 = vmatpush1.msra.mxu0 0.0
        %3574 = vmatprep.subr.mxu0 0.0
        %3575 = vmatpush1.msra.mxu0 0.0
        %3576 = vmatprep.subr.mxu0 %v1352
        %3577 = vmatpush1.msra.mxu0 %v1351
        %3578 = vmatprep.subr.mxu0 %v1336
        %3579 = vmatpush1.msra.mxu0 %v1335
        %3580 = vmatprep.subr.mxu0 %v1320
        %3581 = vmatpush1.msra.mxu0 %v1319
        %3582 = vmatprep.subr.mxu0 %v1304
        %3583 = vmatpush1.msra.mxu0 %v1303
        %3584 = vmatprep.subr.mxu0 %v1288
        %3585 = vmatpush1.msra.mxu0 %v1287
        %3586 = vmatprep.subr.mxu0 %v1272
        %3587 = vmatpush1.msra.mxu0 %v1271
        %3588 = vmatprep.subr.mxu0 %v1256
        %3589 = vmatpush1.msra.mxu0 %v1255
        %3590 = vmatprep.subr.mxu0 %v1240
        %3591 = vmatpush1.msra.mxu0 %v1239
        %3592 = vmatprep.subr.mxu0 0.0
        %3593 = vmatpush2.msra.mxu0 0.0
        %3594 = vmatprep.subr.mxu0 0.0
        %3595 = vmatpush2.msra.mxu0 0.0
        %3596 = vmatprep.subr.mxu0 0.0
        %3597 = vmatpush2.msra.mxu0 0.0
        %3598 = vmatprep.subr.mxu0 0.0
        %3599 = vmatpush2.msra.mxu0 0.0
        %3600 = vmatprep.subr.mxu0 0.0
        %3601 = vmatpush2.msra.mxu0 0.0
        %3602 = vmatprep.subr.mxu0 0.0
        %3603 = vmatpush2.msra.mxu0 0.0
        %3604 = vmatprep.subr.mxu0 0.0
        %3605 = vmatpush2.msra.mxu0 0.0
        %3606 = vmatprep.subr.mxu0 0.0
        %3607 = vmatpush2.msra.mxu0 0.0
        %3608 = vmatprep.subr.mxu0 0.0
        %3609 = vmatpush2.msra.mxu0 0.0
        %3610 = vmatprep.subr.mxu0 0.0
        %3611 = vmatpush2.msra.mxu0 0.0
        %3612 = vmatprep.subr.mxu0 0.0
        %3613 = vmatpush2.msra.mxu0 0.0
        %3614 = vmatprep.subr.mxu0 0.0
        %3615 = vmatpush2.msra.mxu0 0.0
        %3616 = vmatprep.subr.mxu0 0.0
        %3617 = vmatpush2.msra.mxu0 0.0
        %3618 = vmatprep.subr.mxu0 0.0
        %3619 = vmatpush2.msra.mxu0 0.0
        %3620 = vmatprep.subr.mxu0 0.0
        %3621 = vmatpush2.msra.mxu0 0.0
        %3622 = vmatprep.subr.mxu0 0.0
        %3623 = vmatpush2.msra.mxu0 0.0
        %3624 = vmatprep.mubr.f32.mxu0 0.0
        %3625 = vmatmul.mubr.f32.gmra.mxu0 %v3016
        %v3626 = vpop.f32.mrf.mxu0
        %v3627 = vadd.f32 0.0, %v3626
        %v3628 = vpop.f32.mrf.mxu0
        %v3629 = vadd.f32 0.0, %v3628
        %3630 = vmatprep.mubr.f32.mxu0 0.0
        %3631 = vmatmul.mubr.f32.gmra.mxu0 %v3019
        %v3632 = vpop.f32.mrf.mxu0
        %v3633 = vadd.f32 0.0, %v3632
        %v3634 = vpop.f32.mrf.mxu0
        %v3635 = vadd.f32 0.0, %v3634
        %3636 = vdwg.mxu0
        %v3637 = vmul.f32 %v337, %v3088
        %v3638 = vmul.f32 %v338, %v3090
        %v3639 = vmul.f32 %v339, %v3165
        %v3640 = vmul.f32 %v340, %v3167
        %v3641 = vmul.f32 %v341, %v3242
        %v3642 = vmul.f32 %v342, %v3244
        %v3643 = vmul.f32 %v343, %v3319
        %v3644 = vmul.f32 %v344, %v3321
        %v3645 = vmul.f32 %v345, %v3396
        %v3646 = vmul.f32 %v346, %v3398
        %v3647 = vmul.f32 %v347, %v3473
        %v3648 = vmul.f32 %v348, %v3475
        %v3649 = vmul.f32 %v349, %v3550
        %v3650 = vmul.f32 %v350, %v3552
        %v3651 = vmul.f32 %v351, %v3627
        %v3652 = vmul.f32 %v352, %v3629
        %v3653 = vmul.f32 %v353, %v3094
        %v3654 = vmul.f32 %v354, %v3096
        %v3655 = vmul.f32 %v355, %v3171
        %v3656 = vmul.f32 %v356, %v3173
        %v3657 = vmul.f32 %v357, %v3248
        %v3658 = vmul.f32 %v358, %v3250
        %v3659 = vmul.f32 %v359, %v3325
        %v3660 = vmul.f32 %v360, %v3327
        %v3661 = vmul.f32 %v361, %v3402
        %v3662 = vmul.f32 %v362, %v3404
        %v3663 = vmul.f32 %v363, %v3479
        %v3664 = vmul.f32 %v364, %v3481
        %v3665 = vmul.f32 %v365, %v3556
        %v3666 = vmul.f32 %v366, %v3558
        %v3667 = vmul.f32 %v367, %v3633
        %v3668 = vmul.f32 %v368, %v3635
        %v3669 = vlaneseq
        %v3670 = vshrl.u32 %v3669, 7
        %v3671 = vsub.s32 0, %v3670
        %v3672 = vrot.slane %v2645, %v3671
        %v3673 = vlaneseq
        %v3674 = vshrl.u32 %v3673, 7
        %v3675 = vsub.s32 1, %v3674
        %v3676 = vrot.slane %v2645, %v3675
        %v3677 = vlaneseq
        %v3678 = vshrl.u32 %v3677, 7
        %v3679 = vsub.s32 2, %v3678
        %v3680 = vrot.slane %v2645, %v3679
        %v3681 = vlaneseq
        %v3682 = vshrl.u32 %v3681, 7
        %v3683 = vsub.s32 3, %v3682
        %v3684 = vrot.slane %v2645, %v3683
        %v3685 = vlaneseq
        %v3686 = vshrl.u32 %v3685, 7
        %v3687 = vsub.s32 4, %v3686
        %v3688 = vrot.slane %v2645, %v3687
        %v3689 = vlaneseq
        %v3690 = vshrl.u32 %v3689, 7
        %v3691 = vsub.s32 5, %v3690
        %v3692 = vrot.slane %v2645, %v3691
        %v3693 = vlaneseq
        %v3694 = vshrl.u32 %v3693, 7
        %v3695 = vsub.s32 6, %v3694
        %v3696 = vrot.slane %v2645, %v3695
        %v3697 = vlaneseq
        %v3698 = vshrl.u32 %v3697, 7
        %v3699 = vsub.s32 7, %v3698
        %v3700 = vrot.slane %v2645, %v3699
        %v3701 = vlaneseq
        %v3702 = vshrl.u32 %v3701, 7
        %v3703 = vsub.s32 0, %v3702
        %v3704 = vrot.slane %v2779, %v3703
        %v3705 = vlaneseq
        %v3706 = vshrl.u32 %v3705, 7
        %v3707 = vsub.s32 1, %v3706
        %v3708 = vrot.slane %v2779, %v3707
        %v3709 = vlaneseq
        %v3710 = vshrl.u32 %v3709, 7
        %v3711 = vsub.s32 2, %v3710
        %v3712 = vrot.slane %v2779, %v3711
        %v3713 = vlaneseq
        %v3714 = vshrl.u32 %v3713, 7
        %v3715 = vsub.s32 3, %v3714
        %v3716 = vrot.slane %v2779, %v3715
        %v3717 = vlaneseq
        %v3718 = vshrl.u32 %v3717, 7
        %v3719 = vsub.s32 4, %v3718
        %v3720 = vrot.slane %v2779, %v3719
        %v3721 = vlaneseq
        %v3722 = vshrl.u32 %v3721, 7
        %v3723 = vsub.s32 5, %v3722
        %v3724 = vrot.slane %v2779, %v3723
        %v3725 = vlaneseq
        %v3726 = vshrl.u32 %v3725, 7
        %v3727 = vsub.s32 6, %v3726
        %v3728 = vrot.slane %v2779, %v3727
        %v3729 = vlaneseq
        %v3730 = vshrl.u32 %v3729, 7
        %v3731 = vsub.s32 7, %v3730
        %v3732 = vrot.slane %v2779, %v3731
        %v3733 = vlaneseq
        %v3734 = vshrl.u32 %v3733, 7
        %v3735 = vsub.s32 0, %v3734
        %v3736 = vrot.slane %v2644, %v3735
        %v3737 = vlaneseq
        %v3738 = vshrl.u32 %v3737, 7
        %v3739 = vsub.s32 1, %v3738
        %v3740 = vrot.slane %v2644, %v3739
        %v3741 = vlaneseq
        %v3742 = vshrl.u32 %v3741, 7
        %v3743 = vsub.s32 2, %v3742
        %v3744 = vrot.slane %v2644, %v3743
        %v3745 = vlaneseq
        %v3746 = vshrl.u32 %v3745, 7
        %v3747 = vsub.s32 3, %v3746
        %v3748 = vrot.slane %v2644, %v3747
        %v3749 = vlaneseq
        %v3750 = vshrl.u32 %v3749, 7
        %v3751 = vsub.s32 4, %v3750
        %v3752 = vrot.slane %v2644, %v3751
        %v3753 = vlaneseq
        %v3754 = vshrl.u32 %v3753, 7
        %v3755 = vsub.s32 5, %v3754
        %v3756 = vrot.slane %v2644, %v3755
        %v3757 = vlaneseq
        %v3758 = vshrl.u32 %v3757, 7
        %v3759 = vsub.s32 6, %v3758
        %v3760 = vrot.slane %v2644, %v3759
        %v3761 = vlaneseq
        %v3762 = vshrl.u32 %v3761, 7
        %v3763 = vsub.s32 7, %v3762
        %v3764 = vrot.slane %v2644, %v3763
        %v3765 = vlaneseq
        %v3766 = vshrl.u32 %v3765, 7
        %v3767 = vsub.s32 0, %v3766
        %v3768 = vrot.slane %v2778, %v3767
        %v3769 = vlaneseq
        %v3770 = vshrl.u32 %v3769, 7
        %v3771 = vsub.s32 1, %v3770
        %v3772 = vrot.slane %v2778, %v3771
        %v3773 = vlaneseq
        %v3774 = vshrl.u32 %v3773, 7
        %v3775 = vsub.s32 2, %v3774
        %v3776 = vrot.slane %v2778, %v3775
        %v3777 = vlaneseq
        %v3778 = vshrl.u32 %v3777, 7
        %v3779 = vsub.s32 3, %v3778
        %v3780 = vrot.slane %v2778, %v3779
        %v3781 = vlaneseq
        %v3782 = vshrl.u32 %v3781, 7
        %v3783 = vsub.s32 4, %v3782
        %v3784 = vrot.slane %v2778, %v3783
        %v3785 = vlaneseq
        %v3786 = vshrl.u32 %v3785, 7
        %v3787 = vsub.s32 5, %v3786
        %v3788 = vrot.slane %v2778, %v3787
        %v3789 = vlaneseq
        %v3790 = vshrl.u32 %v3789, 7
        %v3791 = vsub.s32 6, %v3790
        %v3792 = vrot.slane %v2778, %v3791
        %v3793 = vlaneseq
        %v3794 = vshrl.u32 %v3793, 7
        %v3795 = vsub.s32 7, %v3794
        %v3796 = vrot.slane %v2778, %v3795
        %v3829 = vmul.f32 %v3672, %v3637
        %v3830 = vmul.f32 %v3676, %v3638
        %v3831 = vmul.f32 %v3680, %v3639
        %v3832 = vmul.f32 %v3684, %v3640
        %v3833 = vmul.f32 %v3688, %v3641
        %v3834 = vmul.f32 %v3692, %v3642
        %v3835 = vmul.f32 %v3696, %v3643
        %v3836 = vmul.f32 %v3700, %v3644
        %v3837 = vmul.f32 %v3704, %v3645
        %v3838 = vmul.f32 %v3708, %v3646
        %v3839 = vmul.f32 %v3712, %v3647
        %v3840 = vmul.f32 %v3716, %v3648
        %v3841 = vmul.f32 %v3720, %v3649
        %v3842 = vmul.f32 %v3724, %v3650
        %v3843 = vmul.f32 %v3728, %v3651
        %v3844 = vmul.f32 %v3732, %v3652
        %v3845 = vmul.f32 %v3736, %v3653
        %v3846 = vmul.f32 %v3740, %v3654
        %v3847 = vmul.f32 %v3744, %v3655
        %v3848 = vmul.f32 %v3748, %v3656
        %v3849 = vmul.f32 %v3752, %v3657
        %v3850 = vmul.f32 %v3756, %v3658
        %v3851 = vmul.f32 %v3760, %v3659
        %v3852 = vmul.f32 %v3764, %v3660
        %v3853 = vmul.f32 %v3768, %v3661
        %v3854 = vmul.f32 %v3772, %v3662
        %v3855 = vmul.f32 %v3776, %v3663
        %v3856 = vmul.f32 %v3780, %v3664
        %v3857 = vmul.f32 %v3784, %v3665
        %v3858 = vmul.f32 %v3788, %v3666
        %v3859 = vmul.f32 %v3792, %v3667
        %v3860 = vmul.f32 %v3796, %v3668
        %v3893 = vrot.slane %v3637, 7
        %v3894 = vrot.slane %v3638, 7
        %v3895 = vrot.slane %v3639, 7
        %v3896 = vrot.slane %v3640, 7
        %v3897 = vrot.slane %v3641, 7
        %v3898 = vrot.slane %v3642, 7
        %v3899 = vrot.slane %v3643, 7
        %v3900 = vrot.slane %v3644, 7
        %v3901 = vrot.slane %v3645, 7
        %v3902 = vrot.slane %v3646, 7
        %v3903 = vrot.slane %v3647, 7
        %v3904 = vrot.slane %v3648, 7
        %v3905 = vrot.slane %v3649, 7
        %v3906 = vrot.slane %v3650, 7
        %v3907 = vrot.slane %v3651, 7
        %v3908 = vrot.slane %v3652, 7
        %v3909 = vrot.slane %v3653, 7
        %v3910 = vrot.slane %v3654, 7
        %v3911 = vrot.slane %v3655, 7
        %v3912 = vrot.slane %v3656, 7
        %v3913 = vrot.slane %v3657, 7
        %v3914 = vrot.slane %v3658, 7
        %v3915 = vrot.slane %v3659, 7
        %v3916 = vrot.slane %v3660, 7
        %v3917 = vrot.slane %v3661, 7
        %v3918 = vrot.slane %v3662, 7
        %v3919 = vrot.slane %v3663, 7
        %v3920 = vrot.slane %v3664, 7
        %v3921 = vrot.slane %v3665, 7
        %v3922 = vrot.slane %v3666, 7
        %v3923 = vrot.slane %v3667, 7
        %v3924 = vrot.slane %v3668, 7
        %v3957 = vsel %vm2788, 0.0, %v3893
        %v3958 = vsel %vm2788, 0.0, %v3894
        %v3959 = vsel %vm2788, 0.0, %v3895
        %v3960 = vsel %vm2788, 0.0, %v3896
        %v3961 = vsel %vm2788, 0.0, %v3897
        %v3962 = vsel %vm2788, 0.0, %v3898
        %v3963 = vsel %vm2788, 0.0, %v3899
        %v3964 = vsel %vm2788, 0.0, %v3900
        %v3965 = vsel %vm2788, 0.0, %v3901
        %v3966 = vsel %vm2788, 0.0, %v3902
        %v3967 = vsel %vm2788, 0.0, %v3903
        %v3968 = vsel %vm2788, 0.0, %v3904
        %v3969 = vsel %vm2788, 0.0, %v3905
        %v3970 = vsel %vm2788, 0.0, %v3906
        %v3971 = vsel %vm2788, 0.0, %v3907
        %v3972 = vsel %vm2788, 0.0, %v3908
        %v3973 = vsel %vm2788, 0.0, %v3909
        %v3974 = vsel %vm2788, 0.0, %v3910
        %v3975 = vsel %vm2788, 0.0, %v3911
        %v3976 = vsel %vm2788, 0.0, %v3912
        %v3977 = vsel %vm2788, 0.0, %v3913
        %v3978 = vsel %vm2788, 0.0, %v3914
        %v3979 = vsel %vm2788, 0.0, %v3915
        %v3980 = vsel %vm2788, 0.0, %v3916
        %v3981 = vsel %vm2788, 0.0, %v3917
        %v3982 = vsel %vm2788, 0.0, %v3918
        %v3983 = vsel %vm2788, 0.0, %v3919
        %v3984 = vsel %vm2788, 0.0, %v3920
        %v3985 = vsel %vm2788, 0.0, %v3921
        %v3986 = vsel %vm2788, 0.0, %v3922
        %v3987 = vsel %vm2788, 0.0, %v3923
        %v3988 = vsel %vm2788, 0.0, %v3924
        %v3989 = vlaneseq
        %v3990 = vshrl.u32 %v3989, 7
        %v3991 = vsub.s32 0, %v3990
        %v3992 = vrot.slane %v2642, %v3991
        %v3993 = vlaneseq
        %v3994 = vshrl.u32 %v3993, 7
        %v3995 = vsub.s32 1, %v3994
        %v3996 = vrot.slane %v2642, %v3995
        %v3997 = vlaneseq
        %v3998 = vshrl.u32 %v3997, 7
        %v3999 = vsub.s32 2, %v3998
        %v4000 = vrot.slane %v2642, %v3999
        %v4001 = vlaneseq
        %v4002 = vshrl.u32 %v4001, 7
        %v4003 = vsub.s32 3, %v4002
        %v4004 = vrot.slane %v2642, %v4003
        %v4005 = vlaneseq
        %v4006 = vshrl.u32 %v4005, 7
        %v4007 = vsub.s32 4, %v4006
        %v4008 = vrot.slane %v2642, %v4007
        %v4009 = vlaneseq
        %v4010 = vshrl.u32 %v4009, 7
        %v4011 = vsub.s32 5, %v4010
        %v4012 = vrot.slane %v2642, %v4011
        %v4013 = vlaneseq
        %v4014 = vshrl.u32 %v4013, 7
        %v4015 = vsub.s32 6, %v4014
        %v4016 = vrot.slane %v2642, %v4015
        %v4017 = vlaneseq
        %v4018 = vshrl.u32 %v4017, 7
        %v4019 = vsub.s32 7, %v4018
        %v4020 = vrot.slane %v2642, %v4019
        %v4021 = vlaneseq
        %v4022 = vshrl.u32 %v4021, 7
        %v4023 = vsub.s32 0, %v4022
        %v4024 = vrot.slane %v2776, %v4023
        %v4025 = vlaneseq
        %v4026 = vshrl.u32 %v4025, 7
        %v4027 = vsub.s32 1, %v4026
        %v4028 = vrot.slane %v2776, %v4027
        %v4029 = vlaneseq
        %v4030 = vshrl.u32 %v4029, 7
        %v4031 = vsub.s32 2, %v4030
        %v4032 = vrot.slane %v2776, %v4031
        %v4033 = vlaneseq
        %v4034 = vshrl.u32 %v4033, 7
        %v4035 = vsub.s32 3, %v4034
        %v4036 = vrot.slane %v2776, %v4035
        %v4037 = vlaneseq
        %v4038 = vshrl.u32 %v4037, 7
        %v4039 = vsub.s32 4, %v4038
        %v4040 = vrot.slane %v2776, %v4039
        %v4041 = vlaneseq
        %v4042 = vshrl.u32 %v4041, 7
        %v4043 = vsub.s32 5, %v4042
        %v4044 = vrot.slane %v2776, %v4043
        %v4045 = vlaneseq
        %v4046 = vshrl.u32 %v4045, 7
        %v4047 = vsub.s32 6, %v4046
        %v4048 = vrot.slane %v2776, %v4047
        %v4049 = vlaneseq
        %v4050 = vshrl.u32 %v4049, 7
        %v4051 = vsub.s32 7, %v4050
        %v4052 = vrot.slane %v2776, %v4051
        %v4053 = vlaneseq
        %v4054 = vshrl.u32 %v4053, 7
        %v4055 = vsub.s32 0, %v4054
        %v4056 = vrot.slane %v2646, %v4055
        %v4057 = vlaneseq
        %v4058 = vshrl.u32 %v4057, 7
        %v4059 = vsub.s32 1, %v4058
        %v4060 = vrot.slane %v2646, %v4059
        %v4061 = vlaneseq
        %v4062 = vshrl.u32 %v4061, 7
        %v4063 = vsub.s32 2, %v4062
        %v4064 = vrot.slane %v2646, %v4063
        %v4065 = vlaneseq
        %v4066 = vshrl.u32 %v4065, 7
        %v4067 = vsub.s32 3, %v4066
        %v4068 = vrot.slane %v2646, %v4067
        %v4069 = vlaneseq
        %v4070 = vshrl.u32 %v4069, 7
        %v4071 = vsub.s32 4, %v4070
        %v4072 = vrot.slane %v2646, %v4071
        %v4073 = vlaneseq
        %v4074 = vshrl.u32 %v4073, 7
        %v4075 = vsub.s32 5, %v4074
        %v4076 = vrot.slane %v2646, %v4075
        %v4077 = vlaneseq
        %v4078 = vshrl.u32 %v4077, 7
        %v4079 = vsub.s32 6, %v4078
        %v4080 = vrot.slane %v2646, %v4079
        %v4081 = vlaneseq
        %v4082 = vshrl.u32 %v4081, 7
        %v4083 = vsub.s32 7, %v4082
        %v4084 = vrot.slane %v2646, %v4083
        %v4085 = vlaneseq
        %v4086 = vshrl.u32 %v4085, 7
        %v4087 = vsub.s32 0, %v4086
        %v4088 = vrot.slane %v2780, %v4087
        %v4089 = vlaneseq
        %v4090 = vshrl.u32 %v4089, 7
        %v4091 = vsub.s32 1, %v4090
        %v4092 = vrot.slane %v2780, %v4091
        %v4093 = vlaneseq
        %v4094 = vshrl.u32 %v4093, 7
        %v4095 = vsub.s32 2, %v4094
        %v4096 = vrot.slane %v2780, %v4095
        %v4097 = vlaneseq
        %v4098 = vshrl.u32 %v4097, 7
        %v4099 = vsub.s32 3, %v4098
        %v4100 = vrot.slane %v2780, %v4099
        %v4101 = vlaneseq
        %v4102 = vshrl.u32 %v4101, 7
        %v4103 = vsub.s32 4, %v4102
        %v4104 = vrot.slane %v2780, %v4103
        %v4105 = vlaneseq
        %v4106 = vshrl.u32 %v4105, 7
        %v4107 = vsub.s32 5, %v4106
        %v4108 = vrot.slane %v2780, %v4107
        %v4109 = vlaneseq
        %v4110 = vshrl.u32 %v4109, 7
        %v4111 = vsub.s32 6, %v4110
        %v4112 = vrot.slane %v2780, %v4111
        %v4113 = vlaneseq
        %v4114 = vshrl.u32 %v4113, 7
        %v4115 = vsub.s32 7, %v4114
        %v4116 = vrot.slane %v2780, %v4115
        %v4149 = vmul.f32 %v3992, %v3957
        %v4150 = vmul.f32 %v3996, %v3958
        %v4151 = vmul.f32 %v4000, %v3959
        %v4152 = vmul.f32 %v4004, %v3960
        %v4153 = vmul.f32 %v4008, %v3961
        %v4154 = vmul.f32 %v4012, %v3962
        %v4155 = vmul.f32 %v4016, %v3963
        %v4156 = vmul.f32 %v4020, %v3964
        %v4157 = vmul.f32 %v4024, %v3965
        %v4158 = vmul.f32 %v4028, %v3966
        %v4159 = vmul.f32 %v4032, %v3967
        %v4160 = vmul.f32 %v4036, %v3968
        %v4161 = vmul.f32 %v4040, %v3969
        %v4162 = vmul.f32 %v4044, %v3970
        %v4163 = vmul.f32 %v4048, %v3971
        %v4164 = vmul.f32 %v4052, %v3972
        %v4165 = vmul.f32 %v4056, %v3973
        %v4166 = vmul.f32 %v4060, %v3974
        %v4167 = vmul.f32 %v4064, %v3975
        %v4168 = vmul.f32 %v4068, %v3976
        %v4169 = vmul.f32 %v4072, %v3977
        %v4170 = vmul.f32 %v4076, %v3978
        %v4171 = vmul.f32 %v4080, %v3979
        %v4172 = vmul.f32 %v4084, %v3980
        %v4173 = vmul.f32 %v4088, %v3981
        %v4174 = vmul.f32 %v4092, %v3982
        %v4175 = vmul.f32 %v4096, %v3983
        %v4176 = vmul.f32 %v4100, %v3984
        %v4177 = vmul.f32 %v4104, %v3985
        %v4178 = vmul.f32 %v4108, %v3986
        %v4179 = vmul.f32 %v4112, %v3987
        %v4180 = vmul.f32 %v4116, %v3988
        %v4181 = vadd.f32 %v3829, %v4149
        %v4182 = vadd.f32 %v3830, %v4150
        %v4183 = vadd.f32 %v3831, %v4151
        %v4184 = vadd.f32 %v3832, %v4152
        %v4185 = vadd.f32 %v3833, %v4153
        %v4186 = vadd.f32 %v3834, %v4154
        %v4187 = vadd.f32 %v3835, %v4155
        %v4188 = vadd.f32 %v3836, %v4156
        %v4189 = vadd.f32 %v3837, %v4157
        %v4190 = vadd.f32 %v3838, %v4158
        %v4191 = vadd.f32 %v3839, %v4159
        %v4192 = vadd.f32 %v3840, %v4160
        %v4193 = vadd.f32 %v3841, %v4161
        %v4194 = vadd.f32 %v3842, %v4162
        %v4195 = vadd.f32 %v3843, %v4163
        %v4196 = vadd.f32 %v3844, %v4164
        %v4197 = vadd.f32 %v3845, %v4165
        %v4198 = vadd.f32 %v3846, %v4166
        %v4199 = vadd.f32 %v3847, %v4167
        %v4200 = vadd.f32 %v3848, %v4168
        %v4201 = vadd.f32 %v3849, %v4169
        %v4202 = vadd.f32 %v3850, %v4170
        %v4203 = vadd.f32 %v3851, %v4171
        %v4204 = vadd.f32 %v3852, %v4172
        %v4205 = vadd.f32 %v3853, %v4173
        %v4206 = vadd.f32 %v3854, %v4174
        %v4207 = vadd.f32 %v3855, %v4175
        %v4208 = vadd.f32 %v3856, %v4176
        %v4209 = vadd.f32 %v3857, %v4177
        %v4210 = vadd.f32 %v3858, %v4178
        %v4211 = vadd.f32 %v3859, %v4179
        %v4212 = vadd.f32 %v3860, %v4180
        %v4213 = vrot.slane %v3637, 1
        %v4214 = vrot.slane %v3638, 1
        %v4215 = vrot.slane %v3639, 1
        %v4216 = vrot.slane %v3640, 1
        %v4217 = vrot.slane %v3641, 1
        %v4218 = vrot.slane %v3642, 1
        %v4219 = vrot.slane %v3643, 1
        %v4220 = vrot.slane %v3644, 1
        %v4221 = vrot.slane %v3645, 1
        %v4222 = vrot.slane %v3646, 1
        %v4223 = vrot.slane %v3647, 1
        %v4224 = vrot.slane %v3648, 1
        %v4225 = vrot.slane %v3649, 1
        %v4226 = vrot.slane %v3650, 1
        %v4227 = vrot.slane %v3651, 1
        %v4228 = vrot.slane %v3652, 1
        %v4229 = vrot.slane %v3653, 1
        %v4230 = vrot.slane %v3654, 1
        %v4231 = vrot.slane %v3655, 1
        %v4232 = vrot.slane %v3656, 1
        %v4233 = vrot.slane %v3657, 1
        %v4234 = vrot.slane %v3658, 1
        %v4235 = vrot.slane %v3659, 1
        %v4236 = vrot.slane %v3660, 1
        %v4237 = vrot.slane %v3661, 1
        %v4238 = vrot.slane %v3662, 1
        %v4239 = vrot.slane %v3663, 1
        %v4240 = vrot.slane %v3664, 1
        %v4241 = vrot.slane %v3665, 1
        %v4242 = vrot.slane %v3666, 1
        %v4243 = vrot.slane %v3667, 1
        %v4244 = vrot.slane %v3668, 1
        %v4277 = vsel %vm2795, %v4213, 0.0
        %v4278 = vsel %vm2795, %v4214, 0.0
        %v4279 = vsel %vm2795, %v4215, 0.0
        %v4280 = vsel %vm2795, %v4216, 0.0
        %v4281 = vsel %vm2795, %v4217, 0.0
        %v4282 = vsel %vm2795, %v4218, 0.0
        %v4283 = vsel %vm2795, %v4219, 0.0
        %v4284 = vsel %vm2795, %v4220, 0.0
        %v4285 = vsel %vm2795, %v4221, 0.0
        %v4286 = vsel %vm2795, %v4222, 0.0
        %v4287 = vsel %vm2795, %v4223, 0.0
        %v4288 = vsel %vm2795, %v4224, 0.0
        %v4289 = vsel %vm2795, %v4225, 0.0
        %v4290 = vsel %vm2795, %v4226, 0.0
        %v4291 = vsel %vm2795, %v4227, 0.0
        %v4292 = vsel %vm2795, %v4228, 0.0
        %v4293 = vsel %vm2795, %v4229, 0.0
        %v4294 = vsel %vm2795, %v4230, 0.0
        %v4295 = vsel %vm2795, %v4231, 0.0
        %v4296 = vsel %vm2795, %v4232, 0.0
        %v4297 = vsel %vm2795, %v4233, 0.0
        %v4298 = vsel %vm2795, %v4234, 0.0
        %v4299 = vsel %vm2795, %v4235, 0.0
        %v4300 = vsel %vm2795, %v4236, 0.0
        %v4301 = vsel %vm2795, %v4237, 0.0
        %v4302 = vsel %vm2795, %v4238, 0.0
        %v4303 = vsel %vm2795, %v4239, 0.0
        %v4304 = vsel %vm2795, %v4240, 0.0
        %v4305 = vsel %vm2795, %v4241, 0.0
        %v4306 = vsel %vm2795, %v4242, 0.0
        %v4307 = vsel %vm2795, %v4243, 0.0
        %v4308 = vsel %vm2795, %v4244, 0.0
        %v4309 = vlaneseq
        %v4310 = vshrl.u32 %v4309, 7
        %v4311 = vsub.s32 0, %v4310
        %v4312 = vrot.slane %v2643, %v4311
        %v4313 = vlaneseq
        %v4314 = vshrl.u32 %v4313, 7
        %v4315 = vsub.s32 1, %v4314
        %v4316 = vrot.slane %v2643, %v4315
        %v4317 = vlaneseq
        %v4318 = vshrl.u32 %v4317, 7
        %v4319 = vsub.s32 2, %v4318
        %v4320 = vrot.slane %v2643, %v4319
        %v4321 = vlaneseq
        %v4322 = vshrl.u32 %v4321, 7
        %v4323 = vsub.s32 3, %v4322
        %v4324 = vrot.slane %v2643, %v4323
        %v4325 = vlaneseq
        %v4326 = vshrl.u32 %v4325, 7
        %v4327 = vsub.s32 4, %v4326
        %v4328 = vrot.slane %v2643, %v4327
        %v4329 = vlaneseq
        %v4330 = vshrl.u32 %v4329, 7
        %v4331 = vsub.s32 5, %v4330
        %v4332 = vrot.slane %v2643, %v4331
        %v4333 = vlaneseq
        %v4334 = vshrl.u32 %v4333, 7
        %v4335 = vsub.s32 6, %v4334
        %v4336 = vrot.slane %v2643, %v4335
        %v4337 = vlaneseq
        %v4338 = vshrl.u32 %v4337, 7
        %v4339 = vsub.s32 7, %v4338
        %v4340 = vrot.slane %v2643, %v4339
        %v4341 = vlaneseq
        %v4342 = vshrl.u32 %v4341, 7
        %v4343 = vsub.s32 0, %v4342
        %v4344 = vrot.slane %v2777, %v4343
        %v4345 = vlaneseq
        %v4346 = vshrl.u32 %v4345, 7
        %v4347 = vsub.s32 1, %v4346
        %v4348 = vrot.slane %v2777, %v4347
        %v4349 = vlaneseq
        %v4350 = vshrl.u32 %v4349, 7
        %v4351 = vsub.s32 2, %v4350
        %v4352 = vrot.slane %v2777, %v4351
        %v4353 = vlaneseq
        %v4354 = vshrl.u32 %v4353, 7
        %v4355 = vsub.s32 3, %v4354
        %v4356 = vrot.slane %v2777, %v4355
        %v4357 = vlaneseq
        %v4358 = vshrl.u32 %v4357, 7
        %v4359 = vsub.s32 4, %v4358
        %v4360 = vrot.slane %v2777, %v4359
        %v4361 = vlaneseq
        %v4362 = vshrl.u32 %v4361, 7
        %v4363 = vsub.s32 5, %v4362
        %v4364 = vrot.slane %v2777, %v4363
        %v4365 = vlaneseq
        %v4366 = vshrl.u32 %v4365, 7
        %v4367 = vsub.s32 6, %v4366
        %v4368 = vrot.slane %v2777, %v4367
        %v4369 = vlaneseq
        %v4370 = vshrl.u32 %v4369, 7
        %v4371 = vsub.s32 7, %v4370
        %v4372 = vrot.slane %v2777, %v4371
        %v4373 = vlaneseq
        %v4374 = vshrl.u32 %v4373, 7
        %v4375 = vsub.s32 0, %v4374
        %v4376 = vrot.slane %v2647, %v4375
        %v4377 = vlaneseq
        %v4378 = vshrl.u32 %v4377, 7
        %v4379 = vsub.s32 1, %v4378
        %v4380 = vrot.slane %v2647, %v4379
        %v4381 = vlaneseq
        %v4382 = vshrl.u32 %v4381, 7
        %v4383 = vsub.s32 2, %v4382
        %v4384 = vrot.slane %v2647, %v4383
        %v4385 = vlaneseq
        %v4386 = vshrl.u32 %v4385, 7
        %v4387 = vsub.s32 3, %v4386
        %v4388 = vrot.slane %v2647, %v4387
        %v4389 = vlaneseq
        %v4390 = vshrl.u32 %v4389, 7
        %v4391 = vsub.s32 4, %v4390
        %v4392 = vrot.slane %v2647, %v4391
        %v4393 = vlaneseq
        %v4394 = vshrl.u32 %v4393, 7
        %v4395 = vsub.s32 5, %v4394
        %v4396 = vrot.slane %v2647, %v4395
        %v4397 = vlaneseq
        %v4398 = vshrl.u32 %v4397, 7
        %v4399 = vsub.s32 6, %v4398
        %v4400 = vrot.slane %v2647, %v4399
        %v4401 = vlaneseq
        %v4402 = vshrl.u32 %v4401, 7
        %v4403 = vsub.s32 7, %v4402
        %v4404 = vrot.slane %v2647, %v4403
        %v4405 = vlaneseq
        %v4406 = vshrl.u32 %v4405, 7
        %v4407 = vsub.s32 0, %v4406
        %v4408 = vrot.slane %v2781, %v4407
        %v4409 = vlaneseq
        %v4410 = vshrl.u32 %v4409, 7
        %v4411 = vsub.s32 1, %v4410
        %v4412 = vrot.slane %v2781, %v4411
        %v4413 = vlaneseq
        %v4414 = vshrl.u32 %v4413, 7
        %v4415 = vsub.s32 2, %v4414
        %v4416 = vrot.slane %v2781, %v4415
        %v4417 = vlaneseq
        %v4418 = vshrl.u32 %v4417, 7
        %v4419 = vsub.s32 3, %v4418
        %v4420 = vrot.slane %v2781, %v4419
        %v4421 = vlaneseq
        %v4422 = vshrl.u32 %v4421, 7
        %v4423 = vsub.s32 4, %v4422
        %v4424 = vrot.slane %v2781, %v4423
        %v4425 = vlaneseq
        %v4426 = vshrl.u32 %v4425, 7
        %v4427 = vsub.s32 5, %v4426
        %v4428 = vrot.slane %v2781, %v4427
        %v4429 = vlaneseq
        %v4430 = vshrl.u32 %v4429, 7
        %v4431 = vsub.s32 6, %v4430
        %v4432 = vrot.slane %v2781, %v4431
        %v4433 = vlaneseq
        %v4434 = vshrl.u32 %v4433, 7
        %v4435 = vsub.s32 7, %v4434
        %v4436 = vrot.slane %v2781, %v4435
        %v4469 = vmul.f32 %v4312, %v4277
        %v4470 = vmul.f32 %v4316, %v4278
        %v4471 = vmul.f32 %v4320, %v4279
        %v4472 = vmul.f32 %v4324, %v4280
        %v4473 = vmul.f32 %v4328, %v4281
        %v4474 = vmul.f32 %v4332, %v4282
        %v4475 = vmul.f32 %v4336, %v4283
        %v4476 = vmul.f32 %v4340, %v4284
        %v4477 = vmul.f32 %v4344, %v4285
        %v4478 = vmul.f32 %v4348, %v4286
        %v4479 = vmul.f32 %v4352, %v4287
        %v4480 = vmul.f32 %v4356, %v4288
        %v4481 = vmul.f32 %v4360, %v4289
        %v4482 = vmul.f32 %v4364, %v4290
        %v4483 = vmul.f32 %v4368, %v4291
        %v4484 = vmul.f32 %v4372, %v4292
        %v4485 = vmul.f32 %v4376, %v4293
        %v4486 = vmul.f32 %v4380, %v4294
        %v4487 = vmul.f32 %v4384, %v4295
        %v4488 = vmul.f32 %v4388, %v4296
        %v4489 = vmul.f32 %v4392, %v4297
        %v4490 = vmul.f32 %v4396, %v4298
        %v4491 = vmul.f32 %v4400, %v4299
        %v4492 = vmul.f32 %v4404, %v4300
        %v4493 = vmul.f32 %v4408, %v4301
        %v4494 = vmul.f32 %v4412, %v4302
        %v4495 = vmul.f32 %v4416, %v4303
        %v4496 = vmul.f32 %v4420, %v4304
        %v4497 = vmul.f32 %v4424, %v4305
        %v4498 = vmul.f32 %v4428, %v4306
        %v4499 = vmul.f32 %v4432, %v4307
        %v4500 = vmul.f32 %v4436, %v4308
        %v4501 = vadd.f32 %v4181, %v4469
        %v4502 = vadd.f32 %v4182, %v4470
        %v4503 = vadd.f32 %v4183, %v4471
        %v4504 = vadd.f32 %v4184, %v4472
        %v4505 = vadd.f32 %v4185, %v4473
        %v4506 = vadd.f32 %v4186, %v4474
        %v4507 = vadd.f32 %v4187, %v4475
        %v4508 = vadd.f32 %v4188, %v4476
        %v4509 = vadd.f32 %v4189, %v4477
        %v4510 = vadd.f32 %v4190, %v4478
        %v4511 = vadd.f32 %v4191, %v4479
        %v4512 = vadd.f32 %v4192, %v4480
        %v4513 = vadd.f32 %v4193, %v4481
        %v4514 = vadd.f32 %v4194, %v4482
        %v4515 = vadd.f32 %v4195, %v4483
        %v4516 = vadd.f32 %v4196, %v4484
        %v4517 = vadd.f32 %v4197, %v4485
        %v4518 = vadd.f32 %v4198, %v4486
        %v4519 = vadd.f32 %v4199, %v4487
        %v4520 = vadd.f32 %v4200, %v4488
        %v4521 = vadd.f32 %v4201, %v4489
        %v4522 = vadd.f32 %v4202, %v4490
        %v4523 = vadd.f32 %v4203, %v4491
        %v4524 = vadd.f32 %v4204, %v4492
        %v4525 = vadd.f32 %v4205, %v4493
        %v4526 = vadd.f32 %v4206, %v4494
        %v4527 = vadd.f32 %v4207, %v4495
        %v4528 = vadd.f32 %v4208, %v4496
        %v4529 = vadd.f32 %v4209, %v4497
        %v4530 = vadd.f32 %v4210, %v4498
        %v4531 = vadd.f32 %v4211, %v4499
        %v4532 = vadd.f32 %v4212, %v4500
        %4533 = vst [vmem:[%s328] sm:$0xff] %v4501
        %4534 = vst [vmem:[%s328 + $0x8] sm:$0xff] %v4502
        %4535 = vst [vmem:[%s328 + $0x10] sm:$0xff] %v4503
        %4536 = vst [vmem:[%s328 + $0x18] sm:$0xff] %v4504
        %4537 = vst [vmem:[%s328 + $0x20] sm:$0xff] %v4505
        %4538 = vst [vmem:[%s328 + $0x28] sm:$0xff] %v4506
        %4539 = vst [vmem:[%s328 + $0x30] sm:$0xff] %v4507
        %4540 = vst [vmem:[%s328 + $0x38] sm:$0xff] %v4508
        %4541 = vst [vmem:[%s328 + $0x40] sm:$0xff] %v4509
        %4542 = vst [vmem:[%s328 + $0x48] sm:$0xff] %v4510
        %4543 = vst [vmem:[%s328 + $0x50] sm:$0xff] %v4511
        %4544 = vst [vmem:[%s328 + $0x58] sm:$0xff] %v4512
        %4545 = vst [vmem:[%s328 + $0x60] sm:$0xff] %v4513
        %4546 = vst [vmem:[%s328 + $0x68] sm:$0xff] %v4514
        %4547 = vst [vmem:[%s328 + $0x70] sm:$0xff] %v4515
        %4548 = vst [vmem:[%s328 + $0x78] sm:$0xff] %v4516
        %4549 = vst [vmem:[%s328 + $0x80] sm:$0xff] %v4517
        %4550 = vst [vmem:[%s328 + $0x88] sm:$0xff] %v4518
        %4551 = vst [vmem:[%s328 + $0x90] sm:$0xff] %v4519
        %4552 = vst [vmem:[%s328 + $0x98] sm:$0xff] %v4520
        %4553 = vst [vmem:[%s328 + $0xa0] sm:$0xff] %v4521
        %4554 = vst [vmem:[%s328 + $0xa8] sm:$0xff] %v4522
        %4555 = vst [vmem:[%s328 + $0xb0] sm:$0xff] %v4523
        %4556 = vst [vmem:[%s328 + $0xb8] sm:$0xff] %v4524
        %4557 = vst [vmem:[%s328 + $0xc0] sm:$0xff] %v4525
        %4558 = vst [vmem:[%s328 + $0xc8] sm:$0xff] %v4526
        %4559 = vst [vmem:[%s328 + $0xd0] sm:$0xff] %v4527
        %4560 = vst [vmem:[%s328 + $0xd8] sm:$0xff] %v4528
        %4561 = vst [vmem:[%s328 + $0xe0] sm:$0xff] %v4529
        %4562 = vst [vmem:[%s328 + $0xe8] sm:$0xff] %v4530
        %4563 = vst [vmem:[%s328 + $0xf0] sm:$0xff] %v4531
        %4564 = vst [vmem:[%s328 + $0xf8] sm:$0xff] %v4532
        %s4565 = sand.u32 %s225, 1
        %s4566 = scalar_lea.sflag [#allocation3], %s4565
        %s4567 = sand.u32 %s225, 1
        %s4568 = smul.addr %s4567, 256
        %s4569 = scalar_lea.vmem [#allocation2], %s4568
        // Predicated region
        $region57: #{tpu_custom_call.1} parent=55 // pred_check
          %p4570 = pneg %p235
        $region58: #{tpu_custom_call.1} parent=55 // pred_check_branch
          %4572 = sbr.rel (%p4570) target = $region60
        $region59: #{tpu_custom_call.1} parent=55 // pred_region
          %s4573 = smul.u32 2, %s23
          %s4575 = ssub.s32 4096, 4096
          %4576 = vsyncadd %s4566, %s4575
          %s4577 = smul.addr %s4573, 16
          %s4578 = smul.addr %s4577, 128
          %s4579 = scalar_lea.hbm %s9, %s4578
          %s4580 = sshll.u32 %s4569, 4
          %s4581 = int_to_ptr.vmem [resolvable:$true] %s4580
          %4586 = dma.vmem_to_hbm [thread:$0]  %s4581, 4096, %s4579, %s4566, 2048, 2048, 128
        $region60: #{tpu_custom_call.1} parent=55 // pred_fallthru
          _
      $region56: #{tpu_custom_call.1} parent=5 // pred_fallthru
        _
      %p4587 = scmp.le.s32.totalorder 2, %s18
      // Predicated region
      $region61: #{tpu_custom_call.1} parent=5 // pred_check
        %p4588 = pneg %p4587
      $region62: #{tpu_custom_call.1} parent=5 // pred_check_branch
        %4590 = sbr.rel (%p4588) target = $region64
      $region63: #{tpu_custom_call.1} parent=5 // pred_region
        %s4591 = ssub.s32 %s18, 2
        // Predicated region
        $region65: #{tpu_custom_call.1} parent=63 // pred_check
          %p4592 = pneg %p241
        $region66: #{tpu_custom_call.1} parent=63 // pred_check_branch
          %4594 = sbr.rel (%p4592) target = $region68
        $region67: #{tpu_custom_call.1} parent=63 // pred_region
          %s4595 = sand.u32 %s226, 1
          %s4596 = scalar_lea.sflag [#allocation3], %s4595
          %s4597 = sand.u32 %s226, 1
          %s4598 = smul.addr %s4597, 256
          %s4599 = scalar_lea.vmem [#allocation2], %s4598
          %4600 = dma.done %s4596, 4096
        $region68: #{tpu_custom_call.1} parent=63 // pred_fallthru
          _
      $region64: #{tpu_custom_call.1} parent=5 // pred_fallthru
        _
    $region6: #{tpu_custom_call.1} parent=1 // loop_footer
      %s22 = sadd.s32 1, %s18
    $region7: #{tpu_custom_call.1} parent=1 // loop_footer_branch
      %17 = sbr.rel target = $region3
    $region8: #{tpu_custom_call.1} parent=1 // loop_exit
      _
    %4601 = vsyncpa [#allocation3], 1
    %s4602 = scalar_lea.sflag [#allocation3], 1
    %4603 = vsyncpa %s4602, 1

</llo_original>
